<compile_context>
chip_gen: v7x
topology: tpu7x:2x2x1
jax: 0.10.0
libtpu: 0.0.40
codegen_flags: <defaults>
</compile_context>

<pallas_src>
import functools

import jax
import jax.numpy as jnp
from jax import lax
from jax.experimental import pallas as pl
from jax.experimental.pallas import tpu as pltpu

LANE = 128
SUB = 8
VMEM_LIMIT = 32 * 1024 * 1024   # conservative: v7x has only 64 MiB physical VMEM


def _round_up(x, m):
    return (x + m - 1) // m * m


def _cdiv(a, b):
    return (a + b - 1) // b


def _apply_act(x, act):
    if act == "relu":
        return jnp.maximum(x, 0.0)
    if act == "lrelu":
        return jnp.where(x >= 0, x, 0.02 * x)   # negative_slope=0.02 (matches module)
    if act == "sigmoid":
        return jax.nn.sigmoid(x)
    if act == "identity":
        return x
    raise ValueError(act)


# ---------------------------------------------------------------------------
# Fused SpiralConv: in-kernel spiral gather + matmul + bias + act + row mask
# ---------------------------------------------------------------------------
def _spiral_conv_kernel(idx_ref, x_ref, w_ref, b_ref, o_ref, gbuf_ref, *,
                        S, C, TM, n_keep, act):
    # idx_ref : SMEM int32 [rows_total * S]   (scalar prefetch; pad rows -> zero row)
    # x_ref   : VMEM f32  (1, Vin, C)         (full per-batch lane-padded activations)
    # w_ref   : VMEM bf16 (S*C, Npad)
    # b_ref   : VMEM f32  (1, Npad)
    # o_ref   : VMEM f32  (1, TM, Npad)
    # gbuf_ref: VMEM f32  (TM, S*C)           (gathered im2col rows, scratch)
    i = pl.program_id(1)
    base = i * (TM * S)

    def gather_row(r, carry):
        off = base + r * S
        for s in range(S):                       # S is small & static: unrolled
            v = idx_ref[off + s]
            # one aligned (1, C) load + one aligned (1, C) store, no casts
            gbuf_ref[pl.ds(r, 1), pl.ds(s * C, C)] = x_ref[0, pl.ds(v, 1), :]
        return carry

    # unroll=8 lets the scheduler interleave the index->address->vld chains of
    # several rows (the gather is the critical path of this kernel).
    lax.fori_loop(0, TM, gather_row, 0, unroll=8)

    acc = jnp.dot(gbuf_ref[...].astype(jnp.bfloat16), w_ref[...],
                  preferred_element_type=jnp.float32)
    acc = acc + b_ref[...]                       # f32 epilogue (v5e friendly)
    acc = _apply_act(acc, act)
    # Zero dummy/pad rows so any row >= n_keep is a valid "zero vertex" for the
    # next layer's -1 spiral entries; PyTorch drops these rows anyway.
    rows = i * TM + lax.broadcasted_iota(jnp.int32, (TM, 1), 0)
    acc = jnp.where(rows < n_keep, acc, 0.0)
    o_ref[0] = acc.astype(o_ref.dtype)           # lane-dense (Npad) store


def prepare_spiral_layer(spiral, deci_verts, W, b, *, in_rows, in_channels,
                         zero_row, tm_cap=512):
    """One-time per-layer prep: gather-index table + padded/casted weights.

    in_rows / in_channels : shape of the (row/lane padded) carried input map.
    zero_row              : row of the carried input guaranteed to be all-zero
                            (used for the PyTorch `-1` spiral padding entries).
    """
    _, S = spiral.shape
    K, N = W.shape
    F = K // S
    assert F * S == K
    n_keep = int(deci_verts.shape[0])

    idx = spiral[deci_verts.astype(jnp.int32)]                   # [n_keep, S]
    idx = jnp.where(idx < 0, zero_row, idx).astype(jnp.int32)

    # Row tiling: biggest tile that fits, but keep >= 2 row tiles when possible
    # so both v7x TensorCores get work even at batch == 1.
    rows0 = n_keep + 1                           # + dummy row (always dropped)
    TM = min(tm_cap, _round_up(rows0, SUB))
    if _round_up(rows0, TM) == TM and rows0 > SUB:
        TM = _round_up(_cdiv(rows0, 2), SUB)
    rows_total = _round_up(rows0, TM)
    pad_rows = rows_total - n_keep               # dummy + alignment rows
    idx = jnp.concatenate(
        [idx, jnp.full((pad_rows, S), zero_row, jnp.int32)], axis=0)

    C = in_channels
    Npad = _round_up(N, LANE)
    # W rows remapped from (s*F + c) to (s*C + c); padded rows/cols are zero.
    Wp = jnp.zeros((S, C, Npad), jnp.bfloat16)
    Wp = Wp.at[:, :F, :N].set(W.astype(jnp.bfloat16).reshape(S, F, N))
    Wp = Wp.reshape(S * C, Npad)
    bp = jnp.zeros((1, Npad), jnp.float32).at[0, :N].set(b.astype(jnp.float32))
    return dict(idx_flat=idx.reshape(-1), W=Wp, b=bp, S=S, C=C, F=F, N=N,
                Npad=Npad, TM=TM, rows_total=rows_total, n_keep=n_keep,
                in_rows=in_rows)


def spiral_conv_apply(x, layer, act):
    """x: [B, in_rows, C] f32 (lane/row padded) -> [B, rows_total, Npad] f32."""
    B, Vin, C = x.shape
    assert Vin == layer["in_rows"] and C == layer["C"]
    S, TM, Npad = layer["S"], layer["TM"], layer["Npad"]
    rows_total = layer["rows_total"]

    kernel = functools.partial(_spiral_conv_kernel, S=S, C=C, TM=TM,
                               n_keep=layer["n_keep"], act=act)

    flops = 2 * B * rows_total * (S * C) * Npad
    trans = B * rows_total * Npad if act == "sigmoid" else 0
    bytes_accessed = (B * Vin * C * 4 + int(layer["idx_flat"].size) * 4
                      + int(layer["W"].size) * 2 + int(layer["b"].size) * 4
                      + B * rows_total * Npad * 4)

    return pl.pallas_call(
        kernel,
        out_shape=jax.ShapeDtypeStruct((B, rows_total, Npad), jnp.float32),
        grid_spec=pltpu.PrefetchScalarGridSpec(
            num_scalar_prefetch=1,
            grid=(B, rows_total // TM),
            in_specs=[
                # Full per-batch activation map; its block index only depends
                # on the batch axis, so it stays VMEM-resident across row tiles.
                pl.BlockSpec((1, Vin, C), lambda b, i, idx: (b, 0, 0)),
                pl.BlockSpec((S * C, Npad), lambda b, i, idx: (0, 0)),
                pl.BlockSpec((1, Npad), lambda b, i, idx: (0, 0)),
            ],
            out_specs=pl.BlockSpec((1, TM, Npad), lambda b, i, idx: (b, i, 0)),
            scratch_shapes=[pltpu.VMEM((TM, S * C), jnp.float32)],
        ),
        compiler_params=pltpu.CompilerParams(
            dimension_semantics=("parallel", "parallel"),
            vmem_limit_bytes=VMEM_LIMIT),
        cost_estimate=pl.CostEstimate(flops=flops, transcendentals=trans,
                                      bytes_accessed=bytes_accessed),
    )(layer["idx_flat"], x, layer["W"], layer["b"])


# ---------------------------------------------------------------------------
# fc_enc: K-tiled accumulator matmul (GEMV-shaped), bf16 weight stream
# ---------------------------------------------------------------------------
def _fc_kernel(x_ref, w_ref, b_ref, o_ref, acc_ref, *, act):
    k = pl.program_id(0)

    @pl.when(k == 0)
    def _():
        acc_ref[...] = jnp.zeros_like(acc_ref)

    acc_ref[...] += jnp.dot(x_ref[...], w_ref[...],
                            preferred_element_type=jnp.float32)

    @pl.when(k == pl.num_programs(0) - 1)
    def _():
        acc = acc_ref[...] + b_ref[...]
        o_ref[...] = _apply_act(acc, act).astype(o_ref.dtype)


def prepare_fc(W, b, *, tk_cap=8192):
    K, N = W.shape
    Npad = _round_up(N, LANE)
    Kpad = _round_up(K, LANE)
    # Few, large K tiles: the HBM weight stream is the only real cost here.
    n_steps = _cdiv(Kpad, tk_cap)
    TK = _round_up(_cdiv(Kpad, n_steps), LANE)
    Kpad = _round_up(Kpad, TK)
    Wp = jnp.zeros((Kpad, Npad), jnp.bfloat16).at[:K, :N].set(
        W.astype(jnp.bfloat16))
    bp = jnp.zeros((1, Npad), jnp.float32).at[0, :N].set(b.astype(jnp.float32))
    return dict(W=Wp, b=bp, K=K, N=N, Kpad=Kpad, Npad=Npad, TK=TK)


def fc_apply(flat, layer, act="identity"):
    B, K = flat.shape
    assert K == layer["K"]
    Kpad, Npad, TK = layer["Kpad"], layer["Npad"], layer["TK"]
    Mp = _round_up(max(B, SUB), SUB)
    xp = jnp.zeros((Mp, Kpad), jnp.bfloat16).at[:B, :K].set(
        flat.astype(jnp.bfloat16))

    flops = 2 * Mp * Kpad * Npad
    trans = Mp * Npad if act == "sigmoid" else 0
    bytes_accessed = Mp * Kpad * 2 + Kpad * Npad * 2 + Npad * 4 + Mp * Npad * 4

    out = pl.pallas_call(
        functools.partial(_fc_kernel, act=act),
        out_shape=jax.ShapeDtypeStruct((Mp, Npad), jnp.float32),
        grid_spec=pltpu.PrefetchScalarGridSpec(
            num_scalar_prefetch=0,
            grid=(Kpad // TK,),
            in_specs=[
                pl.BlockSpec((Mp, TK), lambda k: (0, k)),
                pl.BlockSpec((TK, Npad), lambda k: (k, 0)),
                pl.BlockSpec((1, Npad), lambda k: (0, 0)),
            ],
            out_specs=pl.BlockSpec((Mp, Npad), lambda k: (0, 0)),
            scratch_shapes=[pltpu.VMEM((Mp, Npad), jnp.float32)],
        ),
        compiler_params=pltpu.CompilerParams(
            dimension_semantics=("arbitrary",),
            vmem_limit_bytes=VMEM_LIMIT),
        cost_estimate=pl.CostEstimate(flops=flops, transcendentals=trans,
                                      bytes_accessed=bytes_accessed),
    )(xp, layer["W"], layer["b"])
    return out[:B, :layer["N"]]


# ---------------------------------------------------------------------------
# Encoder prep + forward
# ---------------------------------------------------------------------------
def prepare_encoder(spirals, decis, conv_params, fc_params, *, num_verts0,
                    in_feats, act):
    conv_layers = []
    in_rows = _round_up(num_verts0 + 1, SUB)     # + at least one all-zero row
    in_ch = _round_up(in_feats, LANE)
    zero_row = num_verts0
    for (W, b), sp, deci in zip(conv_params, spirals, decis):
        layer = prepare_spiral_layer(sp, deci, W, b, in_rows=in_rows,
                                     in_channels=in_ch, zero_row=zero_row)
        conv_layers.append(layer)
        in_rows = layer["rows_total"]
        in_ch = layer["Npad"]
        zero_row = layer["n_keep"]               # rows >= n_keep are zeroed
    return dict(conv=conv_layers, fc=prepare_fc(*fc_params), act=act)


def spiral_encoder_forward(x, enc):
    B, V0, F0 = x.shape
    l0 = enc["conv"][0]
    # One-time lane/row zero-padding of the raw input; afterwards activations
    # stay lane-dense and row-padded between layers (no per-layer concat/slice).
    h = jnp.zeros((B, l0["in_rows"], l0["C"]), jnp.float32)
    h = h.at[:, :V0, :F0].set(x.astype(jnp.float32))
    for layer in enc["conv"]:
        h = spiral_conv_apply(h, layer, enc["act"])
    last = enc["conv"][-1]
    flat = h[:, :last["n_keep"], :last["N"]].reshape(B, -1)
    return fc_apply(flat, enc["fc"], act="identity")


# ---------------------------------------------------------------------------
# Pure-JAX reference (same math, same bf16 MXU rounding) for correctness check.
# ---------------------------------------------------------------------------
def _ref_forward(x, conv_params, fc_params, spirals, decis, act):
    x = x.astype(jnp.float32)
    for (W, b), spiral, deci in zip(conv_params, spirals, decis):
        B, V, F = x.shape
        S = spiral.shape[1]
        x_dummy = jnp.concatenate([x, jnp.zeros((B, 1, F), x.dtype)], axis=1)
        idx = spiral[deci]                       # [n_keep, S]
        idx = jnp.where(idx < 0, V, idx)
        n_keep = deci.shape[0]
        flat = x_dummy[:, idx, :].reshape(B * n_keep, S * F)
        out = jnp.dot(flat.astype(jnp.bfloat16), W.astype(jnp.bfloat16),
                      preferred_element_type=jnp.float32) + b
        out = _apply_act(out, act)
        x = out.reshape(B, n_keep, -1)
    Wf, bf = fc_params
    flat = x.reshape(x.shape[0], -1)
    return jnp.dot(flat.astype(jnp.bfloat16), Wf.astype(jnp.bfloat16),
                   preferred_element_type=jnp.float32) + bf


# ---------------------------------------------------------------------------
if __name__ == "__main__":
    key = jax.random.PRNGKey(0)
    ks = jax.random.split(key, 10)

    # Small synthetic mesh hierarchy.
    B = 2
    V0, V1, V2 = 16, 8, 4          # vertex counts per level
    S = 6                          # spiral length
    enc_filters = [4, 8, 16]       # channel dims
    nlat = 32
    act = "relu"

    # Spiral index tensors (values in [-1, V_i); -1 = padding / zero vertex).
    spiral0 = jax.random.randint(ks[0], (V0, S), -1, V0, dtype=jnp.int32)
    spiral1 = jax.random.randint(ks[1], (V1, S), -1, V1, dtype=jnp.int32)
    spirals = [spiral0, spiral1]

    # deci_verts[i] == columns of the nonzeros of the selection matrix D[i].
    decis = [jnp.arange(0, V0, 2, dtype=jnp.int32),
             jnp.arange(0, V1, 2, dtype=jnp.int32)]

    # Deterministic synthetic parameters (nn.Linear(S*in_dim, out_dim) per layer).
    conv_params = []
    for i in range(len(enc_filters) - 1):
        in_dim, out_dim = enc_filters[i], enc_filters[i + 1]
        W = 0.1 * jax.random.normal(ks[2 + 2 * i], (S * in_dim, out_dim),
                                    dtype=jnp.float32)
        b = 0.1 * jax.random.normal(ks[3 + 2 * i], (out_dim,),
                                    dtype=jnp.float32)
        conv_params.append((W, b))

    # fc_enc: Linear(num_verts_last * enc_filters[-1], nlat)
    Wf = 0.1 * jax.random.normal(ks[6], (V2 * enc_filters[-1], nlat),
                                 dtype=jnp.float32)
    bf = 0.1 * jax.random.normal(ks[7], (nlat,), dtype=jnp.float32)

    # One-time parameter prep (weight cast/pad, remapped gather index tables).
    enc = prepare_encoder(spirals, decis, conv_params, (Wf, bf),
                          num_verts0=V0, in_feats=enc_filters[0], act=act)

    # Input: [B, V0, enc_filters[0]]
    x = jax.random.normal(ks[8], (B, V0, enc_filters[0]), dtype=jnp.float32)

    fwd = jax.jit(lambda xx: spiral_encoder_forward(xx, enc))
    z = jax.block_until_ready(fwd(x))
    assert z.shape == (B, nlat), z.shape

    z_ref = _ref_forward(x, conv_params, (Wf, bf), spirals, decis, act)
    err = float(jnp.max(jnp.abs(z - z_ref)))
    assert jnp.allclose(z, z_ref, atol=3e-2, rtol=3e-2), err

    print("KERNEL_OK")
</pallas_src>

<mosaic_0001>
module attributes {stable_mosaic.version = 11 : i64} {
  func.func @_spiral_conv_kernel(%arg0: i32, %arg1: i32, %arg2: memref<96xi32, #tpu.memory_space<smem>>, %arg3: memref<1x24x128xf32, #tpu.memory_space<vmem>>, %arg4: memref<768x128xbf16, #tpu.memory_space<vmem>>, %arg5: memref<1x128xf32, #tpu.memory_space<vmem>>, %arg6: memref<1x8x128xf32, #tpu.memory_space<vmem>>, %arg7: memref<8x768xf32, #tpu.memory_space<vmem>>) attributes {dimension_semantics = [#tpu.dimension_semantics<parallel>, #tpu.dimension_semantics<parallel>], iteration_bounds = array<i64: 2, 2>, scalar_prefetch = 1 : i64, scratch_operands = 1 : i64, tpu.core_type = #tpu.core_type<tc>, window_params = [{transform_indices = @transform_0, window_bounds = array<i64: 1, 24, 128>}, {pipeline_mode = #tpu.pipeline_mode<synchronous>, transform_indices = @transform_1, window_bounds = array<i64: 768, 128>}, {pipeline_mode = #tpu.pipeline_mode<synchronous>, transform_indices = @transform_2, window_bounds = array<i64: 1, 128>}, {transform_indices = @transform_3, window_bounds = array<i64: 1, 8, 128>}]} {
    %c48_i32 = arith.constant 48 : i32
    %0 = arith.muli %arg1, %c48_i32 : i32
    %c0_i32 = arith.constant 0 : i32
    %c6_i32 = arith.constant 6 : i32
    %1 = arith.muli %c0_i32, %c6_i32 : i32
    %2 = arith.addi %0, %1 : i32
    %c0_i32_0 = arith.constant 0 : i32
    %3 = arith.addi %2, %c0_i32_0 : i32
    %4 = arith.index_cast %3 : i32 to index
    %5 = memref.load %arg2[%4] : memref<96xi32, #tpu.memory_space<smem>>
    %c0 = arith.constant 0 : index
    %6 = arith.index_cast %5 : i32 to index
    %c0_1 = arith.constant 0 : index
    %7 = vector.load %arg3[%c0, %6, %c0_1] : memref<1x24x128xf32, #tpu.memory_space<vmem>>, vector<1x1x128xf32>
    %8 = vector.shape_cast %7 : vector<1x1x128xf32> to vector<1x128xf32>
    %9 = arith.index_cast %c0_i32 : i32 to index
    %c0_2 = arith.constant 0 : index
    %10 = vector.load %arg7[%9, %c0_2] : memref<8x768xf32, #tpu.memory_space<vmem>>, vector<1x128xf32>
    tpu.vector_store %arg7[%9, %c0_2], %8 {strides = array<i32>} : memref<8x768xf32, #tpu.memory_space<vmem>>, vector<1x128xf32>,
    %c1_i32 = arith.constant 1 : i32
    %11 = arith.addi %2, %c1_i32 : i32
    %12 = arith.index_cast %11 : i32 to index
    %13 = memref.load %arg2[%12] : memref<96xi32, #tpu.memory_space<smem>>
    %c0_3 = arith.constant 0 : index
    %14 = arith.index_cast %13 : i32 to index
    %c0_4 = arith.constant 0 : index
    %15 = vector.load %arg3[%c0_3, %14, %c0_4] : memref<1x24x128xf32, #tpu.memory_space<vmem>>, vector<1x1x128xf32>
    %16 = vector.shape_cast %15 : vector<1x1x128xf32> to vector<1x128xf32>
    %17 = arith.index_cast %c0_i32 : i32 to index
    %c128 = arith.constant 128 : index
    %18 = vector.load %arg7[%17, %c128] : memref<8x768xf32, #tpu.memory_space<vmem>>, vector<1x128xf32>
    tpu.vector_store %arg7[%17, %c128], %16 {strides = array<i32>} : memref<8x768xf32, #tpu.memory_space<vmem>>, vector<1x128xf32>,
    %c2_i32 = arith.constant 2 : i32
    %19 = arith.addi %2, %c2_i32 : i32
    %20 = arith.index_cast %19 : i32 to index
    %21 = memref.load %arg2[%20] : memref<96xi32, #tpu.memory_space<smem>>
    %c0_5 = arith.constant 0 : index
    %22 = arith.index_cast %21 : i32 to index
    %c0_6 = arith.constant 0 : index
    %23 = vector.load %arg3[%c0_5, %22, %c0_6] : memref<1x24x128xf32, #tpu.memory_space<vmem>>, vector<1x1x128xf32>
    %24 = vector.shape_cast %23 : vector<1x1x128xf32> to vector<1x128xf32>
    %25 = arith.index_cast %c0_i32 : i32 to index
    %c256 = arith.constant 256 : index
    %26 = vector.load %arg7[%25, %c256] : memref<8x768xf32, #tpu.memory_space<vmem>>, vector<1x128xf32>
    tpu.vector_store %arg7[%25, %c256], %24 {strides = array<i32>} : memref<8x768xf32, #tpu.memory_space<vmem>>, vector<1x128xf32>,
    %c3_i32 = arith.constant 3 : i32
    %27 = arith.addi %2, %c3_i32 : i32
    %28 = arith.index_cast %27 : i32 to index
    %29 = memref.load %arg2[%28] : memref<96xi32, #tpu.memory_space<smem>>
    %c0_7 = arith.constant 0 : index
    %30 = arith.index_cast %29 : i32 to index
    %c0_8 = arith.constant 0 : index
    %31 = vector.load %arg3[%c0_7, %30, %c0_8] : memref<1x24x128xf32, #tpu.memory_space<vmem>>, vector<1x1x128xf32>
    %32 = vector.shape_cast %31 : vector<1x1x128xf32> to vector<1x128xf32>
    %33 = arith.index_cast %c0_i32 : i32 to index
    %c384 = arith.constant 384 : index
    %34 = vector.load %arg7[%33, %c384] : memref<8x768xf32, #tpu.memory_space<vmem>>, vector<1x128xf32>
    tpu.vector_store %arg7[%33, %c384], %32 {strides = array<i32>} : memref<8x768xf32, #tpu.memory_space<vmem>>, vector<1x128xf32>,
    %c4_i32 = arith.constant 4 : i32
    %35 = arith.addi %2, %c4_i32 : i32
    %36 = arith.index_cast %35 : i32 to index
    %37 = memref.load %arg2[%36] : memref<96xi32, #tpu.memory_space<smem>>
    %c0_9 = arith.constant 0 : index
    %38 = arith.index_cast %37 : i32 to index
    %c0_10 = arith.constant 0 : index
    %39 = vector.load %arg3[%c0_9, %38, %c0_10] : memref<1x24x128xf32, #tpu.memory_space<vmem>>, vector<1x1x128xf32>
    %40 = vector.shape_cast %39 : vector<1x1x128xf32> to vector<1x128xf32>
    %41 = arith.index_cast %c0_i32 : i32 to index
    %c512 = arith.constant 512 : index
    %42 = vector.load %arg7[%41, %c512] : memref<8x768xf32, #tpu.memory_space<vmem>>, vector<1x128xf32>
    tpu.vector_store %arg7[%41, %c512], %40 {strides = array<i32>} : memref<8x768xf32, #tpu.memory_space<vmem>>, vector<1x128xf32>,
    %c5_i32 = arith.constant 5 : i32
    %43 = arith.addi %2, %c5_i32 : i32
    %44 = arith.index_cast %43 : i32 to index
    %45 = memref.load %arg2[%44] : memref<96xi32, #tpu.memory_space<smem>>
    %c0_11 = arith.constant 0 : index
    %46 = arith.index_cast %45 : i32 to index
    %c0_12 = arith.constant 0 : index
    %47 = vector.load %arg3[%c0_11, %46, %c0_12] : memref<1x24x128xf32, #tpu.memory_space<vmem>>, vector<1x1x128xf32>
    %48 = vector.shape_cast %47 : vector<1x1x128xf32> to vector<1x128xf32>
    %49 = arith.index_cast %c0_i32 : i32 to index
    %c640 = arith.constant 640 : index
    %50 = vector.load %arg7[%49, %c640] : memref<8x768xf32, #tpu.memory_space<vmem>>, vector<1x128xf32>
    tpu.vector_store %arg7[%49, %c640], %48 {strides = array<i32>} : memref<8x768xf32, #tpu.memory_space<vmem>>, vector<1x128xf32>,
    %c1_i32_13 = arith.constant 1 : i32
    %c6_i32_14 = arith.constant 6 : i32
    %51 = arith.muli %c1_i32_13, %c6_i32_14 : i32
    %52 = arith.addi %0, %51 : i32
    %c0_i32_15 = arith.constant 0 : i32
    %53 = arith.addi %52, %c0_i32_15 : i32
    %54 = arith.index_cast %53 : i32 to index
    %55 = memref.load %arg2[%54] : memref<96xi32, #tpu.memory_space<smem>>
    %c0_16 = arith.constant 0 : index
    %56 = arith.index_cast %55 : i32 to index
    %c0_17 = arith.constant 0 : index
    %57 = vector.load %arg3[%c0_16, %56, %c0_17] : memref<1x24x128xf32, #tpu.memory_space<vmem>>, vector<1x1x128xf32>
    %58 = vector.shape_cast %57 : vector<1x1x128xf32> to vector<1x128xf32>
    %59 = arith.index_cast %c1_i32_13 : i32 to index
    %c0_18 = arith.constant 0 : index
    %60 = vector.load %arg7[%59, %c0_18] : memref<8x768xf32, #tpu.memory_space<vmem>>, vector<1x128xf32>
    tpu.vector_store %arg7[%59, %c0_18], %58 {strides = array<i32>} : memref<8x768xf32, #tpu.memory_space<vmem>>, vector<1x128xf32>,
    %c1_i32_19 = arith.constant 1 : i32
    %61 = arith.addi %52, %c1_i32_19 : i32
    %62 = arith.index_cast %61 : i32 to index
    %63 = memref.load %arg2[%62] : memref<96xi32, #tpu.memory_space<smem>>
    %c0_20 = arith.constant 0 : index
    %64 = arith.index_cast %63 : i32 to index
    %c0_21 = arith.constant 0 : index
    %65 = vector.load %arg3[%c0_20, %64, %c0_21] : memref<1x24x128xf32, #tpu.memory_space<vmem>>, vector<1x1x128xf32>
    %66 = vector.shape_cast %65 : vector<1x1x128xf32> to vector<1x128xf32>
    %67 = arith.index_cast %c1_i32_13 : i32 to index
    %c128_22 = arith.constant 128 : index
    %68 = vector.load %arg7[%67, %c128_22] : memref<8x768xf32, #tpu.memory_space<vmem>>, vector<1x128xf32>
    tpu.vector_store %arg7[%67, %c128_22], %66 {strides = array<i32>} : memref<8x768xf32, #tpu.memory_space<vmem>>, vector<1x128xf32>,
    %c2_i32_23 = arith.constant 2 : i32
    %69 = arith.addi %52, %c2_i32_23 : i32
    %70 = arith.index_cast %69 : i32 to index
    %71 = memref.load %arg2[%70] : memref<96xi32, #tpu.memory_space<smem>>
    %c0_24 = arith.constant 0 : index
    %72 = arith.index_cast %71 : i32 to index
    %c0_25 = arith.constant 0 : index
    %73 = vector.load %arg3[%c0_24, %72, %c0_25] : memref<1x24x128xf32, #tpu.memory_space<vmem>>, vector<1x1x128xf32>
    %74 = vector.shape_cast %73 : vector<1x1x128xf32> to vector<1x128xf32>
    %75 = arith.index_cast %c1_i32_13 : i32 to index
    %c256_26 = arith.constant 256 : index
    %76 = vector.load %arg7[%75, %c256_26] : memref<8x768xf32, #tpu.memory_space<vmem>>, vector<1x128xf32>
    tpu.vector_store %arg7[%75, %c256_26], %74 {strides = array<i32>} : memref<8x768xf32, #tpu.memory_space<vmem>>, vector<1x128xf32>,
    %c3_i32_27 = arith.constant 3 : i32
    %77 = arith.addi %52, %c3_i32_27 : i32
    %78 = arith.index_cast %77 : i32 to index
    %79 = memref.load %arg2[%78] : memref<96xi32, #tpu.memory_space<smem>>
    %c0_28 = arith.constant 0 : index
    %80 = arith.index_cast %79 : i32 to index
    %c0_29 = arith.constant 0 : index
    %81 = vector.load %arg3[%c0_28, %80, %c0_29] : memref<1x24x128xf32, #tpu.memory_space<vmem>>, vector<1x1x128xf32>
    %82 = vector.shape_cast %81 : vector<1x1x128xf32> to vector<1x128xf32>
    %83 = arith.index_cast %c1_i32_13 : i32 to index
    %c384_30 = arith.constant 384 : index
    %84 = vector.load %arg7[%83, %c384_30] : memref<8x768xf32, #tpu.memory_space<vmem>>, vector<1x128xf32>
    tpu.vector_store %arg7[%83, %c384_30], %82 {strides = array<i32>} : memref<8x768xf32, #tpu.memory_space<vmem>>, vector<1x128xf32>,
    %c4_i32_31 = arith.constant 4 : i32
    %85 = arith.addi %52, %c4_i32_31 : i32
    %86 = arith.index_cast %85 : i32 to index
    %87 = memref.load %arg2[%86] : memref<96xi32, #tpu.memory_space<smem>>
    %c0_32 = arith.constant 0 : index
    %88 = arith.index_cast %87 : i32 to index
    %c0_33 = arith.constant 0 : index
    %89 = vector.load %arg3[%c0_32, %88, %c0_33] : memref<1x24x128xf32, #tpu.memory_space<vmem>>, vector<1x1x128xf32>
    %90 = vector.shape_cast %89 : vector<1x1x128xf32> to vector<1x128xf32>
    %91 = arith.index_cast %c1_i32_13 : i32 to index
    %c512_34 = arith.constant 512 : index
    %92 = vector.load %arg7[%91, %c512_34] : memref<8x768xf32, #tpu.memory_space<vmem>>, vector<1x128xf32>
    tpu.vector_store %arg7[%91, %c512_34], %90 {strides = array<i32>} : memref<8x768xf32, #tpu.memory_space<vmem>>, vector<1x128xf32>,
    %c5_i32_35 = arith.constant 5 : i32
    %93 = arith.addi %52, %c5_i32_35 : i32
    %94 = arith.index_cast %93 : i32 to index
    %95 = memref.load %arg2[%94] : memref<96xi32, #tpu.memory_space<smem>>
    %c0_36 = arith.constant 0 : index
    %96 = arith.index_cast %95 : i32 to index
    %c0_37 = arith.constant 0 : index
    %97 = vector.load %arg3[%c0_36, %96, %c0_37] : memref<1x24x128xf32, #tpu.memory_space<vmem>>, vector<1x1x128xf32>
    %98 = vector.shape_cast %97 : vector<1x1x128xf32> to vector<1x128xf32>
    %99 = arith.index_cast %c1_i32_13 : i32 to index
    %c640_38 = arith.constant 640 : index
    %100 = vector.load %arg7[%99, %c640_38] : memref<8x768xf32, #tpu.memory_space<vmem>>, vector<1x128xf32>
    tpu.vector_store %arg7[%99, %c640_38], %98 {strides = array<i32>} : memref<8x768xf32, #tpu.memory_space<vmem>>, vector<1x128xf32>,
    %c2_i32_39 = arith.constant 2 : i32
    %c6_i32_40 = arith.constant 6 : i32
    %101 = arith.muli %c2_i32_39, %c6_i32_40 : i32
    %102 = arith.addi %0, %101 : i32
    %c0_i32_41 = arith.constant 0 : i32
    %103 = arith.addi %102, %c0_i32_41 : i32
    %104 = arith.index_cast %103 : i32 to index
    %105 = memref.load %arg2[%104] : memref<96xi32, #tpu.memory_space<smem>>
    %c0_42 = arith.constant 0 : index
    %106 = arith.index_cast %105 : i32 to index
    %c0_43 = arith.constant 0 : index
    %107 = vector.load %arg3[%c0_42, %106, %c0_43] : memref<1x24x128xf32, #tpu.memory_space<vmem>>, vector<1x1x128xf32>
    %108 = vector.shape_cast %107 : vector<1x1x128xf32> to vector<1x128xf32>
    %109 = arith.index_cast %c2_i32_39 : i32 to index
    %c0_44 = arith.constant 0 : index
    %110 = vector.load %arg7[%109, %c0_44] : memref<8x768xf32, #tpu.memory_space<vmem>>, vector<1x128xf32>
    tpu.vector_store %arg7[%109, %c0_44], %108 {strides = array<i32>} : memref<8x768xf32, #tpu.memory_space<vmem>>, vector<1x128xf32>,
    %c1_i32_45 = arith.constant 1 : i32
    %111 = arith.addi %102, %c1_i32_45 : i32
    %112 = arith.index_cast %111 : i32 to index
    %113 = memref.load %arg2[%112] : memref<96xi32, #tpu.memory_space<smem>>
    %c0_46 = arith.constant 0 : index
    %114 = arith.index_cast %113 : i32 to index
    %c0_47 = arith.constant 0 : index
    %115 = vector.load %arg3[%c0_46, %114, %c0_47] : memref<1x24x128xf32, #tpu.memory_space<vmem>>, vector<1x1x128xf32>
    %116 = vector.shape_cast %115 : vector<1x1x128xf32> to vector<1x128xf32>
    %117 = arith.index_cast %c2_i32_39 : i32 to index
    %c128_48 = arith.constant 128 : index
    %118 = vector.load %arg7[%117, %c128_48] : memref<8x768xf32, #tpu.memory_space<vmem>>, vector<1x128xf32>
    tpu.vector_store %arg7[%117, %c128_48], %116 {strides = array<i32>} : memref<8x768xf32, #tpu.memory_space<vmem>>, vector<1x128xf32>,
    %c2_i32_49 = arith.constant 2 : i32
    %119 = arith.addi %102, %c2_i32_49 : i32
    %120 = arith.index_cast %119 : i32 to index
    %121 = memref.load %arg2[%120] : memref<96xi32, #tpu.memory_space<smem>>
    %c0_50 = arith.constant 0 : index
    %122 = arith.index_cast %121 : i32 to index
    %c0_51 = arith.constant 0 : index
    %123 = vector.load %arg3[%c0_50, %122, %c0_51] : memref<1x24x128xf32, #tpu.memory_space<vmem>>, vector<1x1x128xf32>
    %124 = vector.shape_cast %123 : vector<1x1x128xf32> to vector<1x128xf32>
    %125 = arith.index_cast %c2_i32_39 : i32 to index
    %c256_52 = arith.constant 256 : index
    %126 = vector.load %arg7[%125, %c256_52] : memref<8x768xf32, #tpu.memory_space<vmem>>, vector<1x128xf32>
    tpu.vector_store %arg7[%125, %c256_52], %124 {strides = array<i32>} : memref<8x768xf32, #tpu.memory_space<vmem>>, vector<1x128xf32>,
    %c3_i32_53 = arith.constant 3 : i32
    %127 = arith.addi %102, %c3_i32_53 : i32
    %128 = arith.index_cast %127 : i32 to index
    %129 = memref.load %arg2[%128] : memref<96xi32, #tpu.memory_space<smem>>
    %c0_54 = arith.constant 0 : index
    %130 = arith.index_cast %129 : i32 to index
    %c0_55 = arith.constant 0 : index
    %131 = vector.load %arg3[%c0_54, %130, %c0_55] : memref<1x24x128xf32, #tpu.memory_space<vmem>>, vector<1x1x128xf32>
    %132 = vector.shape_cast %131 : vector<1x1x128xf32> to vector<1x128xf32>
    %133 = arith.index_cast %c2_i32_39 : i32 to index
    %c384_56 = arith.constant 384 : index
    %134 = vector.load %arg7[%133, %c384_56] : memref<8x768xf32, #tpu.memory_space<vmem>>, vector<1x128xf32>
    tpu.vector_store %arg7[%133, %c384_56], %132 {strides = array<i32>} : memref<8x768xf32, #tpu.memory_space<vmem>>, vector<1x128xf32>,
    %c4_i32_57 = arith.constant 4 : i32
    %135 = arith.addi %102, %c4_i32_57 : i32
    %136 = arith.index_cast %135 : i32 to index
    %137 = memref.load %arg2[%136] : memref<96xi32, #tpu.memory_space<smem>>
    %c0_58 = arith.constant 0 : index
    %138 = arith.index_cast %137 : i32 to index
    %c0_59 = arith.constant 0 : index
    %139 = vector.load %arg3[%c0_58, %138, %c0_59] : memref<1x24x128xf32, #tpu.memory_space<vmem>>, vector<1x1x128xf32>
    %140 = vector.shape_cast %139 : vector<1x1x128xf32> to vector<1x128xf32>
    %141 = arith.index_cast %c2_i32_39 : i32 to index
    %c512_60 = arith.constant 512 : index
    %142 = vector.load %arg7[%141, %c512_60] : memref<8x768xf32, #tpu.memory_space<vmem>>, vector<1x128xf32>
    tpu.vector_store %arg7[%141, %c512_60], %140 {strides = array<i32>} : memref<8x768xf32, #tpu.memory_space<vmem>>, vector<1x128xf32>,
    %c5_i32_61 = arith.constant 5 : i32
    %143 = arith.addi %102, %c5_i32_61 : i32
    %144 = arith.index_cast %143 : i32 to index
    %145 = memref.load %arg2[%144] : memref<96xi32, #tpu.memory_space<smem>>
    %c0_62 = arith.constant 0 : index
    %146 = arith.index_cast %145 : i32 to index
    %c0_63 = arith.constant 0 : index
    %147 = vector.load %arg3[%c0_62, %146, %c0_63] : memref<1x24x128xf32, #tpu.memory_space<vmem>>, vector<1x1x128xf32>
    %148 = vector.shape_cast %147 : vector<1x1x128xf32> to vector<1x128xf32>
    %149 = arith.index_cast %c2_i32_39 : i32 to index
    %c640_64 = arith.constant 640 : index
    %150 = vector.load %arg7[%149, %c640_64] : memref<8x768xf32, #tpu.memory_space<vmem>>, vector<1x128xf32>
    tpu.vector_store %arg7[%149, %c640_64], %148 {strides = array<i32>} : memref<8x768xf32, #tpu.memory_space<vmem>>, vector<1x128xf32>,
    %c3_i32_65 = arith.constant 3 : i32
    %c6_i32_66 = arith.constant 6 : i32
    %151 = arith.muli %c3_i32_65, %c6_i32_66 : i32
    %152 = arith.addi %0, %151 : i32
    %c0_i32_67 = arith.constant 0 : i32
    %153 = arith.addi %152, %c0_i32_67 : i32
    %154 = arith.index_cast %153 : i32 to index
    %155 = memref.load %arg2[%154] : memref<96xi32, #tpu.memory_space<smem>>
    %c0_68 = arith.constant 0 : index
    %156 = arith.index_cast %155 : i32 to index
    %c0_69 = arith.constant 0 : index
    %157 = vector.load %arg3[%c0_68, %156, %c0_69] : memref<1x24x128xf32, #tpu.memory_space<vmem>>, vector<1x1x128xf32>
    %158 = vector.shape_cast %157 : vector<1x1x128xf32> to vector<1x128xf32>
    %159 = arith.index_cast %c3_i32_65 : i32 to index
    %c0_70 = arith.constant 0 : index
    %160 = vector.load %arg7[%159, %c0_70] : memref<8x768xf32, #tpu.memory_space<vmem>>, vector<1x128xf32>
    tpu.vector_store %arg7[%159, %c0_70], %158 {strides = array<i32>} : memref<8x768xf32, #tpu.memory_space<vmem>>, vector<1x128xf32>,
    %c1_i32_71 = arith.constant 1 : i32
    %161 = arith.addi %152, %c1_i32_71 : i32
    %162 = arith.index_cast %161 : i32 to index
    %163 = memref.load %arg2[%162] : memref<96xi32, #tpu.memory_space<smem>>
    %c0_72 = arith.constant 0 : index
    %164 = arith.index_cast %163 : i32 to index
    %c0_73 = arith.constant 0 : index
    %165 = vector.load %arg3[%c0_72, %164, %c0_73] : memref<1x24x128xf32, #tpu.memory_space<vmem>>, vector<1x1x128xf32>
    %166 = vector.shape_cast %165 : vector<1x1x128xf32> to vector<1x128xf32>
    %167 = arith.index_cast %c3_i32_65 : i32 to index
    %c128_74 = arith.constant 128 : index
    %168 = vector.load %arg7[%167, %c128_74] : memref<8x768xf32, #tpu.memory_space<vmem>>, vector<1x128xf32>
    tpu.vector_store %arg7[%167, %c128_74], %166 {strides = array<i32>} : memref<8x768xf32, #tpu.memory_space<vmem>>, vector<1x128xf32>,
    %c2_i32_75 = arith.constant 2 : i32
    %169 = arith.addi %152, %c2_i32_75 : i32
    %170 = arith.index_cast %169 : i32 to index
    %171 = memref.load %arg2[%170] : memref<96xi32, #tpu.memory_space<smem>>
    %c0_76 = arith.constant 0 : index
    %172 = arith.index_cast %171 : i32 to index
    %c0_77 = arith.constant 0 : index
    %173 = vector.load %arg3[%c0_76, %172, %c0_77] : memref<1x24x128xf32, #tpu.memory_space<vmem>>, vector<1x1x128xf32>
    %174 = vector.shape_cast %173 : vector<1x1x128xf32> to vector<1x128xf32>
    %175 = arith.index_cast %c3_i32_65 : i32 to index
    %c256_78 = arith.constant 256 : index
    %176 = vector.load %arg7[%175, %c256_78] : memref<8x768xf32, #tpu.memory_space<vmem>>, vector<1x128xf32>
    tpu.vector_store %arg7[%175, %c256_78], %174 {strides = array<i32>} : memref<8x768xf32, #tpu.memory_space<vmem>>, vector<1x128xf32>,
    %c3_i32_79 = arith.constant 3 : i32
    %177 = arith.addi %152, %c3_i32_79 : i32
    %178 = arith.index_cast %177 : i32 to index
    %179 = memref.load %arg2[%178] : memref<96xi32, #tpu.memory_space<smem>>
    %c0_80 = arith.constant 0 : index
    %180 = arith.index_cast %179 : i32 to index
    %c0_81 = arith.constant 0 : index
    %181 = vector.load %arg3[%c0_80, %180, %c0_81] : memref<1x24x128xf32, #tpu.memory_space<vmem>>, vector<1x1x128xf32>
    %182 = vector.shape_cast %181 : vector<1x1x128xf32> to vector<1x128xf32>
    %183 = arith.index_cast %c3_i32_65 : i32 to index
    %c384_82 = arith.constant 384 : index
    %184 = vector.load %arg7[%183, %c384_82] : memref<8x768xf32, #tpu.memory_space<vmem>>, vector<1x128xf32>
    tpu.vector_store %arg7[%183, %c384_82], %182 {strides = array<i32>} : memref<8x768xf32, #tpu.memory_space<vmem>>, vector<1x128xf32>,
    %c4_i32_83 = arith.constant 4 : i32
    %185 = arith.addi %152, %c4_i32_83 : i32
    %186 = arith.index_cast %185 : i32 to index
    %187 = memref.load %arg2[%186] : memref<96xi32, #tpu.memory_space<smem>>
    %c0_84 = arith.constant 0 : index
    %188 = arith.index_cast %187 : i32 to index
    %c0_85 = arith.constant 0 : index
    %189 = vector.load %arg3[%c0_84, %188, %c0_85] : memref<1x24x128xf32, #tpu.memory_space<vmem>>, vector<1x1x128xf32>
    %190 = vector.shape_cast %189 : vector<1x1x128xf32> to vector<1x128xf32>
    %191 = arith.index_cast %c3_i32_65 : i32 to index
    %c512_86 = arith.constant 512 : index
    %192 = vector.load %arg7[%191, %c512_86] : memref<8x768xf32, #tpu.memory_space<vmem>>, vector<1x128xf32>
    tpu.vector_store %arg7[%191, %c512_86], %190 {strides = array<i32>} : memref<8x768xf32, #tpu.memory_space<vmem>>, vector<1x128xf32>,
    %c5_i32_87 = arith.constant 5 : i32
    %193 = arith.addi %152, %c5_i32_87 : i32
    %194 = arith.index_cast %193 : i32 to index
    %195 = memref.load %arg2[%194] : memref<96xi32, #tpu.memory_space<smem>>
    %c0_88 = arith.constant 0 : index
    %196 = arith.index_cast %195 : i32 to index
    %c0_89 = arith.constant 0 : index
    %197 = vector.load %arg3[%c0_88, %196, %c0_89] : memref<1x24x128xf32, #tpu.memory_space<vmem>>, vector<1x1x128xf32>
    %198 = vector.shape_cast %197 : vector<1x1x128xf32> to vector<1x128xf32>
    %199 = arith.index_cast %c3_i32_65 : i32 to index
    %c640_90 = arith.constant 640 : index
    %200 = vector.load %arg7[%199, %c640_90] : memref<8x768xf32, #tpu.memory_space<vmem>>, vector<1x128xf32>
    tpu.vector_store %arg7[%199, %c640_90], %198 {strides = array<i32>} : memref<8x768xf32, #tpu.memory_space<vmem>>, vector<1x128xf32>,
    %c4_i32_91 = arith.constant 4 : i32
    %c6_i32_92 = arith.constant 6 : i32
    %201 = arith.muli %c4_i32_91, %c6_i32_92 : i32
    %202 = arith.addi %0, %201 : i32
    %c0_i32_93 = arith.constant 0 : i32
    %203 = arith.addi %202, %c0_i32_93 : i32
    %204 = arith.index_cast %203 : i32 to index
    %205 = memref.load %arg2[%204] : memref<96xi32, #tpu.memory_space<smem>>
    %c0_94 = arith.constant 0 : index
    %206 = arith.index_cast %205 : i32 to index
    %c0_95 = arith.constant 0 : index
    %207 = vector.load %arg3[%c0_94, %206, %c0_95] : memref<1x24x128xf32, #tpu.memory_space<vmem>>, vector<1x1x128xf32>
    %208 = vector.shape_cast %207 : vector<1x1x128xf32> to vector<1x128xf32>
    %209 = arith.index_cast %c4_i32_91 : i32 to index
    %c0_96 = arith.constant 0 : index
    %210 = vector.load %arg7[%209, %c0_96] : memref<8x768xf32, #tpu.memory_space<vmem>>, vector<1x128xf32>
    tpu.vector_store %arg7[%209, %c0_96], %208 {strides = array<i32>} : memref<8x768xf32, #tpu.memory_space<vmem>>, vector<1x128xf32>,
    %c1_i32_97 = arith.constant 1 : i32
    %211 = arith.addi %202, %c1_i32_97 : i32
    %212 = arith.index_cast %211 : i32 to index
    %213 = memref.load %arg2[%212] : memref<96xi32, #tpu.memory_space<smem>>
    %c0_98 = arith.constant 0 : index
    %214 = arith.index_cast %213 : i32 to index
    %c0_99 = arith.constant 0 : index
    %215 = vector.load %arg3[%c0_98, %214, %c0_99] : memref<1x24x128xf32, #tpu.memory_space<vmem>>, vector<1x1x128xf32>
    %216 = vector.shape_cast %215 : vector<1x1x128xf32> to vector<1x128xf32>
    %217 = arith.index_cast %c4_i32_91 : i32 to index
    %c128_100 = arith.constant 128 : index
    %218 = vector.load %arg7[%217, %c128_100] : memref<8x768xf32, #tpu.memory_space<vmem>>, vector<1x128xf32>
    tpu.vector_store %arg7[%217, %c128_100], %216 {strides = array<i32>} : memref<8x768xf32, #tpu.memory_space<vmem>>, vector<1x128xf32>,
    %c2_i32_101 = arith.constant 2 : i32
    %219 = arith.addi %202, %c2_i32_101 : i32
    %220 = arith.index_cast %219 : i32 to index
    %221 = memref.load %arg2[%220] : memref<96xi32, #tpu.memory_space<smem>>
    %c0_102 = arith.constant 0 : index
    %222 = arith.index_cast %221 : i32 to index
    %c0_103 = arith.constant 0 : index
    %223 = vector.load %arg3[%c0_102, %222, %c0_103] : memref<1x24x128xf32, #tpu.memory_space<vmem>>, vector<1x1x128xf32>
    %224 = vector.shape_cast %223 : vector<1x1x128xf32> to vector<1x128xf32>
    %225 = arith.index_cast %c4_i32_91 : i32 to index
    %c256_104 = arith.constant 256 : index
    %226 = vector.load %arg7[%225, %c256_104] : memref<8x768xf32, #tpu.memory_space<vmem>>, vector<1x128xf32>
    tpu.vector_store %arg7[%225, %c256_104], %224 {strides = array<i32>} : memref<8x768xf32, #tpu.memory_space<vmem>>, vector<1x128xf32>,
    %c3_i32_105 = arith.constant 3 : i32
    %227 = arith.addi %202, %c3_i32_105 : i32
    %228 = arith.index_cast %227 : i32 to index
    %229 = memref.load %arg2[%228] : memref<96xi32, #tpu.memory_space<smem>>
    %c0_106 = arith.constant 0 : index
    %230 = arith.index_cast %229 : i32 to index
    %c0_107 = arith.constant 0 : index
    %231 = vector.load %arg3[%c0_106, %230, %c0_107] : memref<1x24x128xf32, #tpu.memory_space<vmem>>, vector<1x1x128xf32>
    %232 = vector.shape_cast %231 : vector<1x1x128xf32> to vector<1x128xf32>
    %233 = arith.index_cast %c4_i32_91 : i32 to index
    %c384_108 = arith.constant 384 : index
    %234 = vector.load %arg7[%233, %c384_108] : memref<8x768xf32, #tpu.memory_space<vmem>>, vector<1x128xf32>
    tpu.vector_store %arg7[%233, %c384_108], %232 {strides = array<i32>} : memref<8x768xf32, #tpu.memory_space<vmem>>, vector<1x128xf32>,
    %c4_i32_109 = arith.constant 4 : i32
    %235 = arith.addi %202, %c4_i32_109 : i32
    %236 = arith.index_cast %235 : i32 to index
    %237 = memref.load %arg2[%236] : memref<96xi32, #tpu.memory_space<smem>>
    %c0_110 = arith.constant 0 : index
    %238 = arith.index_cast %237 : i32 to index
    %c0_111 = arith.constant 0 : index
    %239 = vector.load %arg3[%c0_110, %238, %c0_111] : memref<1x24x128xf32, #tpu.memory_space<vmem>>, vector<1x1x128xf32>
    %240 = vector.shape_cast %239 : vector<1x1x128xf32> to vector<1x128xf32>
    %241 = arith.index_cast %c4_i32_91 : i32 to index
    %c512_112 = arith.constant 512 : index
    %242 = vector.load %arg7[%241, %c512_112] : memref<8x768xf32, #tpu.memory_space<vmem>>, vector<1x128xf32>
    tpu.vector_store %arg7[%241, %c512_112], %240 {strides = array<i32>} : memref<8x768xf32, #tpu.memory_space<vmem>>, vector<1x128xf32>,
    %c5_i32_113 = arith.constant 5 : i32
    %243 = arith.addi %202, %c5_i32_113 : i32
    %244 = arith.index_cast %243 : i32 to index
    %245 = memref.load %arg2[%244] : memref<96xi32, #tpu.memory_space<smem>>
    %c0_114 = arith.constant 0 : index
    %246 = arith.index_cast %245 : i32 to index
    %c0_115 = arith.constant 0 : index
    %247 = vector.load %arg3[%c0_114, %246, %c0_115] : memref<1x24x128xf32, #tpu.memory_space<vmem>>, vector<1x1x128xf32>
    %248 = vector.shape_cast %247 : vector<1x1x128xf32> to vector<1x128xf32>
    %249 = arith.index_cast %c4_i32_91 : i32 to index
    %c640_116 = arith.constant 640 : index
    %250 = vector.load %arg7[%249, %c640_116] : memref<8x768xf32, #tpu.memory_space<vmem>>, vector<1x128xf32>
    tpu.vector_store %arg7[%249, %c640_116], %248 {strides = array<i32>} : memref<8x768xf32, #tpu.memory_space<vmem>>, vector<1x128xf32>,
    %c5_i32_117 = arith.constant 5 : i32
    %c6_i32_118 = arith.constant 6 : i32
    %251 = arith.muli %c5_i32_117, %c6_i32_118 : i32
    %252 = arith.addi %0, %251 : i32
    %c0_i32_119 = arith.constant 0 : i32
    %253 = arith.addi %252, %c0_i32_119 : i32
    %254 = arith.index_cast %253 : i32 to index
    %255 = memref.load %arg2[%254] : memref<96xi32, #tpu.memory_space<smem>>
    %c0_120 = arith.constant 0 : index
    %256 = arith.index_cast %255 : i32 to index
    %c0_121 = arith.constant 0 : index
    %257 = vector.load %arg3[%c0_120, %256, %c0_121] : memref<1x24x128xf32, #tpu.memory_space<vmem>>, vector<1x1x128xf32>
    %258 = vector.shape_cast %257 : vector<1x1x128xf32> to vector<1x128xf32>
    %259 = arith.index_cast %c5_i32_117 : i32 to index
    %c0_122 = arith.constant 0 : index
    %260 = vector.load %arg7[%259, %c0_122] : memref<8x768xf32, #tpu.memory_space<vmem>>, vector<1x128xf32>
    tpu.vector_store %arg7[%259, %c0_122], %258 {strides = array<i32>} : memref<8x768xf32, #tpu.memory_space<vmem>>, vector<1x128xf32>,
    %c1_i32_123 = arith.constant 1 : i32
    %261 = arith.addi %252, %c1_i32_123 : i32
    %262 = arith.index_cast %261 : i32 to index
    %263 = memref.load %arg2[%262] : memref<96xi32, #tpu.memory_space<smem>>
    %c0_124 = arith.constant 0 : index
    %264 = arith.index_cast %263 : i32 to index
    %c0_125 = arith.constant 0 : index
    %265 = vector.load %arg3[%c0_124, %264, %c0_125] : memref<1x24x128xf32, #tpu.memory_space<vmem>>, vector<1x1x128xf32>
    %266 = vector.shape_cast %265 : vector<1x1x128xf32> to vector<1x128xf32>
    %267 = arith.index_cast %c5_i32_117 : i32 to index
    %c128_126 = arith.constant 128 : index
    %268 = vector.load %arg7[%267, %c128_126] : memref<8x768xf32, #tpu.memory_space<vmem>>, vector<1x128xf32>
    tpu.vector_store %arg7[%267, %c128_126], %266 {strides = array<i32>} : memref<8x768xf32, #tpu.memory_space<vmem>>, vector<1x128xf32>,
    %c2_i32_127 = arith.constant 2 : i32
    %269 = arith.addi %252, %c2_i32_127 : i32
    %270 = arith.index_cast %269 : i32 to index
    %271 = memref.load %arg2[%270] : memref<96xi32, #tpu.memory_space<smem>>
    %c0_128 = arith.constant 0 : index
    %272 = arith.index_cast %271 : i32 to index
    %c0_129 = arith.constant 0 : index
    %273 = vector.load %arg3[%c0_128, %272, %c0_129] : memref<1x24x128xf32, #tpu.memory_space<vmem>>, vector<1x1x128xf32>
    %274 = vector.shape_cast %273 : vector<1x1x128xf32> to vector<1x128xf32>
    %275 = arith.index_cast %c5_i32_117 : i32 to index
    %c256_130 = arith.constant 256 : index
    %276 = vector.load %arg7[%275, %c256_130] : memref<8x768xf32, #tpu.memory_space<vmem>>, vector<1x128xf32>
    tpu.vector_store %arg7[%275, %c256_130], %274 {strides = array<i32>} : memref<8x768xf32, #tpu.memory_space<vmem>>, vector<1x128xf32>,
    %c3_i32_131 = arith.constant 3 : i32
    %277 = arith.addi %252, %c3_i32_131 : i32
    %278 = arith.index_cast %277 : i32 to index
    %279 = memref.load %arg2[%278] : memref<96xi32, #tpu.memory_space<smem>>
    %c0_132 = arith.constant 0 : index
    %280 = arith.index_cast %279 : i32 to index
    %c0_133 = arith.constant 0 : index
    %281 = vector.load %arg3[%c0_132, %280, %c0_133] : memref<1x24x128xf32, #tpu.memory_space<vmem>>, vector<1x1x128xf32>
    %282 = vector.shape_cast %281 : vector<1x1x128xf32> to vector<1x128xf32>
    %283 = arith.index_cast %c5_i32_117 : i32 to index
    %c384_134 = arith.constant 384 : index
    %284 = vector.load %arg7[%283, %c384_134] : memref<8x768xf32, #tpu.memory_space<vmem>>, vector<1x128xf32>
    tpu.vector_store %arg7[%283, %c384_134], %282 {strides = array<i32>} : memref<8x768xf32, #tpu.memory_space<vmem>>, vector<1x128xf32>,
    %c4_i32_135 = arith.constant 4 : i32
    %285 = arith.addi %252, %c4_i32_135 : i32
    %286 = arith.index_cast %285 : i32 to index
    %287 = memref.load %arg2[%286] : memref<96xi32, #tpu.memory_space<smem>>
    %c0_136 = arith.constant 0 : index
    %288 = arith.index_cast %287 : i32 to index
    %c0_137 = arith.constant 0 : index
    %289 = vector.load %arg3[%c0_136, %288, %c0_137] : memref<1x24x128xf32, #tpu.memory_space<vmem>>, vector<1x1x128xf32>
    %290 = vector.shape_cast %289 : vector<1x1x128xf32> to vector<1x128xf32>
    %291 = arith.index_cast %c5_i32_117 : i32 to index
    %c512_138 = arith.constant 512 : index
    %292 = vector.load %arg7[%291, %c512_138] : memref<8x768xf32, #tpu.memory_space<vmem>>, vector<1x128xf32>
    tpu.vector_store %arg7[%291, %c512_138], %290 {strides = array<i32>} : memref<8x768xf32, #tpu.memory_space<vmem>>, vector<1x128xf32>,
    %c5_i32_139 = arith.constant 5 : i32
    %293 = arith.addi %252, %c5_i32_139 : i32
    %294 = arith.index_cast %293 : i32 to index
    %295 = memref.load %arg2[%294] : memref<96xi32, #tpu.memory_space<smem>>
    %c0_140 = arith.constant 0 : index
    %296 = arith.index_cast %295 : i32 to index
    %c0_141 = arith.constant 0 : index
    %297 = vector.load %arg3[%c0_140, %296, %c0_141] : memref<1x24x128xf32, #tpu.memory_space<vmem>>, vector<1x1x128xf32>
    %298 = vector.shape_cast %297 : vector<1x1x128xf32> to vector<1x128xf32>
    %299 = arith.index_cast %c5_i32_117 : i32 to index
    %c640_142 = arith.constant 640 : index
    %300 = vector.load %arg7[%299, %c640_142] : memref<8x768xf32, #tpu.memory_space<vmem>>, vector<1x128xf32>
    tpu.vector_store %arg7[%299, %c640_142], %298 {strides = array<i32>} : memref<8x768xf32, #tpu.memory_space<vmem>>, vector<1x128xf32>,
    %c6_i32_143 = arith.constant 6 : i32
    %c6_i32_144 = arith.constant 6 : i32
    %301 = arith.muli %c6_i32_143, %c6_i32_144 : i32
    %302 = arith.addi %0, %301 : i32
    %c0_i32_145 = arith.constant 0 : i32
    %303 = arith.addi %302, %c0_i32_145 : i32
    %304 = arith.index_cast %303 : i32 to index
    %305 = memref.load %arg2[%304] : memref<96xi32, #tpu.memory_space<smem>>
    %c0_146 = arith.constant 0 : index
    %306 = arith.index_cast %305 : i32 to index
    %c0_147 = arith.constant 0 : index
    %307 = vector.load %arg3[%c0_146, %306, %c0_147] : memref<1x24x128xf32, #tpu.memory_space<vmem>>, vector<1x1x128xf32>
    %308 = vector.shape_cast %307 : vector<1x1x128xf32> to vector<1x128xf32>
    %309 = arith.index_cast %c6_i32_143 : i32 to index
    %c0_148 = arith.constant 0 : index
    %310 = vector.load %arg7[%309, %c0_148] : memref<8x768xf32, #tpu.memory_space<vmem>>, vector<1x128xf32>
    tpu.vector_store %arg7[%309, %c0_148], %308 {strides = array<i32>} : memref<8x768xf32, #tpu.memory_space<vmem>>, vector<1x128xf32>,
    %c1_i32_149 = arith.constant 1 : i32
    %311 = arith.addi %302, %c1_i32_149 : i32
    %312 = arith.index_cast %311 : i32 to index
    %313 = memref.load %arg2[%312] : memref<96xi32, #tpu.memory_space<smem>>
    %c0_150 = arith.constant 0 : index
    %314 = arith.index_cast %313 : i32 to index
    %c0_151 = arith.constant 0 : index
    %315 = vector.load %arg3[%c0_150, %314, %c0_151] : memref<1x24x128xf32, #tpu.memory_space<vmem>>, vector<1x1x128xf32>
    %316 = vector.shape_cast %315 : vector<1x1x128xf32> to vector<1x128xf32>
    %317 = arith.index_cast %c6_i32_143 : i32 to index
    %c128_152 = arith.constant 128 : index
    %318 = vector.load %arg7[%317, %c128_152] : memref<8x768xf32, #tpu.memory_space<vmem>>, vector<1x128xf32>
    tpu.vector_store %arg7[%317, %c128_152], %316 {strides = array<i32>} : memref<8x768xf32, #tpu.memory_space<vmem>>, vector<1x128xf32>,
    %c2_i32_153 = arith.constant 2 : i32
    %319 = arith.addi %302, %c2_i32_153 : i32
    %320 = arith.index_cast %319 : i32 to index
    %321 = memref.load %arg2[%320] : memref<96xi32, #tpu.memory_space<smem>>
    %c0_154 = arith.constant 0 : index
    %322 = arith.index_cast %321 : i32 to index
    %c0_155 = arith.constant 0 : index
    %323 = vector.load %arg3[%c0_154, %322, %c0_155] : memref<1x24x128xf32, #tpu.memory_space<vmem>>, vector<1x1x128xf32>
    %324 = vector.shape_cast %323 : vector<1x1x128xf32> to vector<1x128xf32>
    %325 = arith.index_cast %c6_i32_143 : i32 to index
    %c256_156 = arith.constant 256 : index
    %326 = vector.load %arg7[%325, %c256_156] : memref<8x768xf32, #tpu.memory_space<vmem>>, vector<1x128xf32>
    tpu.vector_store %arg7[%325, %c256_156], %324 {strides = array<i32>} : memref<8x768xf32, #tpu.memory_space<vmem>>, vector<1x128xf32>,
    %c3_i32_157 = arith.constant 3 : i32
    %327 = arith.addi %302, %c3_i32_157 : i32
    %328 = arith.index_cast %327 : i32 to index
    %329 = memref.load %arg2[%328] : memref<96xi32, #tpu.memory_space<smem>>
    %c0_158 = arith.constant 0 : index
    %330 = arith.index_cast %329 : i32 to index
    %c0_159 = arith.constant 0 : index
    %331 = vector.load %arg3[%c0_158, %330, %c0_159] : memref<1x24x128xf32, #tpu.memory_space<vmem>>, vector<1x1x128xf32>
    %332 = vector.shape_cast %331 : vector<1x1x128xf32> to vector<1x128xf32>
    %333 = arith.index_cast %c6_i32_143 : i32 to index
    %c384_160 = arith.constant 384 : index
    %334 = vector.load %arg7[%333, %c384_160] : memref<8x768xf32, #tpu.memory_space<vmem>>, vector<1x128xf32>
    tpu.vector_store %arg7[%333, %c384_160], %332 {strides = array<i32>} : memref<8x768xf32, #tpu.memory_space<vmem>>, vector<1x128xf32>,
    %c4_i32_161 = arith.constant 4 : i32
    %335 = arith.addi %302, %c4_i32_161 : i32
    %336 = arith.index_cast %335 : i32 to index
    %337 = memref.load %arg2[%336] : memref<96xi32, #tpu.memory_space<smem>>
    %c0_162 = arith.constant 0 : index
    %338 = arith.index_cast %337 : i32 to index
    %c0_163 = arith.constant 0 : index
    %339 = vector.load %arg3[%c0_162, %338, %c0_163] : memref<1x24x128xf32, #tpu.memory_space<vmem>>, vector<1x1x128xf32>
    %340 = vector.shape_cast %339 : vector<1x1x128xf32> to vector<1x128xf32>
    %341 = arith.index_cast %c6_i32_143 : i32 to index
    %c512_164 = arith.constant 512 : index
    %342 = vector.load %arg7[%341, %c512_164] : memref<8x768xf32, #tpu.memory_space<vmem>>, vector<1x128xf32>
    tpu.vector_store %arg7[%341, %c512_164], %340 {strides = array<i32>} : memref<8x768xf32, #tpu.memory_space<vmem>>, vector<1x128xf32>,
    %c5_i32_165 = arith.constant 5 : i32
    %343 = arith.addi %302, %c5_i32_165 : i32
    %344 = arith.index_cast %343 : i32 to index
    %345 = memref.load %arg2[%344] : memref<96xi32, #tpu.memory_space<smem>>
    %c0_166 = arith.constant 0 : index
    %346 = arith.index_cast %345 : i32 to index
    %c0_167 = arith.constant 0 : index
    %347 = vector.load %arg3[%c0_166, %346, %c0_167] : memref<1x24x128xf32, #tpu.memory_space<vmem>>, vector<1x1x128xf32>
    %348 = vector.shape_cast %347 : vector<1x1x128xf32> to vector<1x128xf32>
    %349 = arith.index_cast %c6_i32_143 : i32 to index
    %c640_168 = arith.constant 640 : index
    %350 = vector.load %arg7[%349, %c640_168] : memref<8x768xf32, #tpu.memory_space<vmem>>, vector<1x128xf32>
    tpu.vector_store %arg7[%349, %c640_168], %348 {strides = array<i32>} : memref<8x768xf32, #tpu.memory_space<vmem>>, vector<1x128xf32>,
    %c7_i32 = arith.constant 7 : i32
    %c6_i32_169 = arith.constant 6 : i32
    %351 = arith.muli %c7_i32, %c6_i32_169 : i32
    %352 = arith.addi %0, %351 : i32
    %c0_i32_170 = arith.constant 0 : i32
    %353 = arith.addi %352, %c0_i32_170 : i32
    %354 = arith.index_cast %353 : i32 to index
    %355 = memref.load %arg2[%354] : memref<96xi32, #tpu.memory_space<smem>>
    %c0_171 = arith.constant 0 : index
    %356 = arith.index_cast %355 : i32 to index
    %c0_172 = arith.constant 0 : index
    %357 = vector.load %arg3[%c0_171, %356, %c0_172] : memref<1x24x128xf32, #tpu.memory_space<vmem>>, vector<1x1x128xf32>
    %358 = vector.shape_cast %357 : vector<1x1x128xf32> to vector<1x128xf32>
    %359 = arith.index_cast %c7_i32 : i32 to index
    %c0_173 = arith.constant 0 : index
    %360 = vector.load %arg7[%359, %c0_173] : memref<8x768xf32, #tpu.memory_space<vmem>>, vector<1x128xf32>
    tpu.vector_store %arg7[%359, %c0_173], %358 {strides = array<i32>} : memref<8x768xf32, #tpu.memory_space<vmem>>, vector<1x128xf32>,
    %c1_i32_174 = arith.constant 1 : i32
    %361 = arith.addi %352, %c1_i32_174 : i32
    %362 = arith.index_cast %361 : i32 to index
    %363 = memref.load %arg2[%362] : memref<96xi32, #tpu.memory_space<smem>>
    %c0_175 = arith.constant 0 : index
    %364 = arith.index_cast %363 : i32 to index
    %c0_176 = arith.constant 0 : index
    %365 = vector.load %arg3[%c0_175, %364, %c0_176] : memref<1x24x128xf32, #tpu.memory_space<vmem>>, vector<1x1x128xf32>
    %366 = vector.shape_cast %365 : vector<1x1x128xf32> to vector<1x128xf32>
    %367 = arith.index_cast %c7_i32 : i32 to index
    %c128_177 = arith.constant 128 : index
    %368 = vector.load %arg7[%367, %c128_177] : memref<8x768xf32, #tpu.memory_space<vmem>>, vector<1x128xf32>
    tpu.vector_store %arg7[%367, %c128_177], %366 {strides = array<i32>} : memref<8x768xf32, #tpu.memory_space<vmem>>, vector<1x128xf32>,
    %c2_i32_178 = arith.constant 2 : i32
    %369 = arith.addi %352, %c2_i32_178 : i32
    %370 = arith.index_cast %369 : i32 to index
    %371 = memref.load %arg2[%370] : memref<96xi32, #tpu.memory_space<smem>>
    %c0_179 = arith.constant 0 : index
    %372 = arith.index_cast %371 : i32 to index
    %c0_180 = arith.constant 0 : index
    %373 = vector.load %arg3[%c0_179, %372, %c0_180] : memref<1x24x128xf32, #tpu.memory_space<vmem>>, vector<1x1x128xf32>
    %374 = vector.shape_cast %373 : vector<1x1x128xf32> to vector<1x128xf32>
    %375 = arith.index_cast %c7_i32 : i32 to index
    %c256_181 = arith.constant 256 : index
    %376 = vector.load %arg7[%375, %c256_181] : memref<8x768xf32, #tpu.memory_space<vmem>>, vector<1x128xf32>
    tpu.vector_store %arg7[%375, %c256_181], %374 {strides = array<i32>} : memref<8x768xf32, #tpu.memory_space<vmem>>, vector<1x128xf32>,
    %c3_i32_182 = arith.constant 3 : i32
    %377 = arith.addi %352, %c3_i32_182 : i32
    %378 = arith.index_cast %377 : i32 to index
    %379 = memref.load %arg2[%378] : memref<96xi32, #tpu.memory_space<smem>>
    %c0_183 = arith.constant 0 : index
    %380 = arith.index_cast %379 : i32 to index
    %c0_184 = arith.constant 0 : index
    %381 = vector.load %arg3[%c0_183, %380, %c0_184] : memref<1x24x128xf32, #tpu.memory_space<vmem>>, vector<1x1x128xf32>
    %382 = vector.shape_cast %381 : vector<1x1x128xf32> to vector<1x128xf32>
    %383 = arith.index_cast %c7_i32 : i32 to index
    %c384_185 = arith.constant 384 : index
    %384 = vector.load %arg7[%383, %c384_185] : memref<8x768xf32, #tpu.memory_space<vmem>>, vector<1x128xf32>
    tpu.vector_store %arg7[%383, %c384_185], %382 {strides = array<i32>} : memref<8x768xf32, #tpu.memory_space<vmem>>, vector<1x128xf32>,
    %c4_i32_186 = arith.constant 4 : i32
    %385 = arith.addi %352, %c4_i32_186 : i32
    %386 = arith.index_cast %385 : i32 to index
    %387 = memref.load %arg2[%386] : memref<96xi32, #tpu.memory_space<smem>>
    %c0_187 = arith.constant 0 : index
    %388 = arith.index_cast %387 : i32 to index
    %c0_188 = arith.constant 0 : index
    %389 = vector.load %arg3[%c0_187, %388, %c0_188] : memref<1x24x128xf32, #tpu.memory_space<vmem>>, vector<1x1x128xf32>
    %390 = vector.shape_cast %389 : vector<1x1x128xf32> to vector<1x128xf32>
    %391 = arith.index_cast %c7_i32 : i32 to index
    %c512_189 = arith.constant 512 : index
    %392 = vector.load %arg7[%391, %c512_189] : memref<8x768xf32, #tpu.memory_space<vmem>>, vector<1x128xf32>
    tpu.vector_store %arg7[%391, %c512_189], %390 {strides = array<i32>} : memref<8x768xf32, #tpu.memory_space<vmem>>, vector<1x128xf32>,
    %c5_i32_190 = arith.constant 5 : i32
    %393 = arith.addi %352, %c5_i32_190 : i32
    %394 = arith.index_cast %393 : i32 to index
    %395 = memref.load %arg2[%394] : memref<96xi32, #tpu.memory_space<smem>>
    %c0_191 = arith.constant 0 : index
    %396 = arith.index_cast %395 : i32 to index
    %c0_192 = arith.constant 0 : index
    %397 = vector.load %arg3[%c0_191, %396, %c0_192] : memref<1x24x128xf32, #tpu.memory_space<vmem>>, vector<1x1x128xf32>
    %398 = vector.shape_cast %397 : vector<1x1x128xf32> to vector<1x128xf32>
    %399 = arith.index_cast %c7_i32 : i32 to index
    %c640_193 = arith.constant 640 : index
    %400 = vector.load %arg7[%399, %c640_193] : memref<8x768xf32, #tpu.memory_space<vmem>>, vector<1x128xf32>
    tpu.vector_store %arg7[%399, %c640_193], %398 {strides = array<i32>} : memref<8x768xf32, #tpu.memory_space<vmem>>, vector<1x128xf32>,
    %c8_i32 = arith.constant 8 : i32
    %c0_194 = arith.constant 0 : index
    %c0_195 = arith.constant 0 : index
    %401 = vector.load %arg7[%c0_194, %c0_195] : memref<8x768xf32, #tpu.memory_space<vmem>>, vector<8x768xf32>
    %402 = arith.truncf %401 : vector<8x768xf32> to vector<8x768xbf16>
    %c0_196 = arith.constant 0 : index
    %c0_197 = arith.constant 0 : index
    %403 = vector.load %arg4[%c0_196, %c0_197] : memref<768x128xbf16, #tpu.memory_space<vmem>>, vector<768x128xbf16>
    %cst = arith.constant dense<0.000000e+00> : vector<8x128xf32>
    %404 = tpu.matmul %402, %403, %cst {dimension_numbers = #tpu.dot_dimension_numbers<[1], [0], [0], [1], [0, 0, 1, 1], [], []>} : vector<8x768xbf16>, vector<768x128xbf16>, vector<8x128xf32> -> vector<8x128xf32>
    %c0_198 = arith.constant 0 : index
    %c0_199 = arith.constant 0 : index
    %405 = vector.load %arg5[%c0_198, %c0_199] : memref<1x128xf32, #tpu.memory_space<vmem>>, vector<1x128xf32>
    %406 = vector.broadcast %405 : vector<1x128xf32> to vector<8x128xf32>
    %407 = arith.addf %404, %406 : vector<8x128xf32>
    %cst_200 = arith.constant 0.000000e+00 : f32
    %408 = vector.broadcast %cst_200 : f32 to vector<8x128xf32>
    %409 = arith.maximumf %407, %408 : vector<8x128xf32>
    %c8_i32_201 = arith.constant 8 : i32
    %410 = arith.muli %arg1, %c8_i32_201 : i32
    %411 = tpu.iota {dimensions = array<i32: 0>} : vector<8x1xi32>
    %412 = vector.broadcast %410 : i32 to vector<8x1xi32>
    %413 = arith.addi %412, %411 : vector<8x1xi32>
    %c8_i32_202 = arith.constant 8 : i32
    %414 = vector.broadcast %c8_i32_202 : i32 to vector<8x1xi32>
    %415 = arith.cmpi slt, %413, %414 : vector<8x1xi32>
    %cst_203 = arith.constant 0.000000e+00 : f32
    %416 = vector.shape_cast %415 : vector<8x1xi1> to vector<8x1xi1>
    %417 = vector.broadcast %416 : vector<8x1xi1> to vector<8x128xi1>
    %418 = vector.broadcast %cst_203 : f32 to vector<8x128xf32>
    %419 = arith.select %417, %409, %418 : vector<8x128xi1>, vector<8x128xf32>
    %c0_204 = arith.constant 0 : index
    %c0_205 = arith.constant 0 : index
    %c0_206 = arith.constant 0 : index
    %420 = vector.load %arg6[%c0_204, %c0_205, %c0_206] : memref<1x8x128xf32, #tpu.memory_space<vmem>>, vector<1x8x128xf32>
    %421 = vector.shape_cast %420 : vector<1x8x128xf32> to vector<8x128xf32>
    %422 = vector.shape_cast %419 : vector<8x128xf32> to vector<1x8x128xf32>
    tpu.vector_store %arg6[%c0_204, %c0_205, %c0_206], %422 {strides = array<i32>} : memref<1x8x128xf32, #tpu.memory_space<vmem>>, vector<1x8x128xf32>,
    return
  }
  func.func @transform_0(%arg0: i32, %arg1: i32, %arg2: memref<96xi32, #tpu.memory_space<smem>>) -> (i32, i32, i32) {
    %c0_i32 = arith.constant 0 : i32
    %c0_i32_0 = arith.constant 0 : i32
    %c0_i32_1 = arith.constant 0 : i32
    return %arg0, %c0_i32, %c0_i32_0 : i32, i32, i32
  }
  func.func @transform_1(%arg0: i32, %arg1: i32, %arg2: memref<96xi32, #tpu.memory_space<smem>>) -> (i32, i32) {
    %c0_i32 = arith.constant 0 : i32
    %c0_i32_0 = arith.constant 0 : i32
    %c0_i32_1 = arith.constant 0 : i32
    return %c0_i32, %c0_i32_0 : i32, i32
  }
  func.func @transform_2(%arg0: i32, %arg1: i32, %arg2: memref<96xi32, #tpu.memory_space<smem>>) -> (i32, i32) {
    %c0_i32 = arith.constant 0 : i32
    %c0_i32_0 = arith.constant 0 : i32
    %c0_i32_1 = arith.constant 0 : i32
    return %c0_i32, %c0_i32_0 : i32, i32
  }
  func.func @transform_3(%arg0: i32, %arg1: i32, %arg2: memref<96xi32, #tpu.memory_space<smem>>) -> (i32, i32, i32) {
    %c0_i32 = arith.constant 0 : i32
    %c0_i32_0 = arith.constant 0 : i32
    return %arg0, %arg1, %c0_i32 : i32, i32, i32
  }
}

module attributes {stable_mosaic.version = 11 : i64} {
  func.func @_spiral_conv_kernel(%arg0: i32, %arg1: i32, %arg2: memref<48xi32, #tpu.memory_space<smem>>, %arg3: memref<1x16x128xf32, #tpu.memory_space<vmem>>, %arg4: memref<768x128xbf16, #tpu.memory_space<vmem>>, %arg5: memref<1x128xf32, #tpu.memory_space<vmem>>, %arg6: memref<1x8x128xf32, #tpu.memory_space<vmem>>, %arg7: memref<8x768xf32, #tpu.memory_space<vmem>>) attributes {dimension_semantics = [#tpu.dimension_semantics<parallel>, #tpu.dimension_semantics<parallel>], iteration_bounds = array<i64: 2, 1>, scalar_prefetch = 1 : i64, scratch_operands = 1 : i64, tpu.core_type = #tpu.core_type<tc>, window_params = [{transform_indices = @transform_0, window_bounds = array<i64: 1, 16, 128>}, {pipeline_mode = #tpu.pipeline_mode<synchronous>, transform_indices = @transform_1, window_bounds = array<i64: 768, 128>}, {pipeline_mode = #tpu.pipeline_mode<synchronous>, transform_indices = @transform_2, window_bounds = array<i64: 1, 128>}, {transform_indices = @transform_3, window_bounds = array<i64: 1, 8, 128>}]} {
    %c48_i32 = arith.constant 48 : i32
    %0 = arith.muli %arg1, %c48_i32 : i32
    %c0_i32 = arith.constant 0 : i32
    %c6_i32 = arith.constant 6 : i32
    %1 = arith.muli %c0_i32, %c6_i32 : i32
    %2 = arith.addi %0, %1 : i32
    %c0_i32_0 = arith.constant 0 : i32
    %3 = arith.addi %2, %c0_i32_0 : i32
    %4 = arith.index_cast %3 : i32 to index
    %5 = memref.load %arg2[%4] : memref<48xi32, #tpu.memory_space<smem>>
    %c0 = arith.constant 0 : index
    %6 = arith.index_cast %5 : i32 to index
    %c0_1 = arith.constant 0 : index
    %7 = vector.load %arg3[%c0, %6, %c0_1] : memref<1x16x128xf32, #tpu.memory_space<vmem>>, vector<1x1x128xf32>
    %8 = vector.shape_cast %7 : vector<1x1x128xf32> to vector<1x128xf32>
    %9 = arith.index_cast %c0_i32 : i32 to index
    %c0_2 = arith.constant 0 : index
    %10 = vector.load %arg7[%9, %c0_2] : memref<8x768xf32, #tpu.memory_space<vmem>>, vector<1x128xf32>
    tpu.vector_store %arg7[%9, %c0_2], %8 {strides = array<i32>} : memref<8x768xf32, #tpu.memory_space<vmem>>, vector<1x128xf32>,
    %c1_i32 = arith.constant 1 : i32
    %11 = arith.addi %2, %c1_i32 : i32
    %12 = arith.index_cast %11 : i32 to index
    %13 = memref.load %arg2[%12] : memref<48xi32, #tpu.memory_space<smem>>
    %c0_3 = arith.constant 0 : index
    %14 = arith.index_cast %13 : i32 to index
    %c0_4 = arith.constant 0 : index
    %15 = vector.load %arg3[%c0_3, %14, %c0_4] : memref<1x16x128xf32, #tpu.memory_space<vmem>>, vector<1x1x128xf32>
    %16 = vector.shape_cast %15 : vector<1x1x128xf32> to vector<1x128xf32>
    %17 = arith.index_cast %c0_i32 : i32 to index
    %c128 = arith.constant 128 : index
    %18 = vector.load %arg7[%17, %c128] : memref<8x768xf32, #tpu.memory_space<vmem>>, vector<1x128xf32>
    tpu.vector_store %arg7[%17, %c128], %16 {strides = array<i32>} : memref<8x768xf32, #tpu.memory_space<vmem>>, vector<1x128xf32>,
    %c2_i32 = arith.constant 2 : i32
    %19 = arith.addi %2, %c2_i32 : i32
    %20 = arith.index_cast %19 : i32 to index
    %21 = memref.load %arg2[%20] : memref<48xi32, #tpu.memory_space<smem>>
    %c0_5 = arith.constant 0 : index
    %22 = arith.index_cast %21 : i32 to index
    %c0_6 = arith.constant 0 : index
    %23 = vector.load %arg3[%c0_5, %22, %c0_6] : memref<1x16x128xf32, #tpu.memory_space<vmem>>, vector<1x1x128xf32>
    %24 = vector.shape_cast %23 : vector<1x1x128xf32> to vector<1x128xf32>
    %25 = arith.index_cast %c0_i32 : i32 to index
    %c256 = arith.constant 256 : index
    %26 = vector.load %arg7[%25, %c256] : memref<8x768xf32, #tpu.memory_space<vmem>>, vector<1x128xf32>
    tpu.vector_store %arg7[%25, %c256], %24 {strides = array<i32>} : memref<8x768xf32, #tpu.memory_space<vmem>>, vector<1x128xf32>,
    %c3_i32 = arith.constant 3 : i32
    %27 = arith.addi %2, %c3_i32 : i32
    %28 = arith.index_cast %27 : i32 to index
    %29 = memref.load %arg2[%28] : memref<48xi32, #tpu.memory_space<smem>>
    %c0_7 = arith.constant 0 : index
    %30 = arith.index_cast %29 : i32 to index
    %c0_8 = arith.constant 0 : index
    %31 = vector.load %arg3[%c0_7, %30, %c0_8] : memref<1x16x128xf32, #tpu.memory_space<vmem>>, vector<1x1x128xf32>
    %32 = vector.shape_cast %31 : vector<1x1x128xf32> to vector<1x128xf32>
    %33 = arith.index_cast %c0_i32 : i32 to index
    %c384 = arith.constant 384 : index
    %34 = vector.load %arg7[%33, %c384] : memref<8x768xf32, #tpu.memory_space<vmem>>, vector<1x128xf32>
    tpu.vector_store %arg7[%33, %c384], %32 {strides = array<i32>} : memref<8x768xf32, #tpu.memory_space<vmem>>, vector<1x128xf32>,
    %c4_i32 = arith.constant 4 : i32
    %35 = arith.addi %2, %c4_i32 : i32
    %36 = arith.index_cast %35 : i32 to index
    %37 = memref.load %arg2[%36] : memref<48xi32, #tpu.memory_space<smem>>
    %c0_9 = arith.constant 0 : index
    %38 = arith.index_cast %37 : i32 to index
    %c0_10 = arith.constant 0 : index
    %39 = vector.load %arg3[%c0_9, %38, %c0_10] : memref<1x16x128xf32, #tpu.memory_space<vmem>>, vector<1x1x128xf32>
    %40 = vector.shape_cast %39 : vector<1x1x128xf32> to vector<1x128xf32>
    %41 = arith.index_cast %c0_i32 : i32 to index
    %c512 = arith.constant 512 : index
    %42 = vector.load %arg7[%41, %c512] : memref<8x768xf32, #tpu.memory_space<vmem>>, vector<1x128xf32>
    tpu.vector_store %arg7[%41, %c512], %40 {strides = array<i32>} : memref<8x768xf32, #tpu.memory_space<vmem>>, vector<1x128xf32>,
    %c5_i32 = arith.constant 5 : i32
    %43 = arith.addi %2, %c5_i32 : i32
    %44 = arith.index_cast %43 : i32 to index
    %45 = memref.load %arg2[%44] : memref<48xi32, #tpu.memory_space<smem>>
    %c0_11 = arith.constant 0 : index
    %46 = arith.index_cast %45 : i32 to index
    %c0_12 = arith.constant 0 : index
    %47 = vector.load %arg3[%c0_11, %46, %c0_12] : memref<1x16x128xf32, #tpu.memory_space<vmem>>, vector<1x1x128xf32>
    %48 = vector.shape_cast %47 : vector<1x1x128xf32> to vector<1x128xf32>
    %49 = arith.index_cast %c0_i32 : i32 to index
    %c640 = arith.constant 640 : index
    %50 = vector.load %arg7[%49, %c640] : memref<8x768xf32, #tpu.memory_space<vmem>>, vector<1x128xf32>
    tpu.vector_store %arg7[%49, %c640], %48 {strides = array<i32>} : memref<8x768xf32, #tpu.memory_space<vmem>>, vector<1x128xf32>,
    %c1_i32_13 = arith.constant 1 : i32
    %c6_i32_14 = arith.constant 6 : i32
    %51 = arith.muli %c1_i32_13, %c6_i32_14 : i32
    %52 = arith.addi %0, %51 : i32
    %c0_i32_15 = arith.constant 0 : i32
    %53 = arith.addi %52, %c0_i32_15 : i32
    %54 = arith.index_cast %53 : i32 to index
    %55 = memref.load %arg2[%54] : memref<48xi32, #tpu.memory_space<smem>>
    %c0_16 = arith.constant 0 : index
    %56 = arith.index_cast %55 : i32 to index
    %c0_17 = arith.constant 0 : index
    %57 = vector.load %arg3[%c0_16, %56, %c0_17] : memref<1x16x128xf32, #tpu.memory_space<vmem>>, vector<1x1x128xf32>
    %58 = vector.shape_cast %57 : vector<1x1x128xf32> to vector<1x128xf32>
    %59 = arith.index_cast %c1_i32_13 : i32 to index
    %c0_18 = arith.constant 0 : index
    %60 = vector.load %arg7[%59, %c0_18] : memref<8x768xf32, #tpu.memory_space<vmem>>, vector<1x128xf32>
    tpu.vector_store %arg7[%59, %c0_18], %58 {strides = array<i32>} : memref<8x768xf32, #tpu.memory_space<vmem>>, vector<1x128xf32>,
    %c1_i32_19 = arith.constant 1 : i32
    %61 = arith.addi %52, %c1_i32_19 : i32
    %62 = arith.index_cast %61 : i32 to index
    %63 = memref.load %arg2[%62] : memref<48xi32, #tpu.memory_space<smem>>
    %c0_20 = arith.constant 0 : index
    %64 = arith.index_cast %63 : i32 to index
    %c0_21 = arith.constant 0 : index
    %65 = vector.load %arg3[%c0_20, %64, %c0_21] : memref<1x16x128xf32, #tpu.memory_space<vmem>>, vector<1x1x128xf32>
    %66 = vector.shape_cast %65 : vector<1x1x128xf32> to vector<1x128xf32>
    %67 = arith.index_cast %c1_i32_13 : i32 to index
    %c128_22 = arith.constant 128 : index
    %68 = vector.load %arg7[%67, %c128_22] : memref<8x768xf32, #tpu.memory_space<vmem>>, vector<1x128xf32>
    tpu.vector_store %arg7[%67, %c128_22], %66 {strides = array<i32>} : memref<8x768xf32, #tpu.memory_space<vmem>>, vector<1x128xf32>,
    %c2_i32_23 = arith.constant 2 : i32
    %69 = arith.addi %52, %c2_i32_23 : i32
    %70 = arith.index_cast %69 : i32 to index
    %71 = memref.load %arg2[%70] : memref<48xi32, #tpu.memory_space<smem>>
    %c0_24 = arith.constant 0 : index
    %72 = arith.index_cast %71 : i32 to index
    %c0_25 = arith.constant 0 : index
    %73 = vector.load %arg3[%c0_24, %72, %c0_25] : memref<1x16x128xf32, #tpu.memory_space<vmem>>, vector<1x1x128xf32>
    %74 = vector.shape_cast %73 : vector<1x1x128xf32> to vector<1x128xf32>
    %75 = arith.index_cast %c1_i32_13 : i32 to index
    %c256_26 = arith.constant 256 : index
    %76 = vector.load %arg7[%75, %c256_26] : memref<8x768xf32, #tpu.memory_space<vmem>>, vector<1x128xf32>
    tpu.vector_store %arg7[%75, %c256_26], %74 {strides = array<i32>} : memref<8x768xf32, #tpu.memory_space<vmem>>, vector<1x128xf32>,
    %c3_i32_27 = arith.constant 3 : i32
    %77 = arith.addi %52, %c3_i32_27 : i32
    %78 = arith.index_cast %77 : i32 to index
    %79 = memref.load %arg2[%78] : memref<48xi32, #tpu.memory_space<smem>>
    %c0_28 = arith.constant 0 : index
    %80 = arith.index_cast %79 : i32 to index
    %c0_29 = arith.constant 0 : index
    %81 = vector.load %arg3[%c0_28, %80, %c0_29] : memref<1x16x128xf32, #tpu.memory_space<vmem>>, vector<1x1x128xf32>
    %82 = vector.shape_cast %81 : vector<1x1x128xf32> to vector<1x128xf32>
    %83 = arith.index_cast %c1_i32_13 : i32 to index
    %c384_30 = arith.constant 384 : index
    %84 = vector.load %arg7[%83, %c384_30] : memref<8x768xf32, #tpu.memory_space<vmem>>, vector<1x128xf32>
    tpu.vector_store %arg7[%83, %c384_30], %82 {strides = array<i32>} : memref<8x768xf32, #tpu.memory_space<vmem>>, vector<1x128xf32>,
    %c4_i32_31 = arith.constant 4 : i32
    %85 = arith.addi %52, %c4_i32_31 : i32
    %86 = arith.index_cast %85 : i32 to index
    %87 = memref.load %arg2[%86] : memref<48xi32, #tpu.memory_space<smem>>
    %c0_32 = arith.constant 0 : index
    %88 = arith.index_cast %87 : i32 to index
    %c0_33 = arith.constant 0 : index
    %89 = vector.load %arg3[%c0_32, %88, %c0_33] : memref<1x16x128xf32, #tpu.memory_space<vmem>>, vector<1x1x128xf32>
    %90 = vector.shape_cast %89 : vector<1x1x128xf32> to vector<1x128xf32>
    %91 = arith.index_cast %c1_i32_13 : i32 to index
    %c512_34 = arith.constant 512 : index
    %92 = vector.load %arg7[%91, %c512_34] : memref<8x768xf32, #tpu.memory_space<vmem>>, vector<1x128xf32>
    tpu.vector_store %arg7[%91, %c512_34], %90 {strides = array<i32>} : memref<8x768xf32, #tpu.memory_space<vmem>>, vector<1x128xf32>,
    %c5_i32_35 = arith.constant 5 : i32
    %93 = arith.addi %52, %c5_i32_35 : i32
    %94 = arith.index_cast %93 : i32 to index
    %95 = memref.load %arg2[%94] : memref<48xi32, #tpu.memory_space<smem>>
    %c0_36 = arith.constant 0 : index
    %96 = arith.index_cast %95 : i32 to index
    %c0_37 = arith.constant 0 : index
    %97 = vector.load %arg3[%c0_36, %96, %c0_37] : memref<1x16x128xf32, #tpu.memory_space<vmem>>, vector<1x1x128xf32>
    %98 = vector.shape_cast %97 : vector<1x1x128xf32> to vector<1x128xf32>
    %99 = arith.index_cast %c1_i32_13 : i32 to index
    %c640_38 = arith.constant 640 : index
    %100 = vector.load %arg7[%99, %c640_38] : memref<8x768xf32, #tpu.memory_space<vmem>>, vector<1x128xf32>
    tpu.vector_store %arg7[%99, %c640_38], %98 {strides = array<i32>} : memref<8x768xf32, #tpu.memory_space<vmem>>, vector<1x128xf32>,
    %c2_i32_39 = arith.constant 2 : i32
    %c6_i32_40 = arith.constant 6 : i32
    %101 = arith.muli %c2_i32_39, %c6_i32_40 : i32
    %102 = arith.addi %0, %101 : i32
    %c0_i32_41 = arith.constant 0 : i32
    %103 = arith.addi %102, %c0_i32_41 : i32
    %104 = arith.index_cast %103 : i32 to index
    %105 = memref.load %arg2[%104] : memref<48xi32, #tpu.memory_space<smem>>
    %c0_42 = arith.constant 0 : index
    %106 = arith.index_cast %105 : i32 to index
    %c0_43 = arith.constant 0 : index
    %107 = vector.load %arg3[%c0_42, %106, %c0_43] : memref<1x16x128xf32, #tpu.memory_space<vmem>>, vector<1x1x128xf32>
    %108 = vector.shape_cast %107 : vector<1x1x128xf32> to vector<1x128xf32>
    %109 = arith.index_cast %c2_i32_39 : i32 to index
    %c0_44 = arith.constant 0 : index
    %110 = vector.load %arg7[%109, %c0_44] : memref<8x768xf32, #tpu.memory_space<vmem>>, vector<1x128xf32>
    tpu.vector_store %arg7[%109, %c0_44], %108 {strides = array<i32>} : memref<8x768xf32, #tpu.memory_space<vmem>>, vector<1x128xf32>,
    %c1_i32_45 = arith.constant 1 : i32
    %111 = arith.addi %102, %c1_i32_45 : i32
    %112 = arith.index_cast %111 : i32 to index
    %113 = memref.load %arg2[%112] : memref<48xi32, #tpu.memory_space<smem>>
    %c0_46 = arith.constant 0 : index
    %114 = arith.index_cast %113 : i32 to index
    %c0_47 = arith.constant 0 : index
    %115 = vector.load %arg3[%c0_46, %114, %c0_47] : memref<1x16x128xf32, #tpu.memory_space<vmem>>, vector<1x1x128xf32>
    %116 = vector.shape_cast %115 : vector<1x1x128xf32> to vector<1x128xf32>
    %117 = arith.index_cast %c2_i32_39 : i32 to index
    %c128_48 = arith.constant 128 : index
    %118 = vector.load %arg7[%117, %c128_48] : memref<8x768xf32, #tpu.memory_space<vmem>>, vector<1x128xf32>
    tpu.vector_store %arg7[%117, %c128_48], %116 {strides = array<i32>} : memref<8x768xf32, #tpu.memory_space<vmem>>, vector<1x128xf32>,
    %c2_i32_49 = arith.constant 2 : i32
    %119 = arith.addi %102, %c2_i32_49 : i32
    %120 = arith.index_cast %119 : i32 to index
    %121 = memref.load %arg2[%120] : memref<48xi32, #tpu.memory_space<smem>>
    %c0_50 = arith.constant 0 : index
    %122 = arith.index_cast %121 : i32 to index
    %c0_51 = arith.constant 0 : index
    %123 = vector.load %arg3[%c0_50, %122, %c0_51] : memref<1x16x128xf32, #tpu.memory_space<vmem>>, vector<1x1x128xf32>
    %124 = vector.shape_cast %123 : vector<1x1x128xf32> to vector<1x128xf32>
    %125 = arith.index_cast %c2_i32_39 : i32 to index
    %c256_52 = arith.constant 256 : index
    %126 = vector.load %arg7[%125, %c256_52] : memref<8x768xf32, #tpu.memory_space<vmem>>, vector<1x128xf32>
    tpu.vector_store %arg7[%125, %c256_52], %124 {strides = array<i32>} : memref<8x768xf32, #tpu.memory_space<vmem>>, vector<1x128xf32>,
    %c3_i32_53 = arith.constant 3 : i32
    %127 = arith.addi %102, %c3_i32_53 : i32
    %128 = arith.index_cast %127 : i32 to index
    %129 = memref.load %arg2[%128] : memref<48xi32, #tpu.memory_space<smem>>
    %c0_54 = arith.constant 0 : index
    %130 = arith.index_cast %129 : i32 to index
    %c0_55 = arith.constant 0 : index
    %131 = vector.load %arg3[%c0_54, %130, %c0_55] : memref<1x16x128xf32, #tpu.memory_space<vmem>>, vector<1x1x128xf32>
    %132 = vector.shape_cast %131 : vector<1x1x128xf32> to vector<1x128xf32>
    %133 = arith.index_cast %c2_i32_39 : i32 to index
    %c384_56 = arith.constant 384 : index
    %134 = vector.load %arg7[%133, %c384_56] : memref<8x768xf32, #tpu.memory_space<vmem>>, vector<1x128xf32>
    tpu.vector_store %arg7[%133, %c384_56], %132 {strides = array<i32>} : memref<8x768xf32, #tpu.memory_space<vmem>>, vector<1x128xf32>,
    %c4_i32_57 = arith.constant 4 : i32
    %135 = arith.addi %102, %c4_i32_57 : i32
    %136 = arith.index_cast %135 : i32 to index
    %137 = memref.load %arg2[%136] : memref<48xi32, #tpu.memory_space<smem>>
    %c0_58 = arith.constant 0 : index
    %138 = arith.index_cast %137 : i32 to index
    %c0_59 = arith.constant 0 : index
    %139 = vector.load %arg3[%c0_58, %138, %c0_59] : memref<1x16x128xf32, #tpu.memory_space<vmem>>, vector<1x1x128xf32>
    %140 = vector.shape_cast %139 : vector<1x1x128xf32> to vector<1x128xf32>
    %141 = arith.index_cast %c2_i32_39 : i32 to index
    %c512_60 = arith.constant 512 : index
    %142 = vector.load %arg7[%141, %c512_60] : memref<8x768xf32, #tpu.memory_space<vmem>>, vector<1x128xf32>
    tpu.vector_store %arg7[%141, %c512_60], %140 {strides = array<i32>} : memref<8x768xf32, #tpu.memory_space<vmem>>, vector<1x128xf32>,
    %c5_i32_61 = arith.constant 5 : i32
    %143 = arith.addi %102, %c5_i32_61 : i32
    %144 = arith.index_cast %143 : i32 to index
    %145 = memref.load %arg2[%144] : memref<48xi32, #tpu.memory_space<smem>>
    %c0_62 = arith.constant 0 : index
    %146 = arith.index_cast %145 : i32 to index
    %c0_63 = arith.constant 0 : index
    %147 = vector.load %arg3[%c0_62, %146, %c0_63] : memref<1x16x128xf32, #tpu.memory_space<vmem>>, vector<1x1x128xf32>
    %148 = vector.shape_cast %147 : vector<1x1x128xf32> to vector<1x128xf32>
    %149 = arith.index_cast %c2_i32_39 : i32 to index
    %c640_64 = arith.constant 640 : index
    %150 = vector.load %arg7[%149, %c640_64] : memref<8x768xf32, #tpu.memory_space<vmem>>, vector<1x128xf32>
    tpu.vector_store %arg7[%149, %c640_64], %148 {strides = array<i32>} : memref<8x768xf32, #tpu.memory_space<vmem>>, vector<1x128xf32>,
    %c3_i32_65 = arith.constant 3 : i32
    %c6_i32_66 = arith.constant 6 : i32
    %151 = arith.muli %c3_i32_65, %c6_i32_66 : i32
    %152 = arith.addi %0, %151 : i32
    %c0_i32_67 = arith.constant 0 : i32
    %153 = arith.addi %152, %c0_i32_67 : i32
    %154 = arith.index_cast %153 : i32 to index
    %155 = memref.load %arg2[%154] : memref<48xi32, #tpu.memory_space<smem>>
    %c0_68 = arith.constant 0 : index
    %156 = arith.index_cast %155 : i32 to index
    %c0_69 = arith.constant 0 : index
    %157 = vector.load %arg3[%c0_68, %156, %c0_69] : memref<1x16x128xf32, #tpu.memory_space<vmem>>, vector<1x1x128xf32>
    %158 = vector.shape_cast %157 : vector<1x1x128xf32> to vector<1x128xf32>
    %159 = arith.index_cast %c3_i32_65 : i32 to index
    %c0_70 = arith.constant 0 : index
    %160 = vector.load %arg7[%159, %c0_70] : memref<8x768xf32, #tpu.memory_space<vmem>>, vector<1x128xf32>
    tpu.vector_store %arg7[%159, %c0_70], %158 {strides = array<i32>} : memref<8x768xf32, #tpu.memory_space<vmem>>, vector<1x128xf32>,
    %c1_i32_71 = arith.constant 1 : i32
    %161 = arith.addi %152, %c1_i32_71 : i32
    %162 = arith.index_cast %161 : i32 to index
    %163 = memref.load %arg2[%162] : memref<48xi32, #tpu.memory_space<smem>>
    %c0_72 = arith.constant 0 : index
    %164 = arith.index_cast %163 : i32 to index
    %c0_73 = arith.constant 0 : index
    %165 = vector.load %arg3[%c0_72, %164, %c0_73] : memref<1x16x128xf32, #tpu.memory_space<vmem>>, vector<1x1x128xf32>
    %166 = vector.shape_cast %165 : vector<1x1x128xf32> to vector<1x128xf32>
    %167 = arith.index_cast %c3_i32_65 : i32 to index
    %c128_74 = arith.constant 128 : index
    %168 = vector.load %arg7[%167, %c128_74] : memref<8x768xf32, #tpu.memory_space<vmem>>, vector<1x128xf32>
    tpu.vector_store %arg7[%167, %c128_74], %166 {strides = array<i32>} : memref<8x768xf32, #tpu.memory_space<vmem>>, vector<1x128xf32>,
    %c2_i32_75 = arith.constant 2 : i32
    %169 = arith.addi %152, %c2_i32_75 : i32
    %170 = arith.index_cast %169 : i32 to index
    %171 = memref.load %arg2[%170] : memref<48xi32, #tpu.memory_space<smem>>
    %c0_76 = arith.constant 0 : index
    %172 = arith.index_cast %171 : i32 to index
    %c0_77 = arith.constant 0 : index
    %173 = vector.load %arg3[%c0_76, %172, %c0_77] : memref<1x16x128xf32, #tpu.memory_space<vmem>>, vector<1x1x128xf32>
    %174 = vector.shape_cast %173 : vector<1x1x128xf32> to vector<1x128xf32>
    %175 = arith.index_cast %c3_i32_65 : i32 to index
    %c256_78 = arith.constant 256 : index
    %176 = vector.load %arg7[%175, %c256_78] : memref<8x768xf32, #tpu.memory_space<vmem>>, vector<1x128xf32>
    tpu.vector_store %arg7[%175, %c256_78], %174 {strides = array<i32>} : memref<8x768xf32, #tpu.memory_space<vmem>>, vector<1x128xf32>,
    %c3_i32_79 = arith.constant 3 : i32
    %177 = arith.addi %152, %c3_i32_79 : i32
    %178 = arith.index_cast %177 : i32 to index
    %179 = memref.load %arg2[%178] : memref<48xi32, #tpu.memory_space<smem>>
    %c0_80 = arith.constant 0 : index
    %180 = arith.index_cast %179 : i32 to index
    %c0_81 = arith.constant 0 : index
    %181 = vector.load %arg3[%c0_80, %180, %c0_81] : memref<1x16x128xf32, #tpu.memory_space<vmem>>, vector<1x1x128xf32>
    %182 = vector.shape_cast %181 : vector<1x1x128xf32> to vector<1x128xf32>
    %183 = arith.index_cast %c3_i32_65 : i32 to index
    %c384_82 = arith.constant 384 : index
    %184 = vector.load %arg7[%183, %c384_82] : memref<8x768xf32, #tpu.memory_space<vmem>>, vector<1x128xf32>
    tpu.vector_store %arg7[%183, %c384_82], %182 {strides = array<i32>} : memref<8x768xf32, #tpu.memory_space<vmem>>, vector<1x128xf32>,
    %c4_i32_83 = arith.constant 4 : i32
    %185 = arith.addi %152, %c4_i32_83 : i32
    %186 = arith.index_cast %185 : i32 to index
    %187 = memref.load %arg2[%186] : memref<48xi32, #tpu.memory_space<smem>>
    %c0_84 = arith.constant 0 : index
    %188 = arith.index_cast %187 : i32 to index
    %c0_85 = arith.constant 0 : index
    %189 = vector.load %arg3[%c0_84, %188, %c0_85] : memref<1x16x128xf32, #tpu.memory_space<vmem>>, vector<1x1x128xf32>
    %190 = vector.shape_cast %189 : vector<1x1x128xf32> to vector<1x128xf32>
    %191 = arith.index_cast %c3_i32_65 : i32 to index
    %c512_86 = arith.constant 512 : index
    %192 = vector.load %arg7[%191, %c512_86] : memref<8x768xf32, #tpu.memory_space<vmem>>, vector<1x128xf32>
    tpu.vector_store %arg7[%191, %c512_86], %190 {strides = array<i32>} : memref<8x768xf32, #tpu.memory_space<vmem>>, vector<1x128xf32>,
    %c5_i32_87 = arith.constant 5 : i32
    %193 = arith.addi %152, %c5_i32_87 : i32
    %194 = arith.index_cast %193 : i32 to index
    %195 = memref.load %arg2[%194] : memref<48xi32, #tpu.memory_space<smem>>
    %c0_88 = arith.constant 0 : index
    %196 = arith.index_cast %195 : i32 to index
    %c0_89 = arith.constant 0 : index
    %197 = vector.load %arg3[%c0_88, %196, %c0_89] : memref<1x16x128xf32, #tpu.memory_space<vmem>>, vector<1x1x128xf32>
    %198 = vector.shape_cast %197 : vector<1x1x128xf32> to vector<1x128xf32>
    %199 = arith.index_cast %c3_i32_65 : i32 to index
    %c640_90 = arith.constant 640 : index
    %200 = vector.load %arg7[%199, %c640_90] : memref<8x768xf32, #tpu.memory_space<vmem>>, vector<1x128xf32>
    tpu.vector_store %arg7[%199, %c640_90], %198 {strides = array<i32>} : memref<8x768xf32, #tpu.memory_space<vmem>>, vector<1x128xf32>,
    %c4_i32_91 = arith.constant 4 : i32
    %c6_i32_92 = arith.constant 6 : i32
    %201 = arith.muli %c4_i32_91, %c6_i32_92 : i32
    %202 = arith.addi %0, %201 : i32
    %c0_i32_93 = arith.constant 0 : i32
    %203 = arith.addi %202, %c0_i32_93 : i32
    %204 = arith.index_cast %203 : i32 to index
    %205 = memref.load %arg2[%204] : memref<48xi32, #tpu.memory_space<smem>>
    %c0_94 = arith.constant 0 : index
    %206 = arith.index_cast %205 : i32 to index
    %c0_95 = arith.constant 0 : index
    %207 = vector.load %arg3[%c0_94, %206, %c0_95] : memref<1x16x128xf32, #tpu.memory_space<vmem>>, vector<1x1x128xf32>
    %208 = vector.shape_cast %207 : vector<1x1x128xf32> to vector<1x128xf32>
    %209 = arith.index_cast %c4_i32_91 : i32 to index
    %c0_96 = arith.constant 0 : index
    %210 = vector.load %arg7[%209, %c0_96] : memref<8x768xf32, #tpu.memory_space<vmem>>, vector<1x128xf32>
    tpu.vector_store %arg7[%209, %c0_96], %208 {strides = array<i32>} : memref<8x768xf32, #tpu.memory_space<vmem>>, vector<1x128xf32>,
    %c1_i32_97 = arith.constant 1 : i32
    %211 = arith.addi %202, %c1_i32_97 : i32
    %212 = arith.index_cast %211 : i32 to index
    %213 = memref.load %arg2[%212] : memref<48xi32, #tpu.memory_space<smem>>
    %c0_98 = arith.constant 0 : index
    %214 = arith.index_cast %213 : i32 to index
    %c0_99 = arith.constant 0 : index
    %215 = vector.load %arg3[%c0_98, %214, %c0_99] : memref<1x16x128xf32, #tpu.memory_space<vmem>>, vector<1x1x128xf32>
    %216 = vector.shape_cast %215 : vector<1x1x128xf32> to vector<1x128xf32>
    %217 = arith.index_cast %c4_i32_91 : i32 to index
    %c128_100 = arith.constant 128 : index
    %218 = vector.load %arg7[%217, %c128_100] : memref<8x768xf32, #tpu.memory_space<vmem>>, vector<1x128xf32>
    tpu.vector_store %arg7[%217, %c128_100], %216 {strides = array<i32>} : memref<8x768xf32, #tpu.memory_space<vmem>>, vector<1x128xf32>,
    %c2_i32_101 = arith.constant 2 : i32
    %219 = arith.addi %202, %c2_i32_101 : i32
    %220 = arith.index_cast %219 : i32 to index
    %221 = memref.load %arg2[%220] : memref<48xi32, #tpu.memory_space<smem>>
    %c0_102 = arith.constant 0 : index
    %222 = arith.index_cast %221 : i32 to index
    %c0_103 = arith.constant 0 : index
    %223 = vector.load %arg3[%c0_102, %222, %c0_103] : memref<1x16x128xf32, #tpu.memory_space<vmem>>, vector<1x1x128xf32>
    %224 = vector.shape_cast %223 : vector<1x1x128xf32> to vector<1x128xf32>
    %225 = arith.index_cast %c4_i32_91 : i32 to index
    %c256_104 = arith.constant 256 : index
    %226 = vector.load %arg7[%225, %c256_104] : memref<8x768xf32, #tpu.memory_space<vmem>>, vector<1x128xf32>
    tpu.vector_store %arg7[%225, %c256_104], %224 {strides = array<i32>} : memref<8x768xf32, #tpu.memory_space<vmem>>, vector<1x128xf32>,
    %c3_i32_105 = arith.constant 3 : i32
    %227 = arith.addi %202, %c3_i32_105 : i32
    %228 = arith.index_cast %227 : i32 to index
    %229 = memref.load %arg2[%228] : memref<48xi32, #tpu.memory_space<smem>>
    %c0_106 = arith.constant 0 : index
    %230 = arith.index_cast %229 : i32 to index
    %c0_107 = arith.constant 0 : index
    %231 = vector.load %arg3[%c0_106, %230, %c0_107] : memref<1x16x128xf32, #tpu.memory_space<vmem>>, vector<1x1x128xf32>
    %232 = vector.shape_cast %231 : vector<1x1x128xf32> to vector<1x128xf32>
    %233 = arith.index_cast %c4_i32_91 : i32 to index
    %c384_108 = arith.constant 384 : index
    %234 = vector.load %arg7[%233, %c384_108] : memref<8x768xf32, #tpu.memory_space<vmem>>, vector<1x128xf32>
    tpu.vector_store %arg7[%233, %c384_108], %232 {strides = array<i32>} : memref<8x768xf32, #tpu.memory_space<vmem>>, vector<1x128xf32>,
    %c4_i32_109 = arith.constant 4 : i32
    %235 = arith.addi %202, %c4_i32_109 : i32
    %236 = arith.index_cast %235 : i32 to index
    %237 = memref.load %arg2[%236] : memref<48xi32, #tpu.memory_space<smem>>
    %c0_110 = arith.constant 0 : index
    %238 = arith.index_cast %237 : i32 to index
    %c0_111 = arith.constant 0 : index
    %239 = vector.load %arg3[%c0_110, %238, %c0_111] : memref<1x16x128xf32, #tpu.memory_space<vmem>>, vector<1x1x128xf32>
    %240 = vector.shape_cast %239 : vector<1x1x128xf32> to vector<1x128xf32>
    %241 = arith.index_cast %c4_i32_91 : i32 to index
    %c512_112 = arith.constant 512 : index
    %242 = vector.load %arg7[%241, %c512_112] : memref<8x768xf32, #tpu.memory_space<vmem>>, vector<1x128xf32>
    tpu.vector_store %arg7[%241, %c512_112], %240 {strides = array<i32>} : memref<8x768xf32, #tpu.memory_space<vmem>>, vector<1x128xf32>,
    %c5_i32_113 = arith.constant 5 : i32
    %243 = arith.addi %202, %c5_i32_113 : i32
    %244 = arith.index_cast %243 : i32 to index
    %245 = memref.load %arg2[%244] : memref<48xi32, #tpu.memory_space<smem>>
    %c0_114 = arith.constant 0 : index
    %246 = arith.index_cast %245 : i32 to index
    %c0_115 = arith.constant 0 : index
    %247 = vector.load %arg3[%c0_114, %246, %c0_115] : memref<1x16x128xf32, #tpu.memory_space<vmem>>, vector<1x1x128xf32>
    %248 = vector.shape_cast %247 : vector<1x1x128xf32> to vector<1x128xf32>
    %249 = arith.index_cast %c4_i32_91 : i32 to index
    %c640_116 = arith.constant 640 : index
    %250 = vector.load %arg7[%249, %c640_116] : memref<8x768xf32, #tpu.memory_space<vmem>>, vector<1x128xf32>
    tpu.vector_store %arg7[%249, %c640_116], %248 {strides = array<i32>} : memref<8x768xf32, #tpu.memory_space<vmem>>, vector<1x128xf32>,
    %c5_i32_117 = arith.constant 5 : i32
    %c6_i32_118 = arith.constant 6 : i32
    %251 = arith.muli %c5_i32_117, %c6_i32_118 : i32
    %252 = arith.addi %0, %251 : i32
    %c0_i32_119 = arith.constant 0 : i32
    %253 = arith.addi %252, %c0_i32_119 : i32
    %254 = arith.index_cast %253 : i32 to index
    %255 = memref.load %arg2[%254] : memref<48xi32, #tpu.memory_space<smem>>
    %c0_120 = arith.constant 0 : index
    %256 = arith.index_cast %255 : i32 to index
    %c0_121 = arith.constant 0 : index
    %257 = vector.load %arg3[%c0_120, %256, %c0_121] : memref<1x16x128xf32, #tpu.memory_space<vmem>>, vector<1x1x128xf32>
    %258 = vector.shape_cast %257 : vector<1x1x128xf32> to vector<1x128xf32>
    %259 = arith.index_cast %c5_i32_117 : i32 to index
    %c0_122 = arith.constant 0 : index
    %260 = vector.load %arg7[%259, %c0_122] : memref<8x768xf32, #tpu.memory_space<vmem>>, vector<1x128xf32>
    tpu.vector_store %arg7[%259, %c0_122], %258 {strides = array<i32>} : memref<8x768xf32, #tpu.memory_space<vmem>>, vector<1x128xf32>,
    %c1_i32_123 = arith.constant 1 : i32
    %261 = arith.addi %252, %c1_i32_123 : i32
    %262 = arith.index_cast %261 : i32 to index
    %263 = memref.load %arg2[%262] : memref<48xi32, #tpu.memory_space<smem>>
    %c0_124 = arith.constant 0 : index
    %264 = arith.index_cast %263 : i32 to index
    %c0_125 = arith.constant 0 : index
    %265 = vector.load %arg3[%c0_124, %264, %c0_125] : memref<1x16x128xf32, #tpu.memory_space<vmem>>, vector<1x1x128xf32>
    %266 = vector.shape_cast %265 : vector<1x1x128xf32> to vector<1x128xf32>
    %267 = arith.index_cast %c5_i32_117 : i32 to index
    %c128_126 = arith.constant 128 : index
    %268 = vector.load %arg7[%267, %c128_126] : memref<8x768xf32, #tpu.memory_space<vmem>>, vector<1x128xf32>
    tpu.vector_store %arg7[%267, %c128_126], %266 {strides = array<i32>} : memref<8x768xf32, #tpu.memory_space<vmem>>, vector<1x128xf32>,
    %c2_i32_127 = arith.constant 2 : i32
    %269 = arith.addi %252, %c2_i32_127 : i32
    %270 = arith.index_cast %269 : i32 to index
    %271 = memref.load %arg2[%270] : memref<48xi32, #tpu.memory_space<smem>>
    %c0_128 = arith.constant 0 : index
    %272 = arith.index_cast %271 : i32 to index
    %c0_129 = arith.constant 0 : index
    %273 = vector.load %arg3[%c0_128, %272, %c0_129] : memref<1x16x128xf32, #tpu.memory_space<vmem>>, vector<1x1x128xf32>
    %274 = vector.shape_cast %273 : vector<1x1x128xf32> to vector<1x128xf32>
    %275 = arith.index_cast %c5_i32_117 : i32 to index
    %c256_130 = arith.constant 256 : index
    %276 = vector.load %arg7[%275, %c256_130] : memref<8x768xf32, #tpu.memory_space<vmem>>, vector<1x128xf32>
    tpu.vector_store %arg7[%275, %c256_130], %274 {strides = array<i32>} : memref<8x768xf32, #tpu.memory_space<vmem>>, vector<1x128xf32>,
    %c3_i32_131 = arith.constant 3 : i32
    %277 = arith.addi %252, %c3_i32_131 : i32
    %278 = arith.index_cast %277 : i32 to index
    %279 = memref.load %arg2[%278] : memref<48xi32, #tpu.memory_space<smem>>
    %c0_132 = arith.constant 0 : index
    %280 = arith.index_cast %279 : i32 to index
    %c0_133 = arith.constant 0 : index
    %281 = vector.load %arg3[%c0_132, %280, %c0_133] : memref<1x16x128xf32, #tpu.memory_space<vmem>>, vector<1x1x128xf32>
    %282 = vector.shape_cast %281 : vector<1x1x128xf32> to vector<1x128xf32>
    %283 = arith.index_cast %c5_i32_117 : i32 to index
    %c384_134 = arith.constant 384 : index
    %284 = vector.load %arg7[%283, %c384_134] : memref<8x768xf32, #tpu.memory_space<vmem>>, vector<1x128xf32>
    tpu.vector_store %arg7[%283, %c384_134], %282 {strides = array<i32>} : memref<8x768xf32, #tpu.memory_space<vmem>>, vector<1x128xf32>,
    %c4_i32_135 = arith.constant 4 : i32
    %285 = arith.addi %252, %c4_i32_135 : i32
    %286 = arith.index_cast %285 : i32 to index
    %287 = memref.load %arg2[%286] : memref<48xi32, #tpu.memory_space<smem>>
    %c0_136 = arith.constant 0 : index
    %288 = arith.index_cast %287 : i32 to index
    %c0_137 = arith.constant 0 : index
    %289 = vector.load %arg3[%c0_136, %288, %c0_137] : memref<1x16x128xf32, #tpu.memory_space<vmem>>, vector<1x1x128xf32>
    %290 = vector.shape_cast %289 : vector<1x1x128xf32> to vector<1x128xf32>
    %291 = arith.index_cast %c5_i32_117 : i32 to index
    %c512_138 = arith.constant 512 : index
    %292 = vector.load %arg7[%291, %c512_138] : memref<8x768xf32, #tpu.memory_space<vmem>>, vector<1x128xf32>
    tpu.vector_store %arg7[%291, %c512_138], %290 {strides = array<i32>} : memref<8x768xf32, #tpu.memory_space<vmem>>, vector<1x128xf32>,
    %c5_i32_139 = arith.constant 5 : i32
    %293 = arith.addi %252, %c5_i32_139 : i32
    %294 = arith.index_cast %293 : i32 to index
    %295 = memref.load %arg2[%294] : memref<48xi32, #tpu.memory_space<smem>>
    %c0_140 = arith.constant 0 : index
    %296 = arith.index_cast %295 : i32 to index
    %c0_141 = arith.constant 0 : index
    %297 = vector.load %arg3[%c0_140, %296, %c0_141] : memref<1x16x128xf32, #tpu.memory_space<vmem>>, vector<1x1x128xf32>
    %298 = vector.shape_cast %297 : vector<1x1x128xf32> to vector<1x128xf32>
    %299 = arith.index_cast %c5_i32_117 : i32 to index
    %c640_142 = arith.constant 640 : index
    %300 = vector.load %arg7[%299, %c640_142] : memref<8x768xf32, #tpu.memory_space<vmem>>, vector<1x128xf32>
    tpu.vector_store %arg7[%299, %c640_142], %298 {strides = array<i32>} : memref<8x768xf32, #tpu.memory_space<vmem>>, vector<1x128xf32>,
    %c6_i32_143 = arith.constant 6 : i32
    %c6_i32_144 = arith.constant 6 : i32
    %301 = arith.muli %c6_i32_143, %c6_i32_144 : i32
    %302 = arith.addi %0, %301 : i32
    %c0_i32_145 = arith.constant 0 : i32
    %303 = arith.addi %302, %c0_i32_145 : i32
    %304 = arith.index_cast %303 : i32 to index
    %305 = memref.load %arg2[%304] : memref<48xi32, #tpu.memory_space<smem>>
    %c0_146 = arith.constant 0 : index
    %306 = arith.index_cast %305 : i32 to index
    %c0_147 = arith.constant 0 : index
    %307 = vector.load %arg3[%c0_146, %306, %c0_147] : memref<1x16x128xf32, #tpu.memory_space<vmem>>, vector<1x1x128xf32>
    %308 = vector.shape_cast %307 : vector<1x1x128xf32> to vector<1x128xf32>
    %309 = arith.index_cast %c6_i32_143 : i32 to index
    %c0_148 = arith.constant 0 : index
    %310 = vector.load %arg7[%309, %c0_148] : memref<8x768xf32, #tpu.memory_space<vmem>>, vector<1x128xf32>
    tpu.vector_store %arg7[%309, %c0_148], %308 {strides = array<i32>} : memref<8x768xf32, #tpu.memory_space<vmem>>, vector<1x128xf32>,
    %c1_i32_149 = arith.constant 1 : i32
    %311 = arith.addi %302, %c1_i32_149 : i32
    %312 = arith.index_cast %311 : i32 to index
    %313 = memref.load %arg2[%312] : memref<48xi32, #tpu.memory_space<smem>>
    %c0_150 = arith.constant 0 : index
    %314 = arith.index_cast %313 : i32 to index
    %c0_151 = arith.constant 0 : index
    %315 = vector.load %arg3[%c0_150, %314, %c0_151] : memref<1x16x128xf32, #tpu.memory_space<vmem>>, vector<1x1x128xf32>
    %316 = vector.shape_cast %315 : vector<1x1x128xf32> to vector<1x128xf32>
    %317 = arith.index_cast %c6_i32_143 : i32 to index
    %c128_152 = arith.constant 128 : index
    %318 = vector.load %arg7[%317, %c128_152] : memref<8x768xf32, #tpu.memory_space<vmem>>, vector<1x128xf32>
    tpu.vector_store %arg7[%317, %c128_152], %316 {strides = array<i32>} : memref<8x768xf32, #tpu.memory_space<vmem>>, vector<1x128xf32>,
    %c2_i32_153 = arith.constant 2 : i32
    %319 = arith.addi %302, %c2_i32_153 : i32
    %320 = arith.index_cast %319 : i32 to index
    %321 = memref.load %arg2[%320] : memref<48xi32, #tpu.memory_space<smem>>
    %c0_154 = arith.constant 0 : index
    %322 = arith.index_cast %321 : i32 to index
    %c0_155 = arith.constant 0 : index
    %323 = vector.load %arg3[%c0_154, %322, %c0_155] : memref<1x16x128xf32, #tpu.memory_space<vmem>>, vector<1x1x128xf32>
    %324 = vector.shape_cast %323 : vector<1x1x128xf32> to vector<1x128xf32>
    %325 = arith.index_cast %c6_i32_143 : i32 to index
    %c256_156 = arith.constant 256 : index
    %326 = vector.load %arg7[%325, %c256_156] : memref<8x768xf32, #tpu.memory_space<vmem>>, vector<1x128xf32>
    tpu.vector_store %arg7[%325, %c256_156], %324 {strides = array<i32>} : memref<8x768xf32, #tpu.memory_space<vmem>>, vector<1x128xf32>,
    %c3_i32_157 = arith.constant 3 : i32
    %327 = arith.addi %302, %c3_i32_157 : i32
    %328 = arith.index_cast %327 : i32 to index
    %329 = memref.load %arg2[%328] : memref<48xi32, #tpu.memory_space<smem>>
    %c0_158 = arith.constant 0 : index
    %330 = arith.index_cast %329 : i32 to index
    %c0_159 = arith.constant 0 : index
    %331 = vector.load %arg3[%c0_158, %330, %c0_159] : memref<1x16x128xf32, #tpu.memory_space<vmem>>, vector<1x1x128xf32>
    %332 = vector.shape_cast %331 : vector<1x1x128xf32> to vector<1x128xf32>
    %333 = arith.index_cast %c6_i32_143 : i32 to index
    %c384_160 = arith.constant 384 : index
    %334 = vector.load %arg7[%333, %c384_160] : memref<8x768xf32, #tpu.memory_space<vmem>>, vector<1x128xf32>
    tpu.vector_store %arg7[%333, %c384_160], %332 {strides = array<i32>} : memref<8x768xf32, #tpu.memory_space<vmem>>, vector<1x128xf32>,
    %c4_i32_161 = arith.constant 4 : i32
    %335 = arith.addi %302, %c4_i32_161 : i32
    %336 = arith.index_cast %335 : i32 to index
    %337 = memref.load %arg2[%336] : memref<48xi32, #tpu.memory_space<smem>>
    %c0_162 = arith.constant 0 : index
    %338 = arith.index_cast %337 : i32 to index
    %c0_163 = arith.constant 0 : index
    %339 = vector.load %arg3[%c0_162, %338, %c0_163] : memref<1x16x128xf32, #tpu.memory_space<vmem>>, vector<1x1x128xf32>
    %340 = vector.shape_cast %339 : vector<1x1x128xf32> to vector<1x128xf32>
    %341 = arith.index_cast %c6_i32_143 : i32 to index
    %c512_164 = arith.constant 512 : index
    %342 = vector.load %arg7[%341, %c512_164] : memref<8x768xf32, #tpu.memory_space<vmem>>, vector<1x128xf32>
    tpu.vector_store %arg7[%341, %c512_164], %340 {strides = array<i32>} : memref<8x768xf32, #tpu.memory_space<vmem>>, vector<1x128xf32>,
    %c5_i32_165 = arith.constant 5 : i32
    %343 = arith.addi %302, %c5_i32_165 : i32
    %344 = arith.index_cast %343 : i32 to index
    %345 = memref.load %arg2[%344] : memref<48xi32, #tpu.memory_space<smem>>
    %c0_166 = arith.constant 0 : index
    %346 = arith.index_cast %345 : i32 to index
    %c0_167 = arith.constant 0 : index
    %347 = vector.load %arg3[%c0_166, %346, %c0_167] : memref<1x16x128xf32, #tpu.memory_space<vmem>>, vector<1x1x128xf32>
    %348 = vector.shape_cast %347 : vector<1x1x128xf32> to vector<1x128xf32>
    %349 = arith.index_cast %c6_i32_143 : i32 to index
    %c640_168 = arith.constant 640 : index
    %350 = vector.load %arg7[%349, %c640_168] : memref<8x768xf32, #tpu.memory_space<vmem>>, vector<1x128xf32>
    tpu.vector_store %arg7[%349, %c640_168], %348 {strides = array<i32>} : memref<8x768xf32, #tpu.memory_space<vmem>>, vector<1x128xf32>,
    %c7_i32 = arith.constant 7 : i32
    %c6_i32_169 = arith.constant 6 : i32
    %351 = arith.muli %c7_i32, %c6_i32_169 : i32
    %352 = arith.addi %0, %351 : i32
    %c0_i32_170 = arith.constant 0 : i32
    %353 = arith.addi %352, %c0_i32_170 : i32
    %354 = arith.index_cast %353 : i32 to index
    %355 = memref.load %arg2[%354] : memref<48xi32, #tpu.memory_space<smem>>
    %c0_171 = arith.constant 0 : index
    %356 = arith.index_cast %355 : i32 to index
    %c0_172 = arith.constant 0 : index
    %357 = vector.load %arg3[%c0_171, %356, %c0_172] : memref<1x16x128xf32, #tpu.memory_space<vmem>>, vector<1x1x128xf32>
    %358 = vector.shape_cast %357 : vector<1x1x128xf32> to vector<1x128xf32>
    %359 = arith.index_cast %c7_i32 : i32 to index
    %c0_173 = arith.constant 0 : index
    %360 = vector.load %arg7[%359, %c0_173] : memref<8x768xf32, #tpu.memory_space<vmem>>, vector<1x128xf32>
    tpu.vector_store %arg7[%359, %c0_173], %358 {strides = array<i32>} : memref<8x768xf32, #tpu.memory_space<vmem>>, vector<1x128xf32>,
    %c1_i32_174 = arith.constant 1 : i32
    %361 = arith.addi %352, %c1_i32_174 : i32
    %362 = arith.index_cast %361 : i32 to index
    %363 = memref.load %arg2[%362] : memref<48xi32, #tpu.memory_space<smem>>
    %c0_175 = arith.constant 0 : index
    %364 = arith.index_cast %363 : i32 to index
    %c0_176 = arith.constant 0 : index
    %365 = vector.load %arg3[%c0_175, %364, %c0_176] : memref<1x16x128xf32, #tpu.memory_space<vmem>>, vector<1x1x128xf32>
    %366 = vector.shape_cast %365 : vector<1x1x128xf32> to vector<1x128xf32>
    %367 = arith.index_cast %c7_i32 : i32 to index
    %c128_177 = arith.constant 128 : index
    %368 = vector.load %arg7[%367, %c128_177] : memref<8x768xf32, #tpu.memory_space<vmem>>, vector<1x128xf32>
    tpu.vector_store %arg7[%367, %c128_177], %366 {strides = array<i32>} : memref<8x768xf32, #tpu.memory_space<vmem>>, vector<1x128xf32>,
    %c2_i32_178 = arith.constant 2 : i32
    %369 = arith.addi %352, %c2_i32_178 : i32
    %370 = arith.index_cast %369 : i32 to index
    %371 = memref.load %arg2[%370] : memref<48xi32, #tpu.memory_space<smem>>
    %c0_179 = arith.constant 0 : index
    %372 = arith.index_cast %371 : i32 to index
    %c0_180 = arith.constant 0 : index
    %373 = vector.load %arg3[%c0_179, %372, %c0_180] : memref<1x16x128xf32, #tpu.memory_space<vmem>>, vector<1x1x128xf32>
    %374 = vector.shape_cast %373 : vector<1x1x128xf32> to vector<1x128xf32>
    %375 = arith.index_cast %c7_i32 : i32 to index
    %c256_181 = arith.constant 256 : index
    %376 = vector.load %arg7[%375, %c256_181] : memref<8x768xf32, #tpu.memory_space<vmem>>, vector<1x128xf32>
    tpu.vector_store %arg7[%375, %c256_181], %374 {strides = array<i32>} : memref<8x768xf32, #tpu.memory_space<vmem>>, vector<1x128xf32>,
    %c3_i32_182 = arith.constant 3 : i32
    %377 = arith.addi %352, %c3_i32_182 : i32
    %378 = arith.index_cast %377 : i32 to index
    %379 = memref.load %arg2[%378] : memref<48xi32, #tpu.memory_space<smem>>
    %c0_183 = arith.constant 0 : index
    %380 = arith.index_cast %379 : i32 to index
    %c0_184 = arith.constant 0 : index
    %381 = vector.load %arg3[%c0_183, %380, %c0_184] : memref<1x16x128xf32, #tpu.memory_space<vmem>>, vector<1x1x128xf32>
    %382 = vector.shape_cast %381 : vector<1x1x128xf32> to vector<1x128xf32>
    %383 = arith.index_cast %c7_i32 : i32 to index
    %c384_185 = arith.constant 384 : index
    %384 = vector.load %arg7[%383, %c384_185] : memref<8x768xf32, #tpu.memory_space<vmem>>, vector<1x128xf32>
    tpu.vector_store %arg7[%383, %c384_185], %382 {strides = array<i32>} : memref<8x768xf32, #tpu.memory_space<vmem>>, vector<1x128xf32>,
    %c4_i32_186 = arith.constant 4 : i32
    %385 = arith.addi %352, %c4_i32_186 : i32
    %386 = arith.index_cast %385 : i32 to index
    %387 = memref.load %arg2[%386] : memref<48xi32, #tpu.memory_space<smem>>
    %c0_187 = arith.constant 0 : index
    %388 = arith.index_cast %387 : i32 to index
    %c0_188 = arith.constant 0 : index
    %389 = vector.load %arg3[%c0_187, %388, %c0_188] : memref<1x16x128xf32, #tpu.memory_space<vmem>>, vector<1x1x128xf32>
    %390 = vector.shape_cast %389 : vector<1x1x128xf32> to vector<1x128xf32>
    %391 = arith.index_cast %c7_i32 : i32 to index
    %c512_189 = arith.constant 512 : index
    %392 = vector.load %arg7[%391, %c512_189] : memref<8x768xf32, #tpu.memory_space<vmem>>, vector<1x128xf32>
    tpu.vector_store %arg7[%391, %c512_189], %390 {strides = array<i32>} : memref<8x768xf32, #tpu.memory_space<vmem>>, vector<1x128xf32>,
    %c5_i32_190 = arith.constant 5 : i32
    %393 = arith.addi %352, %c5_i32_190 : i32
    %394 = arith.index_cast %393 : i32 to index
    %395 = memref.load %arg2[%394] : memref<48xi32, #tpu.memory_space<smem>>
    %c0_191 = arith.constant 0 : index
    %396 = arith.index_cast %395 : i32 to index
    %c0_192 = arith.constant 0 : index
    %397 = vector.load %arg3[%c0_191, %396, %c0_192] : memref<1x16x128xf32, #tpu.memory_space<vmem>>, vector<1x1x128xf32>
    %398 = vector.shape_cast %397 : vector<1x1x128xf32> to vector<1x128xf32>
    %399 = arith.index_cast %c7_i32 : i32 to index
    %c640_193 = arith.constant 640 : index
    %400 = vector.load %arg7[%399, %c640_193] : memref<8x768xf32, #tpu.memory_space<vmem>>, vector<1x128xf32>
    tpu.vector_store %arg7[%399, %c640_193], %398 {strides = array<i32>} : memref<8x768xf32, #tpu.memory_space<vmem>>, vector<1x128xf32>,
    %c8_i32 = arith.constant 8 : i32
    %c0_194 = arith.constant 0 : index
    %c0_195 = arith.constant 0 : index
    %401 = vector.load %arg7[%c0_194, %c0_195] : memref<8x768xf32, #tpu.memory_space<vmem>>, vector<8x768xf32>
    %402 = arith.truncf %401 : vector<8x768xf32> to vector<8x768xbf16>
    %c0_196 = arith.constant 0 : index
    %c0_197 = arith.constant 0 : index
    %403 = vector.load %arg4[%c0_196, %c0_197] : memref<768x128xbf16, #tpu.memory_space<vmem>>, vector<768x128xbf16>
    %cst = arith.constant dense<0.000000e+00> : vector<8x128xf32>
    %404 = tpu.matmul %402, %403, %cst {dimension_numbers = #tpu.dot_dimension_numbers<[1], [0], [0], [1], [0, 0, 1, 1], [], []>} : vector<8x768xbf16>, vector<768x128xbf16>, vector<8x128xf32> -> vector<8x128xf32>
    %c0_198 = arith.constant 0 : index
    %c0_199 = arith.constant 0 : index
    %405 = vector.load %arg5[%c0_198, %c0_199] : memref<1x128xf32, #tpu.memory_space<vmem>>, vector<1x128xf32>
    %406 = vector.broadcast %405 : vector<1x128xf32> to vector<8x128xf32>
    %407 = arith.addf %404, %406 : vector<8x128xf32>
    %cst_200 = arith.constant 0.000000e+00 : f32
    %408 = vector.broadcast %cst_200 : f32 to vector<8x128xf32>
    %409 = arith.maximumf %407, %408 : vector<8x128xf32>
    %c8_i32_201 = arith.constant 8 : i32
    %410 = arith.muli %arg1, %c8_i32_201 : i32
    %411 = tpu.iota {dimensions = array<i32: 0>} : vector<8x1xi32>
    %412 = vector.broadcast %410 : i32 to vector<8x1xi32>
    %413 = arith.addi %412, %411 : vector<8x1xi32>
    %c4_i32_202 = arith.constant 4 : i32
    %414 = vector.broadcast %c4_i32_202 : i32 to vector<8x1xi32>
    %415 = arith.cmpi slt, %413, %414 : vector<8x1xi32>
    %cst_203 = arith.constant 0.000000e+00 : f32
    %416 = vector.shape_cast %415 : vector<8x1xi1> to vector<8x1xi1>
    %417 = vector.broadcast %416 : vector<8x1xi1> to vector<8x128xi1>
    %418 = vector.broadcast %cst_203 : f32 to vector<8x128xf32>
    %419 = arith.select %417, %409, %418 : vector<8x128xi1>, vector<8x128xf32>
    %c0_204 = arith.constant 0 : index
    %c0_205 = arith.constant 0 : index
    %c0_206 = arith.constant 0 : index
    %420 = vector.load %arg6[%c0_204, %c0_205, %c0_206] : memref<1x8x128xf32, #tpu.memory_space<vmem>>, vector<1x8x128xf32>
    %421 = vector.shape_cast %420 : vector<1x8x128xf32> to vector<8x128xf32>
    %422 = vector.shape_cast %419 : vector<8x128xf32> to vector<1x8x128xf32>
    tpu.vector_store %arg6[%c0_204, %c0_205, %c0_206], %422 {strides = array<i32>} : memref<1x8x128xf32, #tpu.memory_space<vmem>>, vector<1x8x128xf32>,
    return
  }
  func.func @transform_0(%arg0: i32, %arg1: i32, %arg2: memref<48xi32, #tpu.memory_space<smem>>) -> (i32, i32, i32) {
    %c0_i32 = arith.constant 0 : i32
    %c0_i32_0 = arith.constant 0 : i32
    %c0_i32_1 = arith.constant 0 : i32
    return %arg0, %c0_i32, %c0_i32_0 : i32, i32, i32
  }
  func.func @transform_1(%arg0: i32, %arg1: i32, %arg2: memref<48xi32, #tpu.memory_space<smem>>) -> (i32, i32) {
    %c0_i32 = arith.constant 0 : i32
    %c0_i32_0 = arith.constant 0 : i32
    %c0_i32_1 = arith.constant 0 : i32
    return %c0_i32, %c0_i32_0 : i32, i32
  }
  func.func @transform_2(%arg0: i32, %arg1: i32, %arg2: memref<48xi32, #tpu.memory_space<smem>>) -> (i32, i32) {
    %c0_i32 = arith.constant 0 : i32
    %c0_i32_0 = arith.constant 0 : i32
    %c0_i32_1 = arith.constant 0 : i32
    return %c0_i32, %c0_i32_0 : i32, i32
  }
  func.func @transform_3(%arg0: i32, %arg1: i32, %arg2: memref<48xi32, #tpu.memory_space<smem>>) -> (i32, i32, i32) {
    %c0_i32 = arith.constant 0 : i32
    %c0_i32_0 = arith.constant 0 : i32
    return %arg0, %arg1, %c0_i32 : i32, i32, i32
  }
}

module attributes {stable_mosaic.version = 11 : i64} {
  func.func @_fc_kernel(%arg0: i32, %arg1: memref<8x128xbf16, #tpu.memory_space<vmem>>, %arg2: memref<128x128xbf16, #tpu.memory_space<vmem>>, %arg3: memref<1x128xf32, #tpu.memory_space<vmem>>, %arg4: memref<8x128xf32, #tpu.memory_space<vmem>>, %arg5: memref<8x128xf32, #tpu.memory_space<vmem>>) attributes {dimension_semantics = [#tpu.dimension_semantics<arbitrary>], iteration_bounds = array<i64: 1>, scalar_prefetch = 0 : i64, scratch_operands = 1 : i64, tpu.core_type = #tpu.core_type<tc>, window_params = [{transform_indices = @transform_0, window_bounds = array<i64: 8, 128>}, {transform_indices = @transform_1, window_bounds = array<i64: 128, 128>}, {pipeline_mode = #tpu.pipeline_mode<synchronous>, transform_indices = @transform_2, window_bounds = array<i64: 1, 128>}, {pipeline_mode = #tpu.pipeline_mode<synchronous>, transform_indices = @transform_3, window_bounds = array<i64: 8, 128>}]} {
    %c0_i32 = arith.constant 0 : i32
    %0 = arith.cmpi eq, %arg0, %c0_i32 : i32
    %1 = arith.extui %0 : i1 to i32
    %c0_i32_0 = arith.constant 0 : i32
    %2 = arith.cmpi ne, %1, %c0_i32_0 : i32
    scf.if %2 {
      %cst_10 = arith.constant 0.000000e+00 : f32
      %12 = vector.broadcast %cst_10 : f32 to vector<8x128xf32>
      %c0_11 = arith.constant 0 : index
      %c0_12 = arith.constant 0 : index
      %13 = vector.load %arg5[%c0_11, %c0_12] : memref<8x128xf32, #tpu.memory_space<vmem>>, vector<8x128xf32>
      tpu.vector_store %arg5[%c0_11, %c0_12], %12 {strides = array<i32>} : memref<8x128xf32, #tpu.memory_space<vmem>>, vector<8x128xf32>,
    } else {
    }
    %c0 = arith.constant 0 : index
    %c0_1 = arith.constant 0 : index
    %3 = vector.load %arg5[%c0, %c0_1] : memref<8x128xf32, #tpu.memory_space<vmem>>, vector<8x128xf32>
    %c0_2 = arith.constant 0 : index
    %c0_3 = arith.constant 0 : index
    %4 = vector.load %arg1[%c0_2, %c0_3] : memref<8x128xbf16, #tpu.memory_space<vmem>>, vector<8x128xbf16>
    %c0_4 = arith.constant 0 : index
    %c0_5 = arith.constant 0 : index
    %5 = vector.load %arg2[%c0_4, %c0_5] : memref<128x128xbf16, #tpu.memory_space<vmem>>, vector<128x128xbf16>
    %cst = arith.constant dense<0.000000e+00> : vector<8x128xf32>
    %6 = tpu.matmul %4, %5, %cst {dimension_numbers = #tpu.dot_dimension_numbers<[1], [0], [0], [1], [0, 0, 1, 1], [], []>} : vector<8x128xbf16>, vector<128x128xbf16>, vector<8x128xf32> -> vector<8x128xf32>
    %7 = arith.addf %3, %6 : vector<8x128xf32>
    %c0_6 = arith.constant 0 : index
    %c0_7 = arith.constant 0 : index
    %8 = vector.load %arg5[%c0_6, %c0_7] : memref<8x128xf32, #tpu.memory_space<vmem>>, vector<8x128xf32>
    tpu.vector_store %arg5[%c0_6, %c0_7], %7 {strides = array<i32>} : memref<8x128xf32, #tpu.memory_space<vmem>>, vector<8x128xf32>,
    %c0_i32_8 = arith.constant 0 : i32
    %9 = arith.cmpi eq, %arg0, %c0_i32_8 : i32
    %10 = arith.extui %9 : i1 to i32
    %c0_i32_9 = arith.constant 0 : i32
    %11 = arith.cmpi ne, %10, %c0_i32_9 : i32
    scf.if %11 {
      %c0_10 = arith.constant 0 : index
      %c0_11 = arith.constant 0 : index
      %12 = vector.load %arg5[%c0_10, %c0_11] : memref<8x128xf32, #tpu.memory_space<vmem>>, vector<8x128xf32>
      %c0_12 = arith.constant 0 : index
      %c0_13 = arith.constant 0 : index
      %13 = vector.load %arg3[%c0_12, %c0_13] : memref<1x128xf32, #tpu.memory_space<vmem>>, vector<1x128xf32>
      %14 = vector.broadcast %13 : vector<1x128xf32> to vector<8x128xf32>
      %15 = arith.addf %12, %14 : vector<8x128xf32>
      %c0_14 = arith.constant 0 : index
      %c0_15 = arith.constant 0 : index
      %16 = vector.load %arg4[%c0_14, %c0_15] : memref<8x128xf32, #tpu.memory_space<vmem>>, vector<8x128xf32>
      tpu.vector_store %arg4[%c0_14, %c0_15], %15 {strides = array<i32>} : memref<8x128xf32, #tpu.memory_space<vmem>>, vector<8x128xf32>,
    } else {
    }
    return
  }
  func.func @transform_0(%arg0: i32) -> (i32, i32) {
    %c0_i32 = arith.constant 0 : i32
    %c0_i32_0 = arith.constant 0 : i32
    return %c0_i32, %arg0 : i32, i32
  }
  func.func @transform_1(%arg0: i32) -> (i32, i32) {
    %c0_i32 = arith.constant 0 : i32
    %c0_i32_0 = arith.constant 0 : i32
    return %arg0, %c0_i32 : i32, i32
  }
  func.func @transform_2(%arg0: i32) -> (i32, i32) {
    %c0_i32 = arith.constant 0 : i32
    %c0_i32_0 = arith.constant 0 : i32
    %c0_i32_1 = arith.constant 0 : i32
    return %c0_i32, %c0_i32_0 : i32, i32
  }
  func.func @transform_3(%arg0: i32) -> (i32, i32) {
    %c0_i32 = arith.constant 0 : i32
    %c0_i32_0 = arith.constant 0 : i32
    %c0_i32_1 = arith.constant 0 : i32
    return %c0_i32, %c0_i32_0 : i32, i32
  }
}

</mosaic_0001>

<llo_original>
// kernel: _lambda_.5
$region0: #{_lambda_.5}
  #allocation0 [shape = 'u32[]', space=smem, size = 0x4, offset = 0x4, fixed_abs, tag = 'smem constant byte address 0x4 - core index']
  #allocation1 [shape = 'u32[144,128]{1,0:T(1,128)}', space=vmem, size = 0x12000, scoped, tag = 'internal scratch']
  #allocation2 [shape = 'f32[8,128]{1,0:T(8,128)}', space=vmem, size = 0x1000, scoped, tag = 'scratch operand']
  %s0 = inlined_call_operand.vmem [shape: bf16[8,128], index: 0, kind: input, shape index: {}]
  %s1 = inlined_call_operand.vmem [shape: bf16[128,128], index: 1, kind: input, shape index: {}]
  %s2 = inlined_call_operand.vmem [shape: f32[1,128], index: 2, kind: input, shape index: {}]
  %s3 = inlined_call_operand.vmem [shape: f32[8,128], index: 3, kind: output, shape index: {}]
  %s4 = sld [smem:[#allocation0]]
  $region30: #{_lambda_.5} parent=0
    _
  %s6 = ssub.s32 1, %s4
  %s7 = scalar_select 0, %s6, %s4
  // Predicated region
  $region2: #{_lambda_.5} parent=0 // pred_check
    _
  $region3: #{_lambda_.5} parent=0 // pred_check_branch
    %9 = sbr.rel (0) target = $region5
  $region4: #{_lambda_.5} parent=0 // pred_region
    _
  $region5: #{_lambda_.5} parent=0 // pred_fallthru
    _
  // Predicated region
  $region6: #{_lambda_.5} parent=0 // pred_check
    _
  $region7: #{_lambda_.5} parent=0 // pred_check_branch
    %11 = sbr.rel (0) target = $region9
  $region8: #{_lambda_.5} parent=0 // pred_region
    _
  $region9: #{_lambda_.5} parent=0 // pred_fallthru
    _
  // Predicated region
  $region10: #{_lambda_.5} parent=0 // pred_check
    _
  $region11: #{_lambda_.5} parent=0 // pred_check_branch
    %13 = sbr.rel (0) target = $region13
  $region12: #{_lambda_.5} parent=0 // pred_region
    _
  $region13: #{_lambda_.5} parent=0 // pred_fallthru
    _
  %p15 = scmp.eq.s32.totalorder 0, 0
  // Predicated region
  $region14: #{_lambda_.5} parent=0 // pred_check
    %p16 = pneg %p15
  $region15: #{_lambda_.5} parent=0 // pred_check_branch
    %18 = sbr.rel (%p16) target = $region17
  $region16: #{_lambda_.5} parent=0 // pred_region
    %19 = vst [vmem:[#allocation2] sm:$0xff] 0.0
  $region17: #{_lambda_.5} parent=0 // pred_fallthru
    _
  %v20 = vld [vmem:[#allocation2] sm:$0xff]
  %v21 = vld [vmem:[%s0] sm:$0xf]
  %v22 = vld [vmem:[%s1] sm:$0xf]
  %v23 = vld [vmem:[%s1 + $0x4] sm:$0xf]
  %v24 = vld [vmem:[%s1 + $0x8] sm:$0xf]
  %v25 = vld [vmem:[%s1 + $0xc] sm:$0xf]
  %v26 = vld [vmem:[%s1 + $0x10] sm:$0xf]
  %v27 = vld [vmem:[%s1 + $0x14] sm:$0xf]
  %v28 = vld [vmem:[%s1 + $0x18] sm:$0xf]
  %v29 = vld [vmem:[%s1 + $0x1c] sm:$0xf]
  %v30 = vld [vmem:[%s1 + $0x20] sm:$0xf]
  %v31 = vld [vmem:[%s1 + $0x24] sm:$0xf]
  %v32 = vld [vmem:[%s1 + $0x28] sm:$0xf]
  %v33 = vld [vmem:[%s1 + $0x2c] sm:$0xf]
  %v34 = vld [vmem:[%s1 + $0x30] sm:$0xf]
  %v35 = vld [vmem:[%s1 + $0x34] sm:$0xf]
  %v36 = vld [vmem:[%s1 + $0x38] sm:$0xf]
  %v37 = vld [vmem:[%s1 + $0x3c] sm:$0xf]
  %v54 = vunpack.c.l.b16 %v22
  %v55 = vunpack.c.l.b16 %v23
  %v56 = vunpack.c.l.b16 %v24
  %v57 = vunpack.c.l.b16 %v25
  %v58 = vunpack.c.l.b16 %v26
  %v59 = vunpack.c.l.b16 %v27
  %v60 = vunpack.c.l.b16 %v28
  %v61 = vunpack.c.l.b16 %v29
  %v62 = vunpack.c.l.b16 %v30
  %v63 = vunpack.c.l.b16 %v31
  %v64 = vunpack.c.l.b16 %v32
  %v65 = vunpack.c.l.b16 %v33
  %v66 = vunpack.c.l.b16 %v34
  %v67 = vunpack.c.l.b16 %v35
  %v68 = vunpack.c.l.b16 %v36
  %v69 = vunpack.c.l.b16 %v37
  %v70 = vpack.c.b16 %v55, %v54
  %v71 = vpack.c.b16 %v57, %v56
  %v72 = vpack.c.b16 %v59, %v58
  %v73 = vpack.c.b16 %v61, %v60
  %v74 = vpack.c.b16 %v63, %v62
  %v75 = vpack.c.b16 %v65, %v64
  %v76 = vpack.c.b16 %v67, %v66
  %v77 = vpack.c.b16 %v69, %v68
  %86 = vmatprep.subr.bf16.mxu0 0
  %87 = vmatpush1.bf16.msra.mxu0 %v70
  %88 = vmatprep.subr.bf16.mxu0 0
  %89 = vmatpush1.bf16.msra.mxu0 %v71
  %90 = vmatprep.subr.bf16.mxu0 0
  %91 = vmatpush1.bf16.msra.mxu0 %v72
  %92 = vmatprep.subr.bf16.mxu0 0
  %93 = vmatpush1.bf16.msra.mxu0 %v73
  %94 = vmatprep.subr.bf16.mxu0 0
  %95 = vmatpush1.bf16.msra.mxu0 %v74
  %96 = vmatprep.subr.bf16.mxu0 0
  %97 = vmatpush1.bf16.msra.mxu0 %v75
  %98 = vmatprep.subr.bf16.mxu0 0
  %99 = vmatpush1.bf16.msra.mxu0 %v76
  %100 = vmatprep.subr.bf16.mxu0 0
  %101 = vmatpush1.bf16.msra.mxu0 %v77
  %102 = vmatprep.subr.bf16.mxu0 0
  %103 = vmatpush1.bf16.msra.mxu0 0
  %104 = vmatprep.subr.bf16.mxu0 0
  %105 = vmatpush1.bf16.msra.mxu0 0
  %106 = vmatprep.subr.bf16.mxu0 0
  %107 = vmatpush1.bf16.msra.mxu0 0
  %108 = vmatprep.subr.bf16.mxu0 0
  %109 = vmatpush1.bf16.msra.mxu0 0
  %110 = vmatprep.subr.bf16.mxu0 0
  %111 = vmatpush1.bf16.msra.mxu0 0
  %112 = vmatprep.subr.bf16.mxu0 0
  %113 = vmatpush1.bf16.msra.mxu0 0
  %114 = vmatprep.subr.bf16.mxu0 0
  %115 = vmatpush1.bf16.msra.mxu0 0
  %116 = vmatprep.subr.bf16.mxu0 0
  %117 = vmatpush1.bf16.msra.mxu0 0
  %118 = vmatprep.mubr.bf16.mxu0 0
  %119 = vmatmul.mubr.bf16.gmra.mrb[0].mxu0 %v21
  %v120 = vpop.f32.mrb[0].mxu0
  %v121 = vadd.f32 0.0, %v120
  %v122 = vpop.f32.mrb[0].mxu0
  %v123 = vpop.f32.mrb[0].mxu0
  %v124 = vpop.f32.mrb[0].mxu0
  %125 = vdwg.mxu0
  %v126 = vadd.f32 %v20, %v121
  %127 = vst [vmem:[#allocation2] sm:$0xff] %v126
  // Predicated region
  $region18: #{_lambda_.5} parent=0 // pred_check
    %p128 = pneg %p15
  $region19: #{_lambda_.5} parent=0 // pred_check_branch
    %130 = sbr.rel (%p128) target = $region21
  $region20: #{_lambda_.5} parent=0 // pred_region
    %v131 = vld [vmem:[#allocation2] sm:$0xff]
    %v132 = vld [vmem:[%s2] sm:$0x1]
    %v134 = vlaneseq
    %v135 = vshrl.u32 %v134, 7
    %v136 = vsub.s32 0, %v135
    %v137 = vrot.slane %v132, %v136
    %v139 = vadd.f32 %v131, %v137
    %140 = vst [vmem:[%s3] sm:$0xff] %v139
  $region21: #{_lambda_.5} parent=0 // pred_fallthru
    _
  // Predicated region
  $region22: #{_lambda_.5} parent=0 // pred_check
    _
  $region23: #{_lambda_.5} parent=0 // pred_check_branch
    %142 = sbr.rel (0) target = $region25
  $region24: #{_lambda_.5} parent=0 // pred_region
    _
  $region25: #{_lambda_.5} parent=0 // pred_fallthru
    _
  // Predicated region
  $region26: #{_lambda_.5} parent=0 // pred_check
    _
  $region27: #{_lambda_.5} parent=0 // pred_check_branch
    %144 = sbr.rel (0) target = $region29
  $region28: #{_lambda_.5} parent=0 // pred_region
    _
  $region29: #{_lambda_.5} parent=0 // pred_fallthru
    _

// kernel: _lambda_.4
$region0: #{_lambda_.4}
  #allocation0 [shape = 'u32[]', space=smem, size = 0x4, offset = 0x4, fixed_abs, tag = 'smem constant byte address 0x4 - core index']
  #allocation1 [shape = 'u32[144,128]{1,0:T(1,128)}', space=vmem, size = 0x12000, scoped, tag = 'internal scratch']
  #allocation2 [shape = 'f32[8,768]{1,0:T(8,128)}', space=vmem, size = 0x6000, scoped, tag = 'scratch operand']
  #allocation3 [shape = 's32[1]{0}', space=sflag, size = 0x4, scoped, tag = 'scoped memory for _lambda_.4']
  #allocation4 [shape = 'u8[512]{0}', space=smem, size = 0x200, scoped, tag = 'prefetched SMEM operand 0']
  %s0 = inlined_call_operand.vmem [shape: s32[48], index: 0, kind: input, shape index: {}]
  %s1 = inlined_call_operand.vmem [shape: f32[2,16,128], index: 1, kind: input, shape index: {}]
  %s2 = inlined_call_operand.vmem [shape: bf16[768,128], index: 2, kind: input, shape index: {}]
  %s3 = inlined_call_operand.vmem [shape: f32[1,128], index: 3, kind: input, shape index: {}]
  %s4 = inlined_call_operand.vmem [shape: f32[2,8,128], index: 4, kind: output, shape index: {}]
  %s5 = sld [smem:[#allocation0]]
  $region45: #{_lambda_.4} parent=0
    _
  %s7 = ssub.s32 1, %s5
  %s8 = scalar_select 0, %s7, %s5
  %s9 = sshll.u32 %s0, 4
  %s10 = int_to_ptr.vmem [resolvable:$true] %s9
  %12 = dma.vmem_to_smem %s10, 16, [#allocation4], [#allocation3]
  %13 = dma.done [#allocation3], 16
  %14 = sfence
  loop: start=0, step=1, limit=4
  $region2: #{_lambda_.4} parent=0 // loop_pre_header
    _
  $region3: #{_lambda_.4} parent=0 // loop_header
    %s16 = sphi 0, %s20
    %p17 = scmp.ge.s32.totalorder %s16, 4
    %s23 = sphi 0, %s35
    %s24 = sphi 0, %s31
    %s25 = sphi 0, %s23
    %s26 = sphi 0, %s24
    %s27 = sphi 0, %s25
    %s28 = sphi 0, %s26
    %s38 = sphi 0, %s40
    %s41 = sphi 0, %s38
    %s42 = sphi 0, %s41
    %s58 = sphi 0, %s42
    %s62 = sphi 0, %s62
    %s64 = sphi 0, %s62
    %s65 = sphi 0, %s64
    %s79 = sphi 0, %s65
    %s83 = sphi 0, %s83
    %s85 = sphi 0, %s83
    %s86 = sphi 0, %s85
    %s100 = sphi 0, %s86
    %s108 = sphi 0, %s110
    %s111 = sphi 0, %s108
    %s112 = sphi 0, %s111
    %s128 = sphi 0, %s112
  $region4: #{_lambda_.4} parent=0 // loop_header_branch
    %19 = sbr.rel (%p17) target = $region8
  $region5: #{_lambda_.4} parent=0 // loop_body
    %s21 = ssub.s32 %s16, 1
    %s22 = ssub.s32 %s16, 2
    %s29 = sadd.s32 1, %s24
    %p30 = scmp.ge.s32.totalorder %s29, 1
    %s31 = scalar_select %p30, 0, %s29
    %s32 = sadd.s32 1, %s23
    %s33 = scalar_select %p30, %s32, %s23
    %p34 = scmp.ge.s32.totalorder %s33, 2
    %s35 = scalar_select %p34, 0, %s33
    %s36 = ssub.s32 %s23, %s35
    %p37 = scmp.eq.s32.totalorder %s36, 0
    %s39 = sadd.s32 %s38, 1
    %s40 = scalar_select %p37, %s38, %s39
    %p43 = pneg %p37
    %p44 = scmp.eq.s32.totalorder %s16, 1
    %p45 = por %p43, %p44
    %p46 = scmp.ne.s32.totalorder %s38, %s41
    %p47 = scmp.eq.s32.totalorder %s16, 0
    %p48 = por %p46, %p47
    %p49 = scmp.ne.s32.totalorder %s38, %s41
    %p50 = scmp.eq.s32.totalorder %s21, 1
    %p51 = por %p49, %p50
    %p52 = scmp.ne.s32.totalorder %s41, %s42
    %p53 = scmp.eq.s32.totalorder %s21, 0
    %p54 = por %p52, %p53
    %p55 = scmp.ne.s32.totalorder %s41, %s42
    %p56 = scmp.eq.s32.totalorder %s22, 1
    %p57 = por %p55, %p56
    %p59 = scmp.ne.s32.totalorder %s42, %s58
    %p60 = scmp.eq.s32.totalorder %s22, 0
    %p61 = por %p59, %p60
    %s63 = sadd.s32 %s62, 1
    %p66 = scmp.eq.s32.totalorder %s16, 1
    %p67 = scmp.ne.s32.totalorder %s62, %s64
    %p68 = scmp.eq.s32.totalorder %s16, 0
    %p69 = por %p67, %p68
    %p70 = scmp.ne.s32.totalorder %s62, %s64
    %p71 = scmp.eq.s32.totalorder %s21, 1
    %p72 = por %p70, %p71
    %p73 = scmp.ne.s32.totalorder %s64, %s65
    %p74 = scmp.eq.s32.totalorder %s21, 0
    %p75 = por %p73, %p74
    %p76 = scmp.ne.s32.totalorder %s64, %s65
    %p77 = scmp.eq.s32.totalorder %s22, 1
    %p78 = por %p76, %p77
    %p80 = scmp.ne.s32.totalorder %s65, %s79
    %p81 = scmp.eq.s32.totalorder %s22, 0
    %p82 = por %p80, %p81
    %s84 = sadd.s32 %s83, 1
    %p87 = scmp.eq.s32.totalorder %s16, 1
    %p88 = scmp.ne.s32.totalorder %s83, %s85
    %p89 = scmp.eq.s32.totalorder %s16, 0
    %p90 = por %p88, %p89
    %p91 = scmp.ne.s32.totalorder %s83, %s85
    %p92 = scmp.eq.s32.totalorder %s21, 1
    %p93 = por %p91, %p92
    %p94 = scmp.ne.s32.totalorder %s85, %s86
    %p95 = scmp.eq.s32.totalorder %s21, 0
    %p96 = por %p94, %p95
    %p97 = scmp.ne.s32.totalorder %s85, %s86
    %p98 = scmp.eq.s32.totalorder %s22, 1
    %p99 = por %p97, %p98
    %p101 = scmp.ne.s32.totalorder %s86, %s100
    %p102 = scmp.eq.s32.totalorder %s22, 0
    %p103 = por %p101, %p102
    %s104 = ssub.s32 %s23, %s35
    %s105 = ssub.s32 %s24, %s31
    %s106 = sor.u32 %s104, %s105
    %p107 = scmp.eq.s32.totalorder %s106, 0
    %s109 = sadd.s32 %s108, 1
    %s110 = scalar_select %p107, %s108, %s109
    %p113 = pneg %p107
    %p114 = scmp.eq.s32.totalorder %s16, 1
    %p115 = por %p113, %p114
    %p116 = scmp.ne.s32.totalorder %s108, %s111
    %p117 = scmp.eq.s32.totalorder %s16, 0
    %p118 = por %p116, %p117
    %p119 = scmp.ne.s32.totalorder %s108, %s111
    %p120 = scmp.eq.s32.totalorder %s21, 1
    %p121 = por %p119, %p120
    %p122 = scmp.ne.s32.totalorder %s111, %s112
    %p123 = scmp.eq.s32.totalorder %s21, 0
    %p124 = por %p122, %p123
    %p125 = scmp.ne.s32.totalorder %s111, %s112
    %p126 = scmp.eq.s32.totalorder %s22, 1
    %p127 = por %p125, %p126
    %p129 = scmp.ne.s32.totalorder %s112, %s128
    %p130 = scmp.eq.s32.totalorder %s22, 0
    %p131 = por %p129, %p130
    %p132 = scmp.le.s32.totalorder 1, %s16
    %p133 = scmp.lt.s32.totalorder %s16, 3
    %p134 = pnand %p132, %p133
    %p135 = pneg %p134
    // Predicated region
    $region9: #{_lambda_.4} parent=5 // pred_check
      _
    $region10: #{_lambda_.4} parent=5 // pred_check_branch
      %137 = sbr.rel (%p134) target = $region12
    $region11: #{_lambda_.4} parent=5 // pred_region
      %s138 = ssub.s32 %s16, 1
      // Predicated region
      $region13: #{_lambda_.4} parent=11 // pred_check
        %p139 = pneg %p75
      $region14: #{_lambda_.4} parent=11 // pred_check_branch
        %141 = sbr.rel (%p139) target = $region16
      $region15: #{_lambda_.4} parent=11 // pred_region
        _
      $region16: #{_lambda_.4} parent=11 // pred_fallthru
        _
      // Predicated region
      $region17: #{_lambda_.4} parent=11 // pred_check
        %p142 = pneg %p96
      $region18: #{_lambda_.4} parent=11 // pred_check_branch
        %144 = sbr.rel (%p142) target = $region20
      $region19: #{_lambda_.4} parent=11 // pred_region
        _
      $region20: #{_lambda_.4} parent=11 // pred_fallthru
        _
    $region12: #{_lambda_.4} parent=5 // pred_fallthru
      _
    %p145 = scmp.lt.s32.totalorder %s16, 2
    // Predicated region
    $region21: #{_lambda_.4} parent=5 // pred_check
      %p146 = pneg %p145
    $region22: #{_lambda_.4} parent=5 // pred_check_branch
      %148 = sbr.rel (%p146) target = $region24
    $region23: #{_lambda_.4} parent=5 // pred_region
      // Predicated region
      $region25: #{_lambda_.4} parent=23 // pred_check
        %p149 = pneg %p48
      $region26: #{_lambda_.4} parent=23 // pred_check_branch
        %151 = sbr.rel (%p149) target = $region28
      $region27: #{_lambda_.4} parent=23 // pred_region
        %p152 = scmp.lt.s32.totalorder %s23, 1
        %s153 = scalar_select %p152, %s23, 1
        %s154 = smul.addr %s153, 2
        %s155 = smul.addr %s154, 8
        %s156 = scalar_lea.vmem %s1, %s155
      $region28: #{_lambda_.4} parent=23 // pred_fallthru
        _
    $region24: #{_lambda_.4} parent=5 // pred_fallthru
      _
    %p157 = scmp.le.s32.totalorder 1, %s16
    %p158 = scmp.lt.s32.totalorder %s16, 3
    %p159 = pnand %p157, %p158
    %p160 = pneg %p159
    // Predicated region
    $region29: #{_lambda_.4} parent=5 // pred_check
      _
    $region30: #{_lambda_.4} parent=5 // pred_check_branch
      %162 = sbr.rel (%p159) target = $region32
    $region31: #{_lambda_.4} parent=5 // pred_region
      %s163 = ssub.s32 %s16, 1
      %p164 = scmp.lt.s32.totalorder %s25, 1
      %s165 = scalar_select %p164, %s25, 1
      %s166 = smul.addr %s165, 2
      %s167 = smul.addr %s166, 8
      %s168 = scalar_lea.vmem %s1, %s167
      %p169 = pneg %p54
      %p170 = pneg %p51
      %p171 = pneg %p75
      %p172 = pneg %p72
      %p173 = pneg %p96
      %p174 = pneg %p93
      %p175 = pneg %p124
      %p176 = pneg %p121
      %p177 = scmp.lt.s32.totalorder %s25, 1
      %s178 = scalar_select %p177, %s25, 1
      %p179 = scmp.lt.s32.totalorder %s26, 0
      %s180 = scalar_select %p179, %s26, 0
      %s181 = sadd.s32 %s180, %s178
      %s182 = smul.addr %s181, 8
      %s183 = scalar_lea.vmem %s4, %s182
      %p184 = scmp.lt.s32.totalorder %s25, 1
      %s185 = scalar_select %p184, %s25, 1
      %s186 = smul.addr %s185, 2
      %s187 = smul.addr %s186, 8
      %s188 = scalar_lea.vmem %s1, %s187
      %p189 = scmp.lt.s32.totalorder %s25, 1
      %s190 = scalar_select %p189, %s25, 1
      %p191 = scmp.lt.s32.totalorder %s26, 0
      %s192 = scalar_select %p191, %s26, 0
      %s193 = sadd.s32 %s192, %s190
      %s194 = smul.addr %s193, 8
      %s195 = scalar_lea.vmem %s4, %s194
      %s197 = smul.u32 %s26, 48
      %s198 = sld [smem:[#allocation4 + %s197]]
      %s199 = scalar_lea.vmem %s188, %s198
      %v200 = vld [vmem:[%s199] sm:$0x1]
      %201 = vst [vmem:[#allocation2] sm:$0x1] %v200
      %s202 = sadd.s32 %s197, 1
      %s203 = sld [smem:[#allocation4 + %s202]]
      %s204 = scalar_lea.vmem %s188, %s203
      %v205 = vld [vmem:[%s204] sm:$0x1]
      %206 = vst [vmem:[#allocation2 + $0x8] sm:$0x1] %v205
      %s207 = sadd.s32 %s197, 2
      %s208 = sld [smem:[#allocation4 + %s207]]
      %s209 = scalar_lea.vmem %s188, %s208
      %v210 = vld [vmem:[%s209] sm:$0x1]
      %211 = vst [vmem:[#allocation2 + $0x10] sm:$0x1] %v210
      %s212 = sadd.s32 %s197, 3
      %s213 = sld [smem:[#allocation4 + %s212]]
      %s214 = scalar_lea.vmem %s188, %s213
      %v215 = vld [vmem:[%s214] sm:$0x1]
      %216 = vst [vmem:[#allocation2 + $0x18] sm:$0x1] %v215
      %s217 = sadd.s32 %s197, 4
      %s218 = sld [smem:[#allocation4 + %s217]]
      %s219 = scalar_lea.vmem %s188, %s218
      %v220 = vld [vmem:[%s219] sm:$0x1]
      %221 = vst [vmem:[#allocation2 + $0x20] sm:$0x1] %v220
      %s222 = sadd.s32 %s197, 5
      %s223 = sld [smem:[#allocation4 + %s222]]
      %s224 = scalar_lea.vmem %s188, %s223
      %v225 = vld [vmem:[%s224] sm:$0x1]
      %226 = vst [vmem:[#allocation2 + $0x28] sm:$0x1] %v225
      %s227 = sadd.s32 %s197, 6
      %s228 = sld [smem:[#allocation4 + %s227]]
      %s229 = scalar_lea.vmem %s188, %s228
      %v230 = vld [vmem:[%s229] sm:$0x1]
      %231 = vst [vmem:[#allocation2 + $0x1] sm:$0x1] %v230
      %s232 = sadd.s32 %s197, 7
      %s233 = sld [smem:[#allocation4 + %s232]]
      %s234 = scalar_lea.vmem %s188, %s233
      %v235 = vld [vmem:[%s234] sm:$0x1]
      %236 = vst [vmem:[#allocation2 + $0x9] sm:$0x1] %v235
      %s237 = sadd.s32 %s197, 8
      %s238 = sld [smem:[#allocation4 + %s237]]
      %s239 = scalar_lea.vmem %s188, %s238
      %v240 = vld [vmem:[%s239] sm:$0x1]
      %241 = vst [vmem:[#allocation2 + $0x11] sm:$0x1] %v240
      %s242 = sadd.s32 %s197, 9
      %s243 = sld [smem:[#allocation4 + %s242]]
      %s244 = scalar_lea.vmem %s188, %s243
      %v245 = vld [vmem:[%s244] sm:$0x1]
      %246 = vst [vmem:[#allocation2 + $0x19] sm:$0x1] %v245
      %s247 = sadd.s32 %s197, 10
      %s248 = sld [smem:[#allocation4 + %s247]]
      %s249 = scalar_lea.vmem %s188, %s248
      %v250 = vld [vmem:[%s249] sm:$0x1]
      %251 = vst [vmem:[#allocation2 + $0x21] sm:$0x1] %v250
      %s252 = sadd.s32 %s197, 11
      %s253 = sld [smem:[#allocation4 + %s252]]
      %s254 = scalar_lea.vmem %s188, %s253
      %v255 = vld [vmem:[%s254] sm:$0x1]
      %256 = vst [vmem:[#allocation2 + $0x29] sm:$0x1] %v255
      %s257 = sadd.s32 %s197, 12
      %s258 = sld [smem:[#allocation4 + %s257]]
      %s259 = scalar_lea.vmem %s188, %s258
      %v260 = vld [vmem:[%s259] sm:$0x1]
      %261 = vst [vmem:[#allocation2 + $0x2] sm:$0x1] %v260
      %s262 = sadd.s32 %s197, 13
      %s263 = sld [smem:[#allocation4 + %s262]]
      %s264 = scalar_lea.vmem %s188, %s263
      %v265 = vld [vmem:[%s264] sm:$0x1]
      %266 = vst [vmem:[#allocation2 + $0xa] sm:$0x1] %v265
      %s267 = sadd.s32 %s197, 14
      %s268 = sld [smem:[#allocation4 + %s267]]
      %s269 = scalar_lea.vmem %s188, %s268
      %v270 = vld [vmem:[%s269] sm:$0x1]
      %271 = vst [vmem:[#allocation2 + $0x12] sm:$0x1] %v270
      %s272 = sadd.s32 %s197, 15
      %s273 = sld [smem:[#allocation4 + %s272]]
      %s274 = scalar_lea.vmem %s188, %s273
      %v275 = vld [vmem:[%s274] sm:$0x1]
      %276 = vst [vmem:[#allocation2 + $0x1a] sm:$0x1] %v275
      %s277 = sadd.s32 %s197, 16
      %s278 = sld [smem:[#allocation4 + %s277]]
      %s279 = scalar_lea.vmem %s188, %s278
      %v280 = vld [vmem:[%s279] sm:$0x1]
      %281 = vst [vmem:[#allocation2 + $0x22] sm:$0x1] %v280
      %s282 = sadd.s32 %s197, 17
      %s283 = sld [smem:[#allocation4 + %s282]]
      %s284 = scalar_lea.vmem %s188, %s283
      %v285 = vld [vmem:[%s284] sm:$0x1]
      %286 = vst [vmem:[#allocation2 + $0x2a] sm:$0x1] %v285
      %s287 = sadd.s32 %s197, 18
      %s288 = sld [smem:[#allocation4 + %s287]]
      %s289 = scalar_lea.vmem %s188, %s288
      %v290 = vld [vmem:[%s289] sm:$0x1]
      %291 = vst [vmem:[#allocation2 + $0x3] sm:$0x1] %v290
      %s292 = sadd.s32 %s197, 19
      %s293 = sld [smem:[#allocation4 + %s292]]
      %s294 = scalar_lea.vmem %s188, %s293
      %v295 = vld [vmem:[%s294] sm:$0x1]
      %296 = vst [vmem:[#allocation2 + $0xb] sm:$0x1] %v295
      %s297 = sadd.s32 %s197, 20
      %s298 = sld [smem:[#allocation4 + %s297]]
      %s299 = scalar_lea.vmem %s188, %s298
      %v300 = vld [vmem:[%s299] sm:$0x1]
      %301 = vst [vmem:[#allocation2 + $0x13] sm:$0x1] %v300
      %s302 = sadd.s32 %s197, 21
      %s303 = sld [smem:[#allocation4 + %s302]]
      %s304 = scalar_lea.vmem %s188, %s303
      %v305 = vld [vmem:[%s304] sm:$0x1]
      %306 = vst [vmem:[#allocation2 + $0x1b] sm:$0x1] %v305
      %s307 = sadd.s32 %s197, 22
      %s308 = sld [smem:[#allocation4 + %s307]]
      %s309 = scalar_lea.vmem %s188, %s308
      %v310 = vld [vmem:[%s309] sm:$0x1]
      %311 = vst [vmem:[#allocation2 + $0x23] sm:$0x1] %v310
      %s312 = sadd.s32 %s197, 23
      %s313 = sld [smem:[#allocation4 + %s312]]
      %s314 = scalar_lea.vmem %s188, %s313
      %v315 = vld [vmem:[%s314] sm:$0x1]
      %316 = vst [vmem:[#allocation2 + $0x2b] sm:$0x1] %v315
      %s317 = sadd.s32 %s197, 24
      %s318 = sld [smem:[#allocation4 + %s317]]
      %s319 = scalar_lea.vmem %s188, %s318
      %v320 = vld [vmem:[%s319] sm:$0x1]
      %321 = vst [vmem:[#allocation2 + $0x4] sm:$0x1] %v320
      %s322 = sadd.s32 %s197, 25
      %s323 = sld [smem:[#allocation4 + %s322]]
      %s324 = scalar_lea.vmem %s188, %s323
      %v325 = vld [vmem:[%s324] sm:$0x1]
      %326 = vst [vmem:[#allocation2 + $0xc] sm:$0x1] %v325
      %s327 = sadd.s32 %s197, 26
      %s328 = sld [smem:[#allocation4 + %s327]]
      %s329 = scalar_lea.vmem %s188, %s328
      %v330 = vld [vmem:[%s329] sm:$0x1]
      %331 = vst [vmem:[#allocation2 + $0x14] sm:$0x1] %v330
      %s332 = sadd.s32 %s197, 27
      %s333 = sld [smem:[#allocation4 + %s332]]
      %s334 = scalar_lea.vmem %s188, %s333
      %v335 = vld [vmem:[%s334] sm:$0x1]
      %336 = vst [vmem:[#allocation2 + $0x1c] sm:$0x1] %v335
      %s337 = sadd.s32 %s197, 28
      %s338 = sld [smem:[#allocation4 + %s337]]
      %s339 = scalar_lea.vmem %s188, %s338
      %v340 = vld [vmem:[%s339] sm:$0x1]
      %341 = vst [vmem:[#allocation2 + $0x24] sm:$0x1] %v340
      %s342 = sadd.s32 %s197, 29
      %s343 = sld [smem:[#allocation4 + %s342]]
      %s344 = scalar_lea.vmem %s188, %s343
      %v345 = vld [vmem:[%s344] sm:$0x1]
      %346 = vst [vmem:[#allocation2 + $0x2c] sm:$0x1] %v345
      %s347 = sadd.s32 %s197, 30
      %s348 = sld [smem:[#allocation4 + %s347]]
      %s349 = scalar_lea.vmem %s188, %s348
      %v350 = vld [vmem:[%s349] sm:$0x1]
      %351 = vst [vmem:[#allocation2 + $0x5] sm:$0x1] %v350
      %s352 = sadd.s32 %s197, 31
      %s353 = sld [smem:[#allocation4 + %s352]]
      %s354 = scalar_lea.vmem %s188, %s353
      %v355 = vld [vmem:[%s354] sm:$0x1]
      %356 = vst [vmem:[#allocation2 + $0xd] sm:$0x1] %v355
      %s357 = sadd.s32 %s197, 32
      %s358 = sld [smem:[#allocation4 + %s357]]
      %s359 = scalar_lea.vmem %s188, %s358
      %v360 = vld [vmem:[%s359] sm:$0x1]
      %361 = vst [vmem:[#allocation2 + $0x15] sm:$0x1] %v360
      %s362 = sadd.s32 %s197, 33
      %s363 = sld [smem:[#allocation4 + %s362]]
      %s364 = scalar_lea.vmem %s188, %s363
      %v365 = vld [vmem:[%s364] sm:$0x1]
      %366 = vst [vmem:[#allocation2 + $0x1d] sm:$0x1] %v365
      %s367 = sadd.s32 %s197, 34
      %s368 = sld [smem:[#allocation4 + %s367]]
      %s369 = scalar_lea.vmem %s188, %s368
      %v370 = vld [vmem:[%s369] sm:$0x1]
      %371 = vst [vmem:[#allocation2 + $0x25] sm:$0x1] %v370
      %s372 = sadd.s32 %s197, 35
      %s373 = sld [smem:[#allocation4 + %s372]]
      %s374 = scalar_lea.vmem %s188, %s373
      %v375 = vld [vmem:[%s374] sm:$0x1]
      %376 = vst [vmem:[#allocation2 + $0x2d] sm:$0x1] %v375
      %s377 = sadd.s32 %s197, 36
      %s378 = sld [smem:[#allocation4 + %s377]]
      %s379 = scalar_lea.vmem %s188, %s378
      %v380 = vld [vmem:[%s379] sm:$0x1]
      %381 = vst [vmem:[#allocation2 + $0x6] sm:$0x1] %v380
      %s382 = sadd.s32 %s197, 37
      %s383 = sld [smem:[#allocation4 + %s382]]
      %s384 = scalar_lea.vmem %s188, %s383
      %v385 = vld [vmem:[%s384] sm:$0x1]
      %386 = vst [vmem:[#allocation2 + $0xe] sm:$0x1] %v385
      %s387 = sadd.s32 %s197, 38
      %s388 = sld [smem:[#allocation4 + %s387]]
      %s389 = scalar_lea.vmem %s188, %s388
      %v390 = vld [vmem:[%s389] sm:$0x1]
      %391 = vst [vmem:[#allocation2 + $0x16] sm:$0x1] %v390
      %s392 = sadd.s32 %s197, 39
      %s393 = sld [smem:[#allocation4 + %s392]]
      %s394 = scalar_lea.vmem %s188, %s393
      %v395 = vld [vmem:[%s394] sm:$0x1]
      %396 = vst [vmem:[#allocation2 + $0x1e] sm:$0x1] %v395
      %s397 = sadd.s32 %s197, 40
      %s398 = sld [smem:[#allocation4 + %s397]]
      %s399 = scalar_lea.vmem %s188, %s398
      %v400 = vld [vmem:[%s399] sm:$0x1]
      %401 = vst [vmem:[#allocation2 + $0x26] sm:$0x1] %v400
      %s402 = sadd.s32 %s197, 41
      %s403 = sld [smem:[#allocation4 + %s402]]
      %s404 = scalar_lea.vmem %s188, %s403
      %v405 = vld [vmem:[%s404] sm:$0x1]
      %406 = vst [vmem:[#allocation2 + $0x2e] sm:$0x1] %v405
      %s407 = sadd.s32 %s197, 42
      %s408 = sld [smem:[#allocation4 + %s407]]
      %s409 = scalar_lea.vmem %s188, %s408
      %v410 = vld [vmem:[%s409] sm:$0x1]
      %411 = vst [vmem:[#allocation2 + $0x7] sm:$0x1] %v410
      %s412 = sadd.s32 %s197, 43
      %s413 = sld [smem:[#allocation4 + %s412]]
      %s414 = scalar_lea.vmem %s188, %s413
      %v415 = vld [vmem:[%s414] sm:$0x1]
      %416 = vst [vmem:[#allocation2 + $0xf] sm:$0x1] %v415
      %s417 = sadd.s32 %s197, 44
      %s418 = sld [smem:[#allocation4 + %s417]]
      %s419 = scalar_lea.vmem %s188, %s418
      %v420 = vld [vmem:[%s419] sm:$0x1]
      %421 = vst [vmem:[#allocation2 + $0x17] sm:$0x1] %v420
      %s422 = sadd.s32 %s197, 45
      %s423 = sld [smem:[#allocation4 + %s422]]
      %s424 = scalar_lea.vmem %s188, %s423
      %v425 = vld [vmem:[%s424] sm:$0x1]
      %426 = vst [vmem:[#allocation2 + $0x1f] sm:$0x1] %v425
      %s427 = sadd.s32 %s197, 46
      %s428 = sld [smem:[#allocation4 + %s427]]
      %s429 = scalar_lea.vmem %s188, %s428
      %v430 = vld [vmem:[%s429] sm:$0x1]
      %431 = vst [vmem:[#allocation2 + $0x27] sm:$0x1] %v430
      %s432 = sadd.s32 %s197, 47
      %s433 = sld [smem:[#allocation4 + %s432]]
      %s434 = scalar_lea.vmem %s188, %s433
      %v435 = vld [vmem:[%s434] sm:$0x1]
      %436 = vst [vmem:[#allocation2 + $0x2f] sm:$0x1] %v435
      %v437 = vld [vmem:[#allocation2] sm:$0xff]
      %v438 = vld [vmem:[#allocation2 + $0x8] sm:$0xff]
      %v439 = vld [vmem:[#allocation2 + $0x10] sm:$0xff]
      %v440 = vld [vmem:[#allocation2 + $0x18] sm:$0xff]
      %v441 = vld [vmem:[#allocation2 + $0x20] sm:$0xff]
      %v442 = vld [vmem:[#allocation2 + $0x28] sm:$0xff]
      %v443 = vpack.c.bf16 %v437, %v437
      %v444 = vpack.c.bf16 %v438, %v438
      %v445 = vpack.c.bf16 %v439, %v439
      %v446 = vpack.c.bf16 %v440, %v440
      %v447 = vpack.c.bf16 %v441, %v441
      %v448 = vpack.c.bf16 %v442, %v442
      %v449 = vld [vmem:[%s2] sm:$0xf]
      %v450 = vld [vmem:[%s2 + $0x4] sm:$0xf]
      %v451 = vld [vmem:[%s2 + $0x8] sm:$0xf]
      %v452 = vld [vmem:[%s2 + $0xc] sm:$0xf]
      %v453 = vld [vmem:[%s2 + $0x10] sm:$0xf]
      %v454 = vld [vmem:[%s2 + $0x14] sm:$0xf]
      %v455 = vld [vmem:[%s2 + $0x18] sm:$0xf]
      %v456 = vld [vmem:[%s2 + $0x1c] sm:$0xf]
      %v457 = vld [vmem:[%s2 + $0x20] sm:$0xf]
      %v458 = vld [vmem:[%s2 + $0x24] sm:$0xf]
      %v459 = vld [vmem:[%s2 + $0x28] sm:$0xf]
      %v460 = vld [vmem:[%s2 + $0x2c] sm:$0xf]
      %v461 = vld [vmem:[%s2 + $0x30] sm:$0xf]
      %v462 = vld [vmem:[%s2 + $0x34] sm:$0xf]
      %v463 = vld [vmem:[%s2 + $0x38] sm:$0xf]
      %v464 = vld [vmem:[%s2 + $0x3c] sm:$0xf]
      %v465 = vld [vmem:[%s2 + $0x40] sm:$0xf]
      %v466 = vld [vmem:[%s2 + $0x44] sm:$0xf]
      %v467 = vld [vmem:[%s2 + $0x48] sm:$0xf]
      %v468 = vld [vmem:[%s2 + $0x4c] sm:$0xf]
      %v469 = vld [vmem:[%s2 + $0x50] sm:$0xf]
      %v470 = vld [vmem:[%s2 + $0x54] sm:$0xf]
      %v471 = vld [vmem:[%s2 + $0x58] sm:$0xf]
      %v472 = vld [vmem:[%s2 + $0x5c] sm:$0xf]
      %v473 = vld [vmem:[%s2 + $0x60] sm:$0xf]
      %v474 = vld [vmem:[%s2 + $0x64] sm:$0xf]
      %v475 = vld [vmem:[%s2 + $0x68] sm:$0xf]
      %v476 = vld [vmem:[%s2 + $0x6c] sm:$0xf]
      %v477 = vld [vmem:[%s2 + $0x70] sm:$0xf]
      %v478 = vld [vmem:[%s2 + $0x74] sm:$0xf]
      %v479 = vld [vmem:[%s2 + $0x78] sm:$0xf]
      %v480 = vld [vmem:[%s2 + $0x7c] sm:$0xf]
      %v481 = vld [vmem:[%s2 + $0x80] sm:$0xf]
      %v482 = vld [vmem:[%s2 + $0x84] sm:$0xf]
      %v483 = vld [vmem:[%s2 + $0x88] sm:$0xf]
      %v484 = vld [vmem:[%s2 + $0x8c] sm:$0xf]
      %v485 = vld [vmem:[%s2 + $0x90] sm:$0xf]
      %v486 = vld [vmem:[%s2 + $0x94] sm:$0xf]
      %v487 = vld [vmem:[%s2 + $0x98] sm:$0xf]
      %v488 = vld [vmem:[%s2 + $0x9c] sm:$0xf]
      %v489 = vld [vmem:[%s2 + $0xa0] sm:$0xf]
      %v490 = vld [vmem:[%s2 + $0xa4] sm:$0xf]
      %v491 = vld [vmem:[%s2 + $0xa8] sm:$0xf]
      %v492 = vld [vmem:[%s2 + $0xac] sm:$0xf]
      %v493 = vld [vmem:[%s2 + $0xb0] sm:$0xf]
      %v494 = vld [vmem:[%s2 + $0xb4] sm:$0xf]
      %v495 = vld [vmem:[%s2 + $0xb8] sm:$0xf]
      %v496 = vld [vmem:[%s2 + $0xbc] sm:$0xf]
      %v497 = vld [vmem:[%s2 + $0xc0] sm:$0xf]
      %v498 = vld [vmem:[%s2 + $0xc4] sm:$0xf]
      %v499 = vld [vmem:[%s2 + $0xc8] sm:$0xf]
      %v500 = vld [vmem:[%s2 + $0xcc] sm:$0xf]
      %v501 = vld [vmem:[%s2 + $0xd0] sm:$0xf]
      %v502 = vld [vmem:[%s2 + $0xd4] sm:$0xf]
      %v503 = vld [vmem:[%s2 + $0xd8] sm:$0xf]
      %v504 = vld [vmem:[%s2 + $0xdc] sm:$0xf]
      %v505 = vld [vmem:[%s2 + $0xe0] sm:$0xf]
      %v506 = vld [vmem:[%s2 + $0xe4] sm:$0xf]
      %v507 = vld [vmem:[%s2 + $0xe8] sm:$0xf]
      %v508 = vld [vmem:[%s2 + $0xec] sm:$0xf]
      %v509 = vld [vmem:[%s2 + $0xf0] sm:$0xf]
      %v510 = vld [vmem:[%s2 + $0xf4] sm:$0xf]
      %v511 = vld [vmem:[%s2 + $0xf8] sm:$0xf]
      %v512 = vld [vmem:[%s2 + $0xfc] sm:$0xf]
      %v513 = vld [vmem:[%s2 + $0x100] sm:$0xf]
      %v514 = vld [vmem:[%s2 + $0x104] sm:$0xf]
      %v515 = vld [vmem:[%s2 + $0x108] sm:$0xf]
      %v516 = vld [vmem:[%s2 + $0x10c] sm:$0xf]
      %v517 = vld [vmem:[%s2 + $0x110] sm:$0xf]
      %v518 = vld [vmem:[%s2 + $0x114] sm:$0xf]
      %v519 = vld [vmem:[%s2 + $0x118] sm:$0xf]
      %v520 = vld [vmem:[%s2 + $0x11c] sm:$0xf]
      %v521 = vld [vmem:[%s2 + $0x120] sm:$0xf]
      %v522 = vld [vmem:[%s2 + $0x124] sm:$0xf]
      %v523 = vld [vmem:[%s2 + $0x128] sm:$0xf]
      %v524 = vld [vmem:[%s2 + $0x12c] sm:$0xf]
      %v525 = vld [vmem:[%s2 + $0x130] sm:$0xf]
      %v526 = vld [vmem:[%s2 + $0x134] sm:$0xf]
      %v527 = vld [vmem:[%s2 + $0x138] sm:$0xf]
      %v528 = vld [vmem:[%s2 + $0x13c] sm:$0xf]
      %v529 = vld [vmem:[%s2 + $0x140] sm:$0xf]
      %v530 = vld [vmem:[%s2 + $0x144] sm:$0xf]
      %v531 = vld [vmem:[%s2 + $0x148] sm:$0xf]
      %v532 = vld [vmem:[%s2 + $0x14c] sm:$0xf]
      %v533 = vld [vmem:[%s2 + $0x150] sm:$0xf]
      %v534 = vld [vmem:[%s2 + $0x154] sm:$0xf]
      %v535 = vld [vmem:[%s2 + $0x158] sm:$0xf]
      %v536 = vld [vmem:[%s2 + $0x15c] sm:$0xf]
      %v537 = vld [vmem:[%s2 + $0x160] sm:$0xf]
      %v538 = vld [vmem:[%s2 + $0x164] sm:$0xf]
      %v539 = vld [vmem:[%s2 + $0x168] sm:$0xf]
      %v540 = vld [vmem:[%s2 + $0x16c] sm:$0xf]
      %v541 = vld [vmem:[%s2 + $0x170] sm:$0xf]
      %v542 = vld [vmem:[%s2 + $0x174] sm:$0xf]
      %v543 = vld [vmem:[%s2 + $0x178] sm:$0xf]
      %v544 = vld [vmem:[%s2 + $0x17c] sm:$0xf]
      %v545 = vld [vmem:[%s3] sm:$0x1]
      %v547 = vlaneseq
      %v548 = vshrl.u32 %v547, 7
      %v549 = vsub.s32 0, %v548
      %v550 = vrot.slane %v545, %v549
      %v648 = vunpack.c.l.b16 %v449
      %v649 = vunpack.c.l.b16 %v450
      %v650 = vunpack.c.l.b16 %v451
      %v651 = vunpack.c.l.b16 %v452
      %v652 = vunpack.c.l.b16 %v453
      %v653 = vunpack.c.l.b16 %v454
      %v654 = vunpack.c.l.b16 %v455
      %v655 = vunpack.c.l.b16 %v456
      %v656 = vunpack.c.l.b16 %v457
      %v657 = vunpack.c.l.b16 %v458
      %v658 = vunpack.c.l.b16 %v459
      %v659 = vunpack.c.l.b16 %v460
      %v660 = vunpack.c.l.b16 %v461
      %v661 = vunpack.c.l.b16 %v462
      %v662 = vunpack.c.l.b16 %v463
      %v663 = vunpack.c.l.b16 %v464
      %v664 = vunpack.c.l.b16 %v465
      %v665 = vunpack.c.l.b16 %v466
      %v666 = vunpack.c.l.b16 %v467
      %v667 = vunpack.c.l.b16 %v468
      %v668 = vunpack.c.l.b16 %v469
      %v669 = vunpack.c.l.b16 %v470
      %v670 = vunpack.c.l.b16 %v471
      %v671 = vunpack.c.l.b16 %v472
      %v672 = vunpack.c.l.b16 %v473
      %v673 = vunpack.c.l.b16 %v474
      %v674 = vunpack.c.l.b16 %v475
      %v675 = vunpack.c.l.b16 %v476
      %v676 = vunpack.c.l.b16 %v477
      %v677 = vunpack.c.l.b16 %v478
      %v678 = vunpack.c.l.b16 %v479
      %v679 = vunpack.c.l.b16 %v480
      %v680 = vunpack.c.l.b16 %v481
      %v681 = vunpack.c.l.b16 %v482
      %v682 = vunpack.c.l.b16 %v483
      %v683 = vunpack.c.l.b16 %v484
      %v684 = vunpack.c.l.b16 %v485
      %v685 = vunpack.c.l.b16 %v486
      %v686 = vunpack.c.l.b16 %v487
      %v687 = vunpack.c.l.b16 %v488
      %v688 = vunpack.c.l.b16 %v489
      %v689 = vunpack.c.l.b16 %v490
      %v690 = vunpack.c.l.b16 %v491
      %v691 = vunpack.c.l.b16 %v492
      %v692 = vunpack.c.l.b16 %v493
      %v693 = vunpack.c.l.b16 %v494
      %v694 = vunpack.c.l.b16 %v495
      %v695 = vunpack.c.l.b16 %v496
      %v696 = vunpack.c.l.b16 %v497
      %v697 = vunpack.c.l.b16 %v498
      %v698 = vunpack.c.l.b16 %v499
      %v699 = vunpack.c.l.b16 %v500
      %v700 = vunpack.c.l.b16 %v501
      %v701 = vunpack.c.l.b16 %v502
      %v702 = vunpack.c.l.b16 %v503
      %v703 = vunpack.c.l.b16 %v504
      %v704 = vunpack.c.l.b16 %v505
      %v705 = vunpack.c.l.b16 %v506
      %v706 = vunpack.c.l.b16 %v507
      %v707 = vunpack.c.l.b16 %v508
      %v708 = vunpack.c.l.b16 %v509
      %v709 = vunpack.c.l.b16 %v510
      %v710 = vunpack.c.l.b16 %v511
      %v711 = vunpack.c.l.b16 %v512
      %v712 = vunpack.c.l.b16 %v513
      %v713 = vunpack.c.l.b16 %v514
      %v714 = vunpack.c.l.b16 %v515
      %v715 = vunpack.c.l.b16 %v516
      %v716 = vunpack.c.l.b16 %v517
      %v717 = vunpack.c.l.b16 %v518
      %v718 = vunpack.c.l.b16 %v519
      %v719 = vunpack.c.l.b16 %v520
      %v720 = vunpack.c.l.b16 %v521
      %v721 = vunpack.c.l.b16 %v522
      %v722 = vunpack.c.l.b16 %v523
      %v723 = vunpack.c.l.b16 %v524
      %v724 = vunpack.c.l.b16 %v525
      %v725 = vunpack.c.l.b16 %v526
      %v726 = vunpack.c.l.b16 %v527
      %v727 = vunpack.c.l.b16 %v528
      %v728 = vunpack.c.l.b16 %v529
      %v729 = vunpack.c.l.b16 %v530
      %v730 = vunpack.c.l.b16 %v531
      %v731 = vunpack.c.l.b16 %v532
      %v732 = vunpack.c.l.b16 %v533
      %v733 = vunpack.c.l.b16 %v534
      %v734 = vunpack.c.l.b16 %v535
      %v735 = vunpack.c.l.b16 %v536
      %v736 = vunpack.c.l.b16 %v537
      %v737 = vunpack.c.l.b16 %v538
      %v738 = vunpack.c.l.b16 %v539
      %v739 = vunpack.c.l.b16 %v540
      %v740 = vunpack.c.l.b16 %v541
      %v741 = vunpack.c.l.b16 %v542
      %v742 = vunpack.c.l.b16 %v543
      %v743 = vunpack.c.l.b16 %v544
      %v744 = vpack.c.b16 %v649, %v648
      %v745 = vpack.c.b16 %v651, %v650
      %v746 = vpack.c.b16 %v653, %v652
      %v747 = vpack.c.b16 %v655, %v654
      %v748 = vpack.c.b16 %v657, %v656
      %v749 = vpack.c.b16 %v659, %v658
      %v750 = vpack.c.b16 %v661, %v660
      %v751 = vpack.c.b16 %v663, %v662
      %v752 = vpack.c.b16 %v665, %v664
      %v753 = vpack.c.b16 %v667, %v666
      %v754 = vpack.c.b16 %v669, %v668
      %v755 = vpack.c.b16 %v671, %v670
      %v756 = vpack.c.b16 %v673, %v672
      %v757 = vpack.c.b16 %v675, %v674
      %v758 = vpack.c.b16 %v677, %v676
      %v759 = vpack.c.b16 %v679, %v678
      %v760 = vpack.c.b16 %v681, %v680
      %v761 = vpack.c.b16 %v683, %v682
      %v762 = vpack.c.b16 %v685, %v684
      %v763 = vpack.c.b16 %v687, %v686
      %v764 = vpack.c.b16 %v689, %v688
      %v765 = vpack.c.b16 %v691, %v690
      %v766 = vpack.c.b16 %v693, %v692
      %v767 = vpack.c.b16 %v695, %v694
      %v768 = vpack.c.b16 %v697, %v696
      %v769 = vpack.c.b16 %v699, %v698
      %v770 = vpack.c.b16 %v701, %v700
      %v771 = vpack.c.b16 %v703, %v702
      %v772 = vpack.c.b16 %v705, %v704
      %v773 = vpack.c.b16 %v707, %v706
      %v774 = vpack.c.b16 %v709, %v708
      %v775 = vpack.c.b16 %v711, %v710
      %v776 = vpack.c.b16 %v713, %v712
      %v777 = vpack.c.b16 %v715, %v714
      %v778 = vpack.c.b16 %v717, %v716
      %v779 = vpack.c.b16 %v719, %v718
      %v780 = vpack.c.b16 %v721, %v720
      %v781 = vpack.c.b16 %v723, %v722
      %v782 = vpack.c.b16 %v725, %v724
      %v783 = vpack.c.b16 %v727, %v726
      %v784 = vpack.c.b16 %v729, %v728
      %v785 = vpack.c.b16 %v731, %v730
      %v786 = vpack.c.b16 %v733, %v732
      %v787 = vpack.c.b16 %v735, %v734
      %v788 = vpack.c.b16 %v737, %v736
      %v789 = vpack.c.b16 %v739, %v738
      %v790 = vpack.c.b16 %v741, %v740
      %v791 = vpack.c.b16 %v743, %v742
      %840 = vmatprep.subr.bf16.mxu0 0
      %841 = vmatpush1.bf16.msra.mxu0 %v744
      %842 = vmatprep.subr.bf16.mxu0 0
      %843 = vmatpush1.bf16.msra.mxu0 %v745
      %844 = vmatprep.subr.bf16.mxu0 0
      %845 = vmatpush1.bf16.msra.mxu0 %v746
      %846 = vmatprep.subr.bf16.mxu0 0
      %847 = vmatpush1.bf16.msra.mxu0 %v747
      %848 = vmatprep.subr.bf16.mxu0 0
      %849 = vmatpush1.bf16.msra.mxu0 %v748
      %850 = vmatprep.subr.bf16.mxu0 0
      %851 = vmatpush1.bf16.msra.mxu0 %v749
      %852 = vmatprep.subr.bf16.mxu0 0
      %853 = vmatpush1.bf16.msra.mxu0 %v750
      %854 = vmatprep.subr.bf16.mxu0 0
      %855 = vmatpush1.bf16.msra.mxu0 %v751
      %856 = vmatprep.subr.bf16.mxu0 0
      %857 = vmatpush1.bf16.msra.mxu0 %v752
      %858 = vmatprep.subr.bf16.mxu0 0
      %859 = vmatpush1.bf16.msra.mxu0 %v753
      %860 = vmatprep.subr.bf16.mxu0 0
      %861 = vmatpush1.bf16.msra.mxu0 %v754
      %862 = vmatprep.subr.bf16.mxu0 0
      %863 = vmatpush1.bf16.msra.mxu0 %v755
      %864 = vmatprep.subr.bf16.mxu0 0
      %865 = vmatpush1.bf16.msra.mxu0 %v756
      %866 = vmatprep.subr.bf16.mxu0 0
      %867 = vmatpush1.bf16.msra.mxu0 %v757
      %868 = vmatprep.subr.bf16.mxu0 0
      %869 = vmatpush1.bf16.msra.mxu0 %v758
      %870 = vmatprep.subr.bf16.mxu0 0
      %871 = vmatpush1.bf16.msra.mxu0 %v759
      %872 = vmatprep.mubr.bf16.mxu0 %v444
      %873 = vmatmul.mubr.bf16.gmra.mrb[0].mxu0 %v443
      %v874 = vpop.f32.mrb[0].mxu0
      %v875 = vadd.f32 %v550, %v874
      %v876 = vpop.f32.mrb[0].mxu0
      %v877 = vpop.f32.mrb[0].mxu0
      %v878 = vpop.f32.mrb[0].mxu0
      %879 = vdwg.mxu0
      %880 = vmatprep.subr.bf16.mxu0 0
      %881 = vmatpush1.bf16.msra.mxu0 %v760
      %882 = vmatprep.subr.bf16.mxu0 0
      %883 = vmatpush1.bf16.msra.mxu0 %v761
      %884 = vmatprep.subr.bf16.mxu0 0
      %885 = vmatpush1.bf16.msra.mxu0 %v762
      %886 = vmatprep.subr.bf16.mxu0 0
      %887 = vmatpush1.bf16.msra.mxu0 %v763
      %888 = vmatprep.subr.bf16.mxu0 0
      %889 = vmatpush1.bf16.msra.mxu0 %v764
      %890 = vmatprep.subr.bf16.mxu0 0
      %891 = vmatpush1.bf16.msra.mxu0 %v765
      %892 = vmatprep.subr.bf16.mxu0 0
      %893 = vmatpush1.bf16.msra.mxu0 %v766
      %894 = vmatprep.subr.bf16.mxu0 0
      %895 = vmatpush1.bf16.msra.mxu0 %v767
      %896 = vmatprep.subr.bf16.mxu0 0
      %897 = vmatpush1.bf16.msra.mxu0 %v768
      %898 = vmatprep.subr.bf16.mxu0 0
      %899 = vmatpush1.bf16.msra.mxu0 %v769
      %900 = vmatprep.subr.bf16.mxu0 0
      %901 = vmatpush1.bf16.msra.mxu0 %v770
      %902 = vmatprep.subr.bf16.mxu0 0
      %903 = vmatpush1.bf16.msra.mxu0 %v771
      %904 = vmatprep.subr.bf16.mxu0 0
      %905 = vmatpush1.bf16.msra.mxu0 %v772
      %906 = vmatprep.subr.bf16.mxu0 0
      %907 = vmatpush1.bf16.msra.mxu0 %v773
      %908 = vmatprep.subr.bf16.mxu0 0
      %909 = vmatpush1.bf16.msra.mxu0 %v774
      %910 = vmatprep.subr.bf16.mxu0 0
      %911 = vmatpush1.bf16.msra.mxu0 %v775
      %912 = vmatprep.mubr.bf16.mxu0 %v446
      %913 = vmatmul.mubr.bf16.gmra.mrb[0].mxu0 %v445
      %v914 = vpop.f32.mrb[0].mxu0
      %v915 = vadd.f32 %v875, %v914
      %v916 = vpop.f32.mrb[0].mxu0
      %v917 = vpop.f32.mrb[0].mxu0
      %v918 = vpop.f32.mrb[0].mxu0
      %919 = vdwg.mxu0
      %920 = vmatprep.subr.bf16.mxu0 0
      %921 = vmatpush1.bf16.msra.mxu0 %v776
      %922 = vmatprep.subr.bf16.mxu0 0
      %923 = vmatpush1.bf16.msra.mxu0 %v777
      %924 = vmatprep.subr.bf16.mxu0 0
      %925 = vmatpush1.bf16.msra.mxu0 %v778
      %926 = vmatprep.subr.bf16.mxu0 0
      %927 = vmatpush1.bf16.msra.mxu0 %v779
      %928 = vmatprep.subr.bf16.mxu0 0
      %929 = vmatpush1.bf16.msra.mxu0 %v780
      %930 = vmatprep.subr.bf16.mxu0 0
      %931 = vmatpush1.bf16.msra.mxu0 %v781
      %932 = vmatprep.subr.bf16.mxu0 0
      %933 = vmatpush1.bf16.msra.mxu0 %v782
      %934 = vmatprep.subr.bf16.mxu0 0
      %935 = vmatpush1.bf16.msra.mxu0 %v783
      %936 = vmatprep.subr.bf16.mxu0 0
      %937 = vmatpush1.bf16.msra.mxu0 %v784
      %938 = vmatprep.subr.bf16.mxu0 0
      %939 = vmatpush1.bf16.msra.mxu0 %v785
      %940 = vmatprep.subr.bf16.mxu0 0
      %941 = vmatpush1.bf16.msra.mxu0 %v786
      %942 = vmatprep.subr.bf16.mxu0 0
      %943 = vmatpush1.bf16.msra.mxu0 %v787
      %944 = vmatprep.subr.bf16.mxu0 0
      %945 = vmatpush1.bf16.msra.mxu0 %v788
      %946 = vmatprep.subr.bf16.mxu0 0
      %947 = vmatpush1.bf16.msra.mxu0 %v789
      %948 = vmatprep.subr.bf16.mxu0 0
      %949 = vmatpush1.bf16.msra.mxu0 %v790
      %950 = vmatprep.subr.bf16.mxu0 0
      %951 = vmatpush1.bf16.msra.mxu0 %v791
      %952 = vmatprep.mubr.bf16.mxu0 %v448
      %953 = vmatmul.mubr.bf16.gmra.mrb[0].mxu0 %v447
      %v954 = vpop.f32.mrb[0].mxu0
      %v955 = vadd.f32 %v915, %v954
      %v956 = vpop.f32.mrb[0].mxu0
      %v957 = vpop.f32.mrb[0].mxu0
      %v958 = vpop.f32.mrb[0].mxu0
      %959 = vdwg.mxu0
      %v960 = vmax.f32 %v955, 0.0
      %s961 = smul.u32 %s26, 8
      %v962 = vlaneseq
      %v963 = vshrl.u32 %v962, 7
      %v964 = vstv %s961
      %v965 = vadd.s32 %v964, %v963
      %vm966 = vcmp.lt.s32.totalorder %v965, 4
      %v967 = vsel %vm966, 1, 0
      %vm968 = vcmp.eq.s32.totalorder %v967, 1
      %v969 = vsel %vm968, %v960, 0.0
      %970 = vst [vmem:[%s195] sm:$0xff] %v969
      %p971 = scmp.lt.s32.totalorder %s25, 1
      %s972 = scalar_select %p971, %s25, 1
      %p973 = scmp.lt.s32.totalorder %s26, 0
      %s974 = scalar_select %p973, %s26, 0
      %s975 = sadd.s32 %s974, %s972
      %s976 = smul.addr %s975, 8
      %s977 = scalar_lea.vmem %s4, %s976
      // Predicated region
      $region33: #{_lambda_.4} parent=31 // pred_check
        %p978 = pneg %p121
      $region34: #{_lambda_.4} parent=31 // pred_check_branch
        %980 = sbr.rel (%p978) target = $region36
      $region35: #{_lambda_.4} parent=31 // pred_region
        _
      $region36: #{_lambda_.4} parent=31 // pred_fallthru
        _
    $region32: #{_lambda_.4} parent=5 // pred_fallthru
      _
    %p981 = scmp.le.s32.totalorder 2, %s16
    // Predicated region
    $region37: #{_lambda_.4} parent=5 // pred_check
      %p982 = pneg %p981
    $region38: #{_lambda_.4} parent=5 // pred_check_branch
      %984 = sbr.rel (%p982) target = $region40
    $region39: #{_lambda_.4} parent=5 // pred_region
      %s985 = ssub.s32 %s16, 2
      // Predicated region
      $region41: #{_lambda_.4} parent=39 // pred_check
        %p986 = pneg %p127
      $region42: #{_lambda_.4} parent=39 // pred_check_branch
        %988 = sbr.rel (%p986) target = $region44
      $region43: #{_lambda_.4} parent=39 // pred_region
        %p989 = scmp.lt.s32.totalorder %s27, 1
        %s990 = scalar_select %p989, %s27, 1
        %p991 = scmp.lt.s32.totalorder %s28, 0
        %s992 = scalar_select %p991, %s28, 0
        %s993 = sadd.s32 %s992, %s990
        %s994 = smul.addr %s993, 8
        %s995 = scalar_lea.vmem %s4, %s994
      $region44: #{_lambda_.4} parent=39 // pred_fallthru
        _
    $region40: #{_lambda_.4} parent=5 // pred_fallthru
      _
  $region6: #{_lambda_.4} parent=0 // loop_footer
    %s20 = sadd.s32 1, %s16
  $region7: #{_lambda_.4} parent=0 // loop_footer_branch
    %15 = sbr.rel target = $region3
  $region8: #{_lambda_.4} parent=0 // loop_exit
    _

// kernel: _lambda_.3
$region0: #{_lambda_.3}
  #allocation0 [shape = 'u32[]', space=smem, size = 0x4, offset = 0x4, fixed_abs, tag = 'smem constant byte address 0x4 - core index']
  #allocation1 [shape = 'u32[144,128]{1,0:T(1,128)}', space=vmem, size = 0x12000, scoped, tag = 'internal scratch']
  #allocation2 [shape = 'f32[8,768]{1,0:T(8,128)}', space=vmem, size = 0x6000, scoped, tag = 'scratch operand']
  #allocation3 [shape = 's32[1]{0}', space=sflag, size = 0x4, scoped, tag = 'scoped memory for _lambda_.3']
  #allocation4 [shape = 'u8[512]{0}', space=smem, size = 0x200, scoped, tag = 'prefetched SMEM operand 0']
  %s0 = inlined_call_operand.hbm [shape: s32[96], index: 0, kind: input, shape index: {}]
  %s1 = inlined_call_operand.vmem [shape: f32[2,24,128], index: 1, kind: input, shape index: {}]
  %s2 = inlined_call_operand.hbm [shape: bf16[768,128], index: 2, kind: input, shape index: {}]
  %s3 = inlined_call_operand.hbm [shape: f32[1,128], index: 3, kind: input, shape index: {}]
  %s4 = inlined_call_operand.vmem [shape: f32[2,16,128], index: 4, kind: output, shape index: {}]
  %s5 = sld [smem:[#allocation0]]
  $region53: #{_lambda_.3} parent=0
    _
  %s7 = ssub.s32 1, %s5
  %s8 = scalar_select 0, %s7, %s5
  %10 = dma.hbm_to_smem %s0, 16, [#allocation4], [#allocation3]
  %11 = dma.done [#allocation3], 16
  %12 = sfence
  $region1: #{_lambda_.3} parent=0
    #allocation5 [shape = 'u8[196608]{0}', space=vmem, size = 0x30000, scoped, tag = 'input window, operand 2, single buffered']
    #allocation6 [shape = 's32[2]{0}', space=sflag, size = 0x8, scoped, tag = 'scoped memory for _lambda_.3']
    #allocation7 [shape = 'u8[512]{0}', space=vmem, size = 0x400, scoped, tag = 'input window, operand 3, single buffered']
    #allocation8 [shape = 's32[1]{0}', space=sflag, size = 0x4, scoped, tag = 'scoped memory for _lambda_.3']
    %13 = vsyncpa [#allocation6], 0
    %14 = vsyncpa [#allocation8], 0
    loop: start=0, step=1, limit=6
    $region2: #{_lambda_.3} parent=1 // loop_pre_header
      _
    $region3: #{_lambda_.3} parent=1 // loop_header
      %s16 = sphi 0, %s20
      %p17 = scmp.ge.s32.totalorder %s16, 6
      %s23 = sphi 0, %s35
      %s24 = sphi 0, %s31
      %s25 = sphi 0, %s23
      %s26 = sphi 0, %s24
      %s27 = sphi 0, %s25
      %s28 = sphi 0, %s26
      %s38 = sphi 0, %s40
      %s41 = sphi 0, %s38
      %s42 = sphi 0, %s41
      %s58 = sphi 0, %s42
      %s62 = sphi 0, %s62
      %s64 = sphi 0, %s62
      %s65 = sphi 0, %s64
      %s79 = sphi 0, %s65
      %s83 = sphi 0, %s83
      %s85 = sphi 0, %s83
      %s86 = sphi 0, %s85
      %s100 = sphi 0, %s86
      %s108 = sphi 0, %s110
      %s111 = sphi 0, %s108
      %s112 = sphi 0, %s111
      %s128 = sphi 0, %s112
    $region4: #{_lambda_.3} parent=1 // loop_header_branch
      %19 = sbr.rel (%p17) target = $region8
    $region5: #{_lambda_.3} parent=1 // loop_body
      %s21 = ssub.s32 %s16, 1
      %s22 = ssub.s32 %s16, 2
      %s29 = sadd.s32 1, %s24
      %p30 = scmp.ge.s32.totalorder %s29, 2
      %s31 = scalar_select %p30, 0, %s29
      %s32 = sadd.s32 1, %s23
      %s33 = scalar_select %p30, %s32, %s23
      %p34 = scmp.ge.s32.totalorder %s33, 2
      %s35 = scalar_select %p34, 0, %s33
      %s36 = ssub.s32 %s23, %s35
      %p37 = scmp.eq.s32.totalorder %s36, 0
      %s39 = sadd.s32 %s38, 1
      %s40 = scalar_select %p37, %s38, %s39
      %p43 = pneg %p37
      %p44 = scmp.eq.s32.totalorder %s16, 3
      %p45 = por %p43, %p44
      %p46 = scmp.ne.s32.totalorder %s38, %s41
      %p47 = scmp.eq.s32.totalorder %s16, 0
      %p48 = por %p46, %p47
      %p49 = scmp.ne.s32.totalorder %s38, %s41
      %p50 = scmp.eq.s32.totalorder %s21, 3
      %p51 = por %p49, %p50
      %p52 = scmp.ne.s32.totalorder %s41, %s42
      %p53 = scmp.eq.s32.totalorder %s21, 0
      %p54 = por %p52, %p53
      %p55 = scmp.ne.s32.totalorder %s41, %s42
      %p56 = scmp.eq.s32.totalorder %s22, 3
      %p57 = por %p55, %p56
      %p59 = scmp.ne.s32.totalorder %s42, %s58
      %p60 = scmp.eq.s32.totalorder %s22, 0
      %p61 = por %p59, %p60
      %s63 = sadd.s32 %s62, 1
      %p66 = scmp.eq.s32.totalorder %s16, 3
      %p67 = scmp.ne.s32.totalorder %s62, %s64
      %p68 = scmp.eq.s32.totalorder %s16, 0
      %p69 = por %p67, %p68
      %p70 = scmp.ne.s32.totalorder %s62, %s64
      %p71 = scmp.eq.s32.totalorder %s21, 3
      %p72 = por %p70, %p71
      %p73 = scmp.ne.s32.totalorder %s64, %s65
      %p74 = scmp.eq.s32.totalorder %s21, 0
      %p75 = por %p73, %p74
      %p76 = scmp.ne.s32.totalorder %s64, %s65
      %p77 = scmp.eq.s32.totalorder %s22, 3
      %p78 = por %p76, %p77
      %p80 = scmp.ne.s32.totalorder %s65, %s79
      %p81 = scmp.eq.s32.totalorder %s22, 0
      %p82 = por %p80, %p81
      %s84 = sadd.s32 %s83, 1
      %p87 = scmp.eq.s32.totalorder %s16, 3
      %p88 = scmp.ne.s32.totalorder %s83, %s85
      %p89 = scmp.eq.s32.totalorder %s16, 0
      %p90 = por %p88, %p89
      %p91 = scmp.ne.s32.totalorder %s83, %s85
      %p92 = scmp.eq.s32.totalorder %s21, 3
      %p93 = por %p91, %p92
      %p94 = scmp.ne.s32.totalorder %s85, %s86
      %p95 = scmp.eq.s32.totalorder %s21, 0
      %p96 = por %p94, %p95
      %p97 = scmp.ne.s32.totalorder %s85, %s86
      %p98 = scmp.eq.s32.totalorder %s22, 3
      %p99 = por %p97, %p98
      %p101 = scmp.ne.s32.totalorder %s86, %s100
      %p102 = scmp.eq.s32.totalorder %s22, 0
      %p103 = por %p101, %p102
      %s104 = ssub.s32 %s23, %s35
      %s105 = ssub.s32 %s24, %s31
      %s106 = sor.u32 %s104, %s105
      %p107 = scmp.eq.s32.totalorder %s106, 0
      %s109 = sadd.s32 %s108, 1
      %s110 = scalar_select %p107, %s108, %s109
      %p113 = pneg %p107
      %p114 = scmp.eq.s32.totalorder %s16, 3
      %p115 = por %p113, %p114
      %p116 = scmp.ne.s32.totalorder %s108, %s111
      %p117 = scmp.eq.s32.totalorder %s16, 0
      %p118 = por %p116, %p117
      %p119 = scmp.ne.s32.totalorder %s108, %s111
      %p120 = scmp.eq.s32.totalorder %s21, 3
      %p121 = por %p119, %p120
      %p122 = scmp.ne.s32.totalorder %s111, %s112
      %p123 = scmp.eq.s32.totalorder %s21, 0
      %p124 = por %p122, %p123
      %p125 = scmp.ne.s32.totalorder %s111, %s112
      %p126 = scmp.eq.s32.totalorder %s22, 3
      %p127 = por %p125, %p126
      %p129 = scmp.ne.s32.totalorder %s112, %s128
      %p130 = scmp.eq.s32.totalorder %s22, 0
      %p131 = por %p129, %p130
      %p132 = scmp.le.s32.totalorder 1, %s16
      %p133 = scmp.lt.s32.totalorder %s16, 5
      %p134 = pnand %p132, %p133
      %p135 = pneg %p134
      // Predicated region
      $region9: #{_lambda_.3} parent=5 // pred_check
        _
      $region10: #{_lambda_.3} parent=5 // pred_check_branch
        %137 = sbr.rel (%p134) target = $region12
      $region11: #{_lambda_.3} parent=5 // pred_region
        %s138 = ssub.s32 %s16, 1
        // Predicated region
        $region13: #{_lambda_.3} parent=11 // pred_check
          %p139 = pneg %p75
        $region14: #{_lambda_.3} parent=11 // pred_check_branch
          %141 = sbr.rel (%p139) target = $region16
        $region15: #{_lambda_.3} parent=11 // pred_region
          %s143 = ssub.s32 6144, 6144
          %144 = vsyncadd [#allocation6], %s143
          %s145 = sshll.u32 [#allocation5], 4
          %s146 = int_to_ptr.vmem [resolvable:$true] %s145
          %151 = dma.hbm_to_vmem [thread:$0]  %s2, 6144, %s146, [#allocation6], 64, 64, 4
        $region16: #{_lambda_.3} parent=11 // pred_fallthru
          _
        // Predicated region
        $region17: #{_lambda_.3} parent=11 // pred_check
          %p152 = pneg %p96
        $region18: #{_lambda_.3} parent=11 // pred_check_branch
          %154 = sbr.rel (%p152) target = $region20
        $region19: #{_lambda_.3} parent=11 // pred_region
          %s156 = ssub.s32 16, 16
          %157 = vsyncadd [#allocation8], %s156
          %s159 = sshll.u32 [#allocation7], 4
          %s160 = int_to_ptr.vmem [resolvable:$true] %s159
          %162 = dma.hbm_to_vmem [thread:$0]  %s3, 16, %s160, [#allocation8]
        $region20: #{_lambda_.3} parent=11 // pred_fallthru
          _
      $region12: #{_lambda_.3} parent=5 // pred_fallthru
        _
      %p163 = scmp.lt.s32.totalorder %s16, 4
      // Predicated region
      $region21: #{_lambda_.3} parent=5 // pred_check
        %p164 = pneg %p163
      $region22: #{_lambda_.3} parent=5 // pred_check_branch
        %166 = sbr.rel (%p164) target = $region24
      $region23: #{_lambda_.3} parent=5 // pred_region
        // Predicated region
        $region25: #{_lambda_.3} parent=23 // pred_check
          %p167 = pneg %p48
        $region26: #{_lambda_.3} parent=23 // pred_check_branch
          %169 = sbr.rel (%p167) target = $region28
        $region27: #{_lambda_.3} parent=23 // pred_region
          %p170 = scmp.lt.s32.totalorder %s23, 1
          %s171 = scalar_select %p170, %s23, 1
          %s172 = smul.addr %s171, 3
          %s173 = smul.addr %s172, 8
          %s174 = scalar_lea.vmem %s1, %s173
        $region28: #{_lambda_.3} parent=23 // pred_fallthru
          _
      $region24: #{_lambda_.3} parent=5 // pred_fallthru
        _
      %p175 = scmp.le.s32.totalorder 1, %s16
      %p176 = scmp.lt.s32.totalorder %s16, 5
      %p177 = pnand %p175, %p176
      %p178 = pneg %p177
      // Predicated region
      $region29: #{_lambda_.3} parent=5 // pred_check
        _
      $region30: #{_lambda_.3} parent=5 // pred_check_branch
        %180 = sbr.rel (%p177) target = $region32
      $region31: #{_lambda_.3} parent=5 // pred_region
        %s181 = ssub.s32 %s16, 1
        // Predicated region
        $region33: #{_lambda_.3} parent=31 // pred_check
          %p182 = pneg %p75
        $region34: #{_lambda_.3} parent=31 // pred_check_branch
          %184 = sbr.rel (%p182) target = $region36
        $region35: #{_lambda_.3} parent=31 // pred_region
          %185 = dma.done [#allocation6], 6144
        $region36: #{_lambda_.3} parent=31 // pred_fallthru
          _
        // Predicated region
        $region37: #{_lambda_.3} parent=31 // pred_check
          %p186 = pneg %p96
        $region38: #{_lambda_.3} parent=31 // pred_check_branch
          %188 = sbr.rel (%p186) target = $region40
        $region39: #{_lambda_.3} parent=31 // pred_region
          %189 = dma.done [#allocation8], 16
        $region40: #{_lambda_.3} parent=31 // pred_fallthru
          _
        %p190 = scmp.lt.s32.totalorder %s25, 1
        %s191 = scalar_select %p190, %s25, 1
        %s192 = smul.addr %s191, 3
        %s193 = smul.addr %s192, 8
        %s194 = scalar_lea.vmem %s1, %s193
        %p195 = pneg %p54
        %p196 = pneg %p51
        %p197 = pneg %p75
        %p198 = pneg %p72
        %p199 = pneg %p96
        %p200 = pneg %p93
        %p201 = pneg %p124
        %p202 = pneg %p121
        %p203 = scmp.lt.s32.totalorder %s25, 1
        %s204 = scalar_select %p203, %s25, 1
        %p205 = scmp.lt.s32.totalorder %s26, 1
        %s206 = scalar_select %p205, %s26, 1
        %s207 = smul.addr %s204, 2
        %s208 = sadd.s32 %s206, %s207
        %s209 = smul.addr %s208, 8
        %s210 = scalar_lea.vmem %s4, %s209
        %p211 = scmp.lt.s32.totalorder %s25, 1
        %s212 = scalar_select %p211, %s25, 1
        %s213 = smul.addr %s212, 3
        %s214 = smul.addr %s213, 8
        %s215 = scalar_lea.vmem %s1, %s214
        %p216 = scmp.lt.s32.totalorder %s25, 1
        %s217 = scalar_select %p216, %s25, 1
        %p218 = scmp.lt.s32.totalorder %s26, 1
        %s219 = scalar_select %p218, %s26, 1
        %s220 = smul.addr %s217, 2
        %s221 = sadd.s32 %s219, %s220
        %s222 = smul.addr %s221, 8
        %s223 = scalar_lea.vmem %s4, %s222
        %s225 = smul.u32 %s26, 48
        %s226 = sld [smem:[#allocation4 + %s225]]
        %s227 = scalar_lea.vmem %s215, %s226
        %v228 = vld [vmem:[%s227] sm:$0x1]
        %229 = vst [vmem:[#allocation2] sm:$0x1] %v228
        %s230 = sadd.s32 %s225, 1
        %s231 = sld [smem:[#allocation4 + %s230]]
        %s232 = scalar_lea.vmem %s215, %s231
        %v233 = vld [vmem:[%s232] sm:$0x1]
        %234 = vst [vmem:[#allocation2 + $0x8] sm:$0x1] %v233
        %s235 = sadd.s32 %s225, 2
        %s236 = sld [smem:[#allocation4 + %s235]]
        %s237 = scalar_lea.vmem %s215, %s236
        %v238 = vld [vmem:[%s237] sm:$0x1]
        %239 = vst [vmem:[#allocation2 + $0x10] sm:$0x1] %v238
        %s240 = sadd.s32 %s225, 3
        %s241 = sld [smem:[#allocation4 + %s240]]
        %s242 = scalar_lea.vmem %s215, %s241
        %v243 = vld [vmem:[%s242] sm:$0x1]
        %244 = vst [vmem:[#allocation2 + $0x18] sm:$0x1] %v243
        %s245 = sadd.s32 %s225, 4
        %s246 = sld [smem:[#allocation4 + %s245]]
        %s247 = scalar_lea.vmem %s215, %s246
        %v248 = vld [vmem:[%s247] sm:$0x1]
        %249 = vst [vmem:[#allocation2 + $0x20] sm:$0x1] %v248
        %s250 = sadd.s32 %s225, 5
        %s251 = sld [smem:[#allocation4 + %s250]]
        %s252 = scalar_lea.vmem %s215, %s251
        %v253 = vld [vmem:[%s252] sm:$0x1]
        %254 = vst [vmem:[#allocation2 + $0x28] sm:$0x1] %v253
        %s255 = sadd.s32 %s225, 6
        %s256 = sld [smem:[#allocation4 + %s255]]
        %s257 = scalar_lea.vmem %s215, %s256
        %v258 = vld [vmem:[%s257] sm:$0x1]
        %259 = vst [vmem:[#allocation2 + $0x1] sm:$0x1] %v258
        %s260 = sadd.s32 %s225, 7
        %s261 = sld [smem:[#allocation4 + %s260]]
        %s262 = scalar_lea.vmem %s215, %s261
        %v263 = vld [vmem:[%s262] sm:$0x1]
        %264 = vst [vmem:[#allocation2 + $0x9] sm:$0x1] %v263
        %s265 = sadd.s32 %s225, 8
        %s266 = sld [smem:[#allocation4 + %s265]]
        %s267 = scalar_lea.vmem %s215, %s266
        %v268 = vld [vmem:[%s267] sm:$0x1]
        %269 = vst [vmem:[#allocation2 + $0x11] sm:$0x1] %v268
        %s270 = sadd.s32 %s225, 9
        %s271 = sld [smem:[#allocation4 + %s270]]
        %s272 = scalar_lea.vmem %s215, %s271
        %v273 = vld [vmem:[%s272] sm:$0x1]
        %274 = vst [vmem:[#allocation2 + $0x19] sm:$0x1] %v273
        %s275 = sadd.s32 %s225, 10
        %s276 = sld [smem:[#allocation4 + %s275]]
        %s277 = scalar_lea.vmem %s215, %s276
        %v278 = vld [vmem:[%s277] sm:$0x1]
        %279 = vst [vmem:[#allocation2 + $0x21] sm:$0x1] %v278
        %s280 = sadd.s32 %s225, 11
        %s281 = sld [smem:[#allocation4 + %s280]]
        %s282 = scalar_lea.vmem %s215, %s281
        %v283 = vld [vmem:[%s282] sm:$0x1]
        %284 = vst [vmem:[#allocation2 + $0x29] sm:$0x1] %v283
        %s285 = sadd.s32 %s225, 12
        %s286 = sld [smem:[#allocation4 + %s285]]
        %s287 = scalar_lea.vmem %s215, %s286
        %v288 = vld [vmem:[%s287] sm:$0x1]
        %289 = vst [vmem:[#allocation2 + $0x2] sm:$0x1] %v288
        %s290 = sadd.s32 %s225, 13
        %s291 = sld [smem:[#allocation4 + %s290]]
        %s292 = scalar_lea.vmem %s215, %s291
        %v293 = vld [vmem:[%s292] sm:$0x1]
        %294 = vst [vmem:[#allocation2 + $0xa] sm:$0x1] %v293
        %s295 = sadd.s32 %s225, 14
        %s296 = sld [smem:[#allocation4 + %s295]]
        %s297 = scalar_lea.vmem %s215, %s296
        %v298 = vld [vmem:[%s297] sm:$0x1]
        %299 = vst [vmem:[#allocation2 + $0x12] sm:$0x1] %v298
        %s300 = sadd.s32 %s225, 15
        %s301 = sld [smem:[#allocation4 + %s300]]
        %s302 = scalar_lea.vmem %s215, %s301
        %v303 = vld [vmem:[%s302] sm:$0x1]
        %304 = vst [vmem:[#allocation2 + $0x1a] sm:$0x1] %v303
        %s305 = sadd.s32 %s225, 16
        %s306 = sld [smem:[#allocation4 + %s305]]
        %s307 = scalar_lea.vmem %s215, %s306
        %v308 = vld [vmem:[%s307] sm:$0x1]
        %309 = vst [vmem:[#allocation2 + $0x22] sm:$0x1] %v308
        %s310 = sadd.s32 %s225, 17
        %s311 = sld [smem:[#allocation4 + %s310]]
        %s312 = scalar_lea.vmem %s215, %s311
        %v313 = vld [vmem:[%s312] sm:$0x1]
        %314 = vst [vmem:[#allocation2 + $0x2a] sm:$0x1] %v313
        %s315 = sadd.s32 %s225, 18
        %s316 = sld [smem:[#allocation4 + %s315]]
        %s317 = scalar_lea.vmem %s215, %s316
        %v318 = vld [vmem:[%s317] sm:$0x1]
        %319 = vst [vmem:[#allocation2 + $0x3] sm:$0x1] %v318
        %s320 = sadd.s32 %s225, 19
        %s321 = sld [smem:[#allocation4 + %s320]]
        %s322 = scalar_lea.vmem %s215, %s321
        %v323 = vld [vmem:[%s322] sm:$0x1]
        %324 = vst [vmem:[#allocation2 + $0xb] sm:$0x1] %v323
        %s325 = sadd.s32 %s225, 20
        %s326 = sld [smem:[#allocation4 + %s325]]
        %s327 = scalar_lea.vmem %s215, %s326
        %v328 = vld [vmem:[%s327] sm:$0x1]
        %329 = vst [vmem:[#allocation2 + $0x13] sm:$0x1] %v328
        %s330 = sadd.s32 %s225, 21
        %s331 = sld [smem:[#allocation4 + %s330]]
        %s332 = scalar_lea.vmem %s215, %s331
        %v333 = vld [vmem:[%s332] sm:$0x1]
        %334 = vst [vmem:[#allocation2 + $0x1b] sm:$0x1] %v333
        %s335 = sadd.s32 %s225, 22
        %s336 = sld [smem:[#allocation4 + %s335]]
        %s337 = scalar_lea.vmem %s215, %s336
        %v338 = vld [vmem:[%s337] sm:$0x1]
        %339 = vst [vmem:[#allocation2 + $0x23] sm:$0x1] %v338
        %s340 = sadd.s32 %s225, 23
        %s341 = sld [smem:[#allocation4 + %s340]]
        %s342 = scalar_lea.vmem %s215, %s341
        %v343 = vld [vmem:[%s342] sm:$0x1]
        %344 = vst [vmem:[#allocation2 + $0x2b] sm:$0x1] %v343
        %s345 = sadd.s32 %s225, 24
        %s346 = sld [smem:[#allocation4 + %s345]]
        %s347 = scalar_lea.vmem %s215, %s346
        %v348 = vld [vmem:[%s347] sm:$0x1]
        %349 = vst [vmem:[#allocation2 + $0x4] sm:$0x1] %v348
        %s350 = sadd.s32 %s225, 25
        %s351 = sld [smem:[#allocation4 + %s350]]
        %s352 = scalar_lea.vmem %s215, %s351
        %v353 = vld [vmem:[%s352] sm:$0x1]
        %354 = vst [vmem:[#allocation2 + $0xc] sm:$0x1] %v353
        %s355 = sadd.s32 %s225, 26
        %s356 = sld [smem:[#allocation4 + %s355]]
        %s357 = scalar_lea.vmem %s215, %s356
        %v358 = vld [vmem:[%s357] sm:$0x1]
        %359 = vst [vmem:[#allocation2 + $0x14] sm:$0x1] %v358
        %s360 = sadd.s32 %s225, 27
        %s361 = sld [smem:[#allocation4 + %s360]]
        %s362 = scalar_lea.vmem %s215, %s361
        %v363 = vld [vmem:[%s362] sm:$0x1]
        %364 = vst [vmem:[#allocation2 + $0x1c] sm:$0x1] %v363
        %s365 = sadd.s32 %s225, 28
        %s366 = sld [smem:[#allocation4 + %s365]]
        %s367 = scalar_lea.vmem %s215, %s366
        %v368 = vld [vmem:[%s367] sm:$0x1]
        %369 = vst [vmem:[#allocation2 + $0x24] sm:$0x1] %v368
        %s370 = sadd.s32 %s225, 29
        %s371 = sld [smem:[#allocation4 + %s370]]
        %s372 = scalar_lea.vmem %s215, %s371
        %v373 = vld [vmem:[%s372] sm:$0x1]
        %374 = vst [vmem:[#allocation2 + $0x2c] sm:$0x1] %v373
        %s375 = sadd.s32 %s225, 30
        %s376 = sld [smem:[#allocation4 + %s375]]
        %s377 = scalar_lea.vmem %s215, %s376
        %v378 = vld [vmem:[%s377] sm:$0x1]
        %379 = vst [vmem:[#allocation2 + $0x5] sm:$0x1] %v378
        %s380 = sadd.s32 %s225, 31
        %s381 = sld [smem:[#allocation4 + %s380]]
        %s382 = scalar_lea.vmem %s215, %s381
        %v383 = vld [vmem:[%s382] sm:$0x1]
        %384 = vst [vmem:[#allocation2 + $0xd] sm:$0x1] %v383
        %s385 = sadd.s32 %s225, 32
        %s386 = sld [smem:[#allocation4 + %s385]]
        %s387 = scalar_lea.vmem %s215, %s386
        %v388 = vld [vmem:[%s387] sm:$0x1]
        %389 = vst [vmem:[#allocation2 + $0x15] sm:$0x1] %v388
        %s390 = sadd.s32 %s225, 33
        %s391 = sld [smem:[#allocation4 + %s390]]
        %s392 = scalar_lea.vmem %s215, %s391
        %v393 = vld [vmem:[%s392] sm:$0x1]
        %394 = vst [vmem:[#allocation2 + $0x1d] sm:$0x1] %v393
        %s395 = sadd.s32 %s225, 34
        %s396 = sld [smem:[#allocation4 + %s395]]
        %s397 = scalar_lea.vmem %s215, %s396
        %v398 = vld [vmem:[%s397] sm:$0x1]
        %399 = vst [vmem:[#allocation2 + $0x25] sm:$0x1] %v398
        %s400 = sadd.s32 %s225, 35
        %s401 = sld [smem:[#allocation4 + %s400]]
        %s402 = scalar_lea.vmem %s215, %s401
        %v403 = vld [vmem:[%s402] sm:$0x1]
        %404 = vst [vmem:[#allocation2 + $0x2d] sm:$0x1] %v403
        %s405 = sadd.s32 %s225, 36
        %s406 = sld [smem:[#allocation4 + %s405]]
        %s407 = scalar_lea.vmem %s215, %s406
        %v408 = vld [vmem:[%s407] sm:$0x1]
        %409 = vst [vmem:[#allocation2 + $0x6] sm:$0x1] %v408
        %s410 = sadd.s32 %s225, 37
        %s411 = sld [smem:[#allocation4 + %s410]]
        %s412 = scalar_lea.vmem %s215, %s411
        %v413 = vld [vmem:[%s412] sm:$0x1]
        %414 = vst [vmem:[#allocation2 + $0xe] sm:$0x1] %v413
        %s415 = sadd.s32 %s225, 38
        %s416 = sld [smem:[#allocation4 + %s415]]
        %s417 = scalar_lea.vmem %s215, %s416
        %v418 = vld [vmem:[%s417] sm:$0x1]
        %419 = vst [vmem:[#allocation2 + $0x16] sm:$0x1] %v418
        %s420 = sadd.s32 %s225, 39
        %s421 = sld [smem:[#allocation4 + %s420]]
        %s422 = scalar_lea.vmem %s215, %s421
        %v423 = vld [vmem:[%s422] sm:$0x1]
        %424 = vst [vmem:[#allocation2 + $0x1e] sm:$0x1] %v423
        %s425 = sadd.s32 %s225, 40
        %s426 = sld [smem:[#allocation4 + %s425]]
        %s427 = scalar_lea.vmem %s215, %s426
        %v428 = vld [vmem:[%s427] sm:$0x1]
        %429 = vst [vmem:[#allocation2 + $0x26] sm:$0x1] %v428
        %s430 = sadd.s32 %s225, 41
        %s431 = sld [smem:[#allocation4 + %s430]]
        %s432 = scalar_lea.vmem %s215, %s431
        %v433 = vld [vmem:[%s432] sm:$0x1]
        %434 = vst [vmem:[#allocation2 + $0x2e] sm:$0x1] %v433
        %s435 = sadd.s32 %s225, 42
        %s436 = sld [smem:[#allocation4 + %s435]]
        %s437 = scalar_lea.vmem %s215, %s436
        %v438 = vld [vmem:[%s437] sm:$0x1]
        %439 = vst [vmem:[#allocation2 + $0x7] sm:$0x1] %v438
        %s440 = sadd.s32 %s225, 43
        %s441 = sld [smem:[#allocation4 + %s440]]
        %s442 = scalar_lea.vmem %s215, %s441
        %v443 = vld [vmem:[%s442] sm:$0x1]
        %444 = vst [vmem:[#allocation2 + $0xf] sm:$0x1] %v443
        %s445 = sadd.s32 %s225, 44
        %s446 = sld [smem:[#allocation4 + %s445]]
        %s447 = scalar_lea.vmem %s215, %s446
        %v448 = vld [vmem:[%s447] sm:$0x1]
        %449 = vst [vmem:[#allocation2 + $0x17] sm:$0x1] %v448
        %s450 = sadd.s32 %s225, 45
        %s451 = sld [smem:[#allocation4 + %s450]]
        %s452 = scalar_lea.vmem %s215, %s451
        %v453 = vld [vmem:[%s452] sm:$0x1]
        %454 = vst [vmem:[#allocation2 + $0x1f] sm:$0x1] %v453
        %s455 = sadd.s32 %s225, 46
        %s456 = sld [smem:[#allocation4 + %s455]]
        %s457 = scalar_lea.vmem %s215, %s456
        %v458 = vld [vmem:[%s457] sm:$0x1]
        %459 = vst [vmem:[#allocation2 + $0x27] sm:$0x1] %v458
        %s460 = sadd.s32 %s225, 47
        %s461 = sld [smem:[#allocation4 + %s460]]
        %s462 = scalar_lea.vmem %s215, %s461
        %v463 = vld [vmem:[%s462] sm:$0x1]
        %464 = vst [vmem:[#allocation2 + $0x2f] sm:$0x1] %v463
        %v465 = vld [vmem:[#allocation2] sm:$0xff]
        %v466 = vld [vmem:[#allocation2 + $0x8] sm:$0xff]
        %v467 = vld [vmem:[#allocation2 + $0x10] sm:$0xff]
        %v468 = vld [vmem:[#allocation2 + $0x18] sm:$0xff]
        %v469 = vld [vmem:[#allocation2 + $0x20] sm:$0xff]
        %v470 = vld [vmem:[#allocation2 + $0x28] sm:$0xff]
        %v471 = vpack.c.bf16 %v465, %v465
        %v472 = vpack.c.bf16 %v466, %v466
        %v473 = vpack.c.bf16 %v467, %v467
        %v474 = vpack.c.bf16 %v468, %v468
        %v475 = vpack.c.bf16 %v469, %v469
        %v476 = vpack.c.bf16 %v470, %v470
        %v477 = vld [vmem:[#allocation5] sm:$0xf]
        %v478 = vld [vmem:[#allocation5 + $0x4] sm:$0xf]
        %v479 = vld [vmem:[#allocation5 + $0x8] sm:$0xf]
        %v480 = vld [vmem:[#allocation5 + $0xc] sm:$0xf]
        %v481 = vld [vmem:[#allocation5 + $0x10] sm:$0xf]
        %v482 = vld [vmem:[#allocation5 + $0x14] sm:$0xf]
        %v483 = vld [vmem:[#allocation5 + $0x18] sm:$0xf]
        %v484 = vld [vmem:[#allocation5 + $0x1c] sm:$0xf]
        %v485 = vld [vmem:[#allocation5 + $0x20] sm:$0xf]
        %v486 = vld [vmem:[#allocation5 + $0x24] sm:$0xf]
        %v487 = vld [vmem:[#allocation5 + $0x28] sm:$0xf]
        %v488 = vld [vmem:[#allocation5 + $0x2c] sm:$0xf]
        %v489 = vld [vmem:[#allocation5 + $0x30] sm:$0xf]
        %v490 = vld [vmem:[#allocation5 + $0x34] sm:$0xf]
        %v491 = vld [vmem:[#allocation5 + $0x38] sm:$0xf]
        %v492 = vld [vmem:[#allocation5 + $0x3c] sm:$0xf]
        %v493 = vld [vmem:[#allocation5 + $0x40] sm:$0xf]
        %v494 = vld [vmem:[#allocation5 + $0x44] sm:$0xf]
        %v495 = vld [vmem:[#allocation5 + $0x48] sm:$0xf]
        %v496 = vld [vmem:[#allocation5 + $0x4c] sm:$0xf]
        %v497 = vld [vmem:[#allocation5 + $0x50] sm:$0xf]
        %v498 = vld [vmem:[#allocation5 + $0x54] sm:$0xf]
        %v499 = vld [vmem:[#allocation5 + $0x58] sm:$0xf]
        %v500 = vld [vmem:[#allocation5 + $0x5c] sm:$0xf]
        %v501 = vld [vmem:[#allocation5 + $0x60] sm:$0xf]
        %v502 = vld [vmem:[#allocation5 + $0x64] sm:$0xf]
        %v503 = vld [vmem:[#allocation5 + $0x68] sm:$0xf]
        %v504 = vld [vmem:[#allocation5 + $0x6c] sm:$0xf]
        %v505 = vld [vmem:[#allocation5 + $0x70] sm:$0xf]
        %v506 = vld [vmem:[#allocation5 + $0x74] sm:$0xf]
        %v507 = vld [vmem:[#allocation5 + $0x78] sm:$0xf]
        %v508 = vld [vmem:[#allocation5 + $0x7c] sm:$0xf]
        %v509 = vld [vmem:[#allocation5 + $0x80] sm:$0xf]
        %v510 = vld [vmem:[#allocation5 + $0x84] sm:$0xf]
        %v511 = vld [vmem:[#allocation5 + $0x88] sm:$0xf]
        %v512 = vld [vmem:[#allocation5 + $0x8c] sm:$0xf]
        %v513 = vld [vmem:[#allocation5 + $0x90] sm:$0xf]
        %v514 = vld [vmem:[#allocation5 + $0x94] sm:$0xf]
        %v515 = vld [vmem:[#allocation5 + $0x98] sm:$0xf]
        %v516 = vld [vmem:[#allocation5 + $0x9c] sm:$0xf]
        %v517 = vld [vmem:[#allocation5 + $0xa0] sm:$0xf]
        %v518 = vld [vmem:[#allocation5 + $0xa4] sm:$0xf]
        %v519 = vld [vmem:[#allocation5 + $0xa8] sm:$0xf]
        %v520 = vld [vmem:[#allocation5 + $0xac] sm:$0xf]
        %v521 = vld [vmem:[#allocation5 + $0xb0] sm:$0xf]
        %v522 = vld [vmem:[#allocation5 + $0xb4] sm:$0xf]
        %v523 = vld [vmem:[#allocation5 + $0xb8] sm:$0xf]
        %v524 = vld [vmem:[#allocation5 + $0xbc] sm:$0xf]
        %v525 = vld [vmem:[#allocation5 + $0xc0] sm:$0xf]
        %v526 = vld [vmem:[#allocation5 + $0xc4] sm:$0xf]
        %v527 = vld [vmem:[#allocation5 + $0xc8] sm:$0xf]
        %v528 = vld [vmem:[#allocation5 + $0xcc] sm:$0xf]
        %v529 = vld [vmem:[#allocation5 + $0xd0] sm:$0xf]
        %v530 = vld [vmem:[#allocation5 + $0xd4] sm:$0xf]
        %v531 = vld [vmem:[#allocation5 + $0xd8] sm:$0xf]
        %v532 = vld [vmem:[#allocation5 + $0xdc] sm:$0xf]
        %v533 = vld [vmem:[#allocation5 + $0xe0] sm:$0xf]
        %v534 = vld [vmem:[#allocation5 + $0xe4] sm:$0xf]
        %v535 = vld [vmem:[#allocation5 + $0xe8] sm:$0xf]
        %v536 = vld [vmem:[#allocation5 + $0xec] sm:$0xf]
        %v537 = vld [vmem:[#allocation5 + $0xf0] sm:$0xf]
        %v538 = vld [vmem:[#allocation5 + $0xf4] sm:$0xf]
        %v539 = vld [vmem:[#allocation5 + $0xf8] sm:$0xf]
        %v540 = vld [vmem:[#allocation5 + $0xfc] sm:$0xf]
        %v541 = vld [vmem:[#allocation5 + $0x100] sm:$0xf]
        %v542 = vld [vmem:[#allocation5 + $0x104] sm:$0xf]
        %v543 = vld [vmem:[#allocation5 + $0x108] sm:$0xf]
        %v544 = vld [vmem:[#allocation5 + $0x10c] sm:$0xf]
        %v545 = vld [vmem:[#allocation5 + $0x110] sm:$0xf]
        %v546 = vld [vmem:[#allocation5 + $0x114] sm:$0xf]
        %v547 = vld [vmem:[#allocation5 + $0x118] sm:$0xf]
        %v548 = vld [vmem:[#allocation5 + $0x11c] sm:$0xf]
        %v549 = vld [vmem:[#allocation5 + $0x120] sm:$0xf]
        %v550 = vld [vmem:[#allocation5 + $0x124] sm:$0xf]
        %v551 = vld [vmem:[#allocation5 + $0x128] sm:$0xf]
        %v552 = vld [vmem:[#allocation5 + $0x12c] sm:$0xf]
        %v553 = vld [vmem:[#allocation5 + $0x130] sm:$0xf]
        %v554 = vld [vmem:[#allocation5 + $0x134] sm:$0xf]
        %v555 = vld [vmem:[#allocation5 + $0x138] sm:$0xf]
        %v556 = vld [vmem:[#allocation5 + $0x13c] sm:$0xf]
        %v557 = vld [vmem:[#allocation5 + $0x140] sm:$0xf]
        %v558 = vld [vmem:[#allocation5 + $0x144] sm:$0xf]
        %v559 = vld [vmem:[#allocation5 + $0x148] sm:$0xf]
        %v560 = vld [vmem:[#allocation5 + $0x14c] sm:$0xf]
        %v561 = vld [vmem:[#allocation5 + $0x150] sm:$0xf]
        %v562 = vld [vmem:[#allocation5 + $0x154] sm:$0xf]
        %v563 = vld [vmem:[#allocation5 + $0x158] sm:$0xf]
        %v564 = vld [vmem:[#allocation5 + $0x15c] sm:$0xf]
        %v565 = vld [vmem:[#allocation5 + $0x160] sm:$0xf]
        %v566 = vld [vmem:[#allocation5 + $0x164] sm:$0xf]
        %v567 = vld [vmem:[#allocation5 + $0x168] sm:$0xf]
        %v568 = vld [vmem:[#allocation5 + $0x16c] sm:$0xf]
        %v569 = vld [vmem:[#allocation5 + $0x170] sm:$0xf]
        %v570 = vld [vmem:[#allocation5 + $0x174] sm:$0xf]
        %v571 = vld [vmem:[#allocation5 + $0x178] sm:$0xf]
        %v572 = vld [vmem:[#allocation5 + $0x17c] sm:$0xf]
        %v573 = vld [vmem:[#allocation7] sm:$0x1]
        %v575 = vlaneseq
        %v576 = vshrl.u32 %v575, 7
        %v577 = vsub.s32 0, %v576
        %v578 = vrot.slane %v573, %v577
        %v676 = vunpack.c.l.b16 %v477
        %v677 = vunpack.c.l.b16 %v478
        %v678 = vunpack.c.l.b16 %v479
        %v679 = vunpack.c.l.b16 %v480
        %v680 = vunpack.c.l.b16 %v481
        %v681 = vunpack.c.l.b16 %v482
        %v682 = vunpack.c.l.b16 %v483
        %v683 = vunpack.c.l.b16 %v484
        %v684 = vunpack.c.l.b16 %v485
        %v685 = vunpack.c.l.b16 %v486
        %v686 = vunpack.c.l.b16 %v487
        %v687 = vunpack.c.l.b16 %v488
        %v688 = vunpack.c.l.b16 %v489
        %v689 = vunpack.c.l.b16 %v490
        %v690 = vunpack.c.l.b16 %v491
        %v691 = vunpack.c.l.b16 %v492
        %v692 = vunpack.c.l.b16 %v493
        %v693 = vunpack.c.l.b16 %v494
        %v694 = vunpack.c.l.b16 %v495
        %v695 = vunpack.c.l.b16 %v496
        %v696 = vunpack.c.l.b16 %v497
        %v697 = vunpack.c.l.b16 %v498
        %v698 = vunpack.c.l.b16 %v499
        %v699 = vunpack.c.l.b16 %v500
        %v700 = vunpack.c.l.b16 %v501
        %v701 = vunpack.c.l.b16 %v502
        %v702 = vunpack.c.l.b16 %v503
        %v703 = vunpack.c.l.b16 %v504
        %v704 = vunpack.c.l.b16 %v505
        %v705 = vunpack.c.l.b16 %v506
        %v706 = vunpack.c.l.b16 %v507
        %v707 = vunpack.c.l.b16 %v508
        %v708 = vunpack.c.l.b16 %v509
        %v709 = vunpack.c.l.b16 %v510
        %v710 = vunpack.c.l.b16 %v511
        %v711 = vunpack.c.l.b16 %v512
        %v712 = vunpack.c.l.b16 %v513
        %v713 = vunpack.c.l.b16 %v514
        %v714 = vunpack.c.l.b16 %v515
        %v715 = vunpack.c.l.b16 %v516
        %v716 = vunpack.c.l.b16 %v517
        %v717 = vunpack.c.l.b16 %v518
        %v718 = vunpack.c.l.b16 %v519
        %v719 = vunpack.c.l.b16 %v520
        %v720 = vunpack.c.l.b16 %v521
        %v721 = vunpack.c.l.b16 %v522
        %v722 = vunpack.c.l.b16 %v523
        %v723 = vunpack.c.l.b16 %v524
        %v724 = vunpack.c.l.b16 %v525
        %v725 = vunpack.c.l.b16 %v526
        %v726 = vunpack.c.l.b16 %v527
        %v727 = vunpack.c.l.b16 %v528
        %v728 = vunpack.c.l.b16 %v529
        %v729 = vunpack.c.l.b16 %v530
        %v730 = vunpack.c.l.b16 %v531
        %v731 = vunpack.c.l.b16 %v532
        %v732 = vunpack.c.l.b16 %v533
        %v733 = vunpack.c.l.b16 %v534
        %v734 = vunpack.c.l.b16 %v535
        %v735 = vunpack.c.l.b16 %v536
        %v736 = vunpack.c.l.b16 %v537
        %v737 = vunpack.c.l.b16 %v538
        %v738 = vunpack.c.l.b16 %v539
        %v739 = vunpack.c.l.b16 %v540
        %v740 = vunpack.c.l.b16 %v541
        %v741 = vunpack.c.l.b16 %v542
        %v742 = vunpack.c.l.b16 %v543
        %v743 = vunpack.c.l.b16 %v544
        %v744 = vunpack.c.l.b16 %v545
        %v745 = vunpack.c.l.b16 %v546
        %v746 = vunpack.c.l.b16 %v547
        %v747 = vunpack.c.l.b16 %v548
        %v748 = vunpack.c.l.b16 %v549
        %v749 = vunpack.c.l.b16 %v550
        %v750 = vunpack.c.l.b16 %v551
        %v751 = vunpack.c.l.b16 %v552
        %v752 = vunpack.c.l.b16 %v553
        %v753 = vunpack.c.l.b16 %v554
        %v754 = vunpack.c.l.b16 %v555
        %v755 = vunpack.c.l.b16 %v556
        %v756 = vunpack.c.l.b16 %v557
        %v757 = vunpack.c.l.b16 %v558
        %v758 = vunpack.c.l.b16 %v559
        %v759 = vunpack.c.l.b16 %v560
        %v760 = vunpack.c.l.b16 %v561
        %v761 = vunpack.c.l.b16 %v562
        %v762 = vunpack.c.l.b16 %v563
        %v763 = vunpack.c.l.b16 %v564
        %v764 = vunpack.c.l.b16 %v565
        %v765 = vunpack.c.l.b16 %v566
        %v766 = vunpack.c.l.b16 %v567
        %v767 = vunpack.c.l.b16 %v568
        %v768 = vunpack.c.l.b16 %v569
        %v769 = vunpack.c.l.b16 %v570
        %v770 = vunpack.c.l.b16 %v571
        %v771 = vunpack.c.l.b16 %v572
        %v772 = vpack.c.b16 %v677, %v676
        %v773 = vpack.c.b16 %v679, %v678
        %v774 = vpack.c.b16 %v681, %v680
        %v775 = vpack.c.b16 %v683, %v682
        %v776 = vpack.c.b16 %v685, %v684
        %v777 = vpack.c.b16 %v687, %v686
        %v778 = vpack.c.b16 %v689, %v688
        %v779 = vpack.c.b16 %v691, %v690
        %v780 = vpack.c.b16 %v693, %v692
        %v781 = vpack.c.b16 %v695, %v694
        %v782 = vpack.c.b16 %v697, %v696
        %v783 = vpack.c.b16 %v699, %v698
        %v784 = vpack.c.b16 %v701, %v700
        %v785 = vpack.c.b16 %v703, %v702
        %v786 = vpack.c.b16 %v705, %v704
        %v787 = vpack.c.b16 %v707, %v706
        %v788 = vpack.c.b16 %v709, %v708
        %v789 = vpack.c.b16 %v711, %v710
        %v790 = vpack.c.b16 %v713, %v712
        %v791 = vpack.c.b16 %v715, %v714
        %v792 = vpack.c.b16 %v717, %v716
        %v793 = vpack.c.b16 %v719, %v718
        %v794 = vpack.c.b16 %v721, %v720
        %v795 = vpack.c.b16 %v723, %v722
        %v796 = vpack.c.b16 %v725, %v724
        %v797 = vpack.c.b16 %v727, %v726
        %v798 = vpack.c.b16 %v729, %v728
        %v799 = vpack.c.b16 %v731, %v730
        %v800 = vpack.c.b16 %v733, %v732
        %v801 = vpack.c.b16 %v735, %v734
        %v802 = vpack.c.b16 %v737, %v736
        %v803 = vpack.c.b16 %v739, %v738
        %v804 = vpack.c.b16 %v741, %v740
        %v805 = vpack.c.b16 %v743, %v742
        %v806 = vpack.c.b16 %v745, %v744
        %v807 = vpack.c.b16 %v747, %v746
        %v808 = vpack.c.b16 %v749, %v748
        %v809 = vpack.c.b16 %v751, %v750
        %v810 = vpack.c.b16 %v753, %v752
        %v811 = vpack.c.b16 %v755, %v754
        %v812 = vpack.c.b16 %v757, %v756
        %v813 = vpack.c.b16 %v759, %v758
        %v814 = vpack.c.b16 %v761, %v760
        %v815 = vpack.c.b16 %v763, %v762
        %v816 = vpack.c.b16 %v765, %v764
        %v817 = vpack.c.b16 %v767, %v766
        %v818 = vpack.c.b16 %v769, %v768
        %v819 = vpack.c.b16 %v771, %v770
        %868 = vmatprep.subr.bf16.mxu0 0
        %869 = vmatpush1.bf16.msra.mxu0 %v772
        %870 = vmatprep.subr.bf16.mxu0 0
        %871 = vmatpush1.bf16.msra.mxu0 %v773
        %872 = vmatprep.subr.bf16.mxu0 0
        %873 = vmatpush1.bf16.msra.mxu0 %v774
        %874 = vmatprep.subr.bf16.mxu0 0
        %875 = vmatpush1.bf16.msra.mxu0 %v775
        %876 = vmatprep.subr.bf16.mxu0 0
        %877 = vmatpush1.bf16.msra.mxu0 %v776
        %878 = vmatprep.subr.bf16.mxu0 0
        %879 = vmatpush1.bf16.msra.mxu0 %v777
        %880 = vmatprep.subr.bf16.mxu0 0
        %881 = vmatpush1.bf16.msra.mxu0 %v778
        %882 = vmatprep.subr.bf16.mxu0 0
        %883 = vmatpush1.bf16.msra.mxu0 %v779
        %884 = vmatprep.subr.bf16.mxu0 0
        %885 = vmatpush1.bf16.msra.mxu0 %v780
        %886 = vmatprep.subr.bf16.mxu0 0
        %887 = vmatpush1.bf16.msra.mxu0 %v781
        %888 = vmatprep.subr.bf16.mxu0 0
        %889 = vmatpush1.bf16.msra.mxu0 %v782
        %890 = vmatprep.subr.bf16.mxu0 0
        %891 = vmatpush1.bf16.msra.mxu0 %v783
        %892 = vmatprep.subr.bf16.mxu0 0
        %893 = vmatpush1.bf16.msra.mxu0 %v784
        %894 = vmatprep.subr.bf16.mxu0 0
        %895 = vmatpush1.bf16.msra.mxu0 %v785
        %896 = vmatprep.subr.bf16.mxu0 0
        %897 = vmatpush1.bf16.msra.mxu0 %v786
        %898 = vmatprep.subr.bf16.mxu0 0
        %899 = vmatpush1.bf16.msra.mxu0 %v787
        %900 = vmatprep.mubr.bf16.mxu0 %v472
        %901 = vmatmul.mubr.bf16.gmra.mrb[0].mxu0 %v471
        %v902 = vpop.f32.mrb[0].mxu0
        %v903 = vadd.f32 %v578, %v902
        %v904 = vpop.f32.mrb[0].mxu0
        %v905 = vpop.f32.mrb[0].mxu0
        %v906 = vpop.f32.mrb[0].mxu0
        %907 = vdwg.mxu0
        %908 = vmatprep.subr.bf16.mxu0 0
        %909 = vmatpush1.bf16.msra.mxu0 %v788
        %910 = vmatprep.subr.bf16.mxu0 0
        %911 = vmatpush1.bf16.msra.mxu0 %v789
        %912 = vmatprep.subr.bf16.mxu0 0
        %913 = vmatpush1.bf16.msra.mxu0 %v790
        %914 = vmatprep.subr.bf16.mxu0 0
        %915 = vmatpush1.bf16.msra.mxu0 %v791
        %916 = vmatprep.subr.bf16.mxu0 0
        %917 = vmatpush1.bf16.msra.mxu0 %v792
        %918 = vmatprep.subr.bf16.mxu0 0
        %919 = vmatpush1.bf16.msra.mxu0 %v793
        %920 = vmatprep.subr.bf16.mxu0 0
        %921 = vmatpush1.bf16.msra.mxu0 %v794
        %922 = vmatprep.subr.bf16.mxu0 0
        %923 = vmatpush1.bf16.msra.mxu0 %v795
        %924 = vmatprep.subr.bf16.mxu0 0
        %925 = vmatpush1.bf16.msra.mxu0 %v796
        %926 = vmatprep.subr.bf16.mxu0 0
        %927 = vmatpush1.bf16.msra.mxu0 %v797
        %928 = vmatprep.subr.bf16.mxu0 0
        %929 = vmatpush1.bf16.msra.mxu0 %v798
        %930 = vmatprep.subr.bf16.mxu0 0
        %931 = vmatpush1.bf16.msra.mxu0 %v799
        %932 = vmatprep.subr.bf16.mxu0 0
        %933 = vmatpush1.bf16.msra.mxu0 %v800
        %934 = vmatprep.subr.bf16.mxu0 0
        %935 = vmatpush1.bf16.msra.mxu0 %v801
        %936 = vmatprep.subr.bf16.mxu0 0
        %937 = vmatpush1.bf16.msra.mxu0 %v802
        %938 = vmatprep.subr.bf16.mxu0 0
        %939 = vmatpush1.bf16.msra.mxu0 %v803
        %940 = vmatprep.mubr.bf16.mxu0 %v474
        %941 = vmatmul.mubr.bf16.gmra.mrb[0].mxu0 %v473
        %v942 = vpop.f32.mrb[0].mxu0
        %v943 = vadd.f32 %v903, %v942
        %v944 = vpop.f32.mrb[0].mxu0
        %v945 = vpop.f32.mrb[0].mxu0
        %v946 = vpop.f32.mrb[0].mxu0
        %947 = vdwg.mxu0
        %948 = vmatprep.subr.bf16.mxu0 0
        %949 = vmatpush1.bf16.msra.mxu0 %v804
        %950 = vmatprep.subr.bf16.mxu0 0
        %951 = vmatpush1.bf16.msra.mxu0 %v805
        %952 = vmatprep.subr.bf16.mxu0 0
        %953 = vmatpush1.bf16.msra.mxu0 %v806
        %954 = vmatprep.subr.bf16.mxu0 0
        %955 = vmatpush1.bf16.msra.mxu0 %v807
        %956 = vmatprep.subr.bf16.mxu0 0
        %957 = vmatpush1.bf16.msra.mxu0 %v808
        %958 = vmatprep.subr.bf16.mxu0 0
        %959 = vmatpush1.bf16.msra.mxu0 %v809
        %960 = vmatprep.subr.bf16.mxu0 0
        %961 = vmatpush1.bf16.msra.mxu0 %v810
        %962 = vmatprep.subr.bf16.mxu0 0
        %963 = vmatpush1.bf16.msra.mxu0 %v811
        %964 = vmatprep.subr.bf16.mxu0 0
        %965 = vmatpush1.bf16.msra.mxu0 %v812
        %966 = vmatprep.subr.bf16.mxu0 0
        %967 = vmatpush1.bf16.msra.mxu0 %v813
        %968 = vmatprep.subr.bf16.mxu0 0
        %969 = vmatpush1.bf16.msra.mxu0 %v814
        %970 = vmatprep.subr.bf16.mxu0 0
        %971 = vmatpush1.bf16.msra.mxu0 %v815
        %972 = vmatprep.subr.bf16.mxu0 0
        %973 = vmatpush1.bf16.msra.mxu0 %v816
        %974 = vmatprep.subr.bf16.mxu0 0
        %975 = vmatpush1.bf16.msra.mxu0 %v817
        %976 = vmatprep.subr.bf16.mxu0 0
        %977 = vmatpush1.bf16.msra.mxu0 %v818
        %978 = vmatprep.subr.bf16.mxu0 0
        %979 = vmatpush1.bf16.msra.mxu0 %v819
        %980 = vmatprep.mubr.bf16.mxu0 %v476
        %981 = vmatmul.mubr.bf16.gmra.mrb[0].mxu0 %v475
        %v982 = vpop.f32.mrb[0].mxu0
        %v983 = vadd.f32 %v943, %v982
        %v984 = vpop.f32.mrb[0].mxu0
        %v985 = vpop.f32.mrb[0].mxu0
        %v986 = vpop.f32.mrb[0].mxu0
        %987 = vdwg.mxu0
        %v988 = vmax.f32 %v983, 0.0
        %s989 = smul.u32 %s26, 8
        %v990 = vlaneseq
        %v991 = vshrl.u32 %v990, 7
        %v992 = vstv %s989
        %v993 = vadd.s32 %v992, %v991
        %vm994 = vcmp.lt.s32.totalorder %v993, 8
        %v995 = vsel %vm994, 1, 0
        %vm996 = vcmp.eq.s32.totalorder %v995, 1
        %v997 = vsel %vm996, %v988, 0.0
        %998 = vst [vmem:[%s223] sm:$0xff] %v997
        %p999 = scmp.lt.s32.totalorder %s25, 1
        %s1000 = scalar_select %p999, %s25, 1
        %p1001 = scmp.lt.s32.totalorder %s26, 1
        %s1002 = scalar_select %p1001, %s26, 1
        %s1003 = smul.addr %s1000, 2
        %s1004 = sadd.s32 %s1002, %s1003
        %s1005 = smul.addr %s1004, 8
        %s1006 = scalar_lea.vmem %s4, %s1005
        // Predicated region
        $region41: #{_lambda_.3} parent=31 // pred_check
          %p1007 = pneg %p121
        $region42: #{_lambda_.3} parent=31 // pred_check_branch
          %1009 = sbr.rel (%p1007) target = $region44
        $region43: #{_lambda_.3} parent=31 // pred_region
          _
        $region44: #{_lambda_.3} parent=31 // pred_fallthru
          _
      $region32: #{_lambda_.3} parent=5 // pred_fallthru
        _
      %p1010 = scmp.le.s32.totalorder 2, %s16
      // Predicated region
      $region45: #{_lambda_.3} parent=5 // pred_check
        %p1011 = pneg %p1010
      $region46: #{_lambda_.3} parent=5 // pred_check_branch
        %1013 = sbr.rel (%p1011) target = $region48
      $region47: #{_lambda_.3} parent=5 // pred_region
        %s1014 = ssub.s32 %s16, 2
        // Predicated region
        $region49: #{_lambda_.3} parent=47 // pred_check
          %p1015 = pneg %p127
        $region50: #{_lambda_.3} parent=47 // pred_check_branch
          %1017 = sbr.rel (%p1015) target = $region52
        $region51: #{_lambda_.3} parent=47 // pred_region
          %p1018 = scmp.lt.s32.totalorder %s27, 1
          %s1019 = scalar_select %p1018, %s27, 1
          %p1020 = scmp.lt.s32.totalorder %s28, 1
          %s1021 = scalar_select %p1020, %s28, 1
          %s1022 = smul.addr %s1019, 2
          %s1023 = sadd.s32 %s1021, %s1022
          %s1024 = smul.addr %s1023, 8
          %s1025 = scalar_lea.vmem %s4, %s1024
        $region52: #{_lambda_.3} parent=47 // pred_fallthru
          _
      $region48: #{_lambda_.3} parent=5 // pred_fallthru
        _
    $region6: #{_lambda_.3} parent=1 // loop_footer
      %s20 = sadd.s32 1, %s16
    $region7: #{_lambda_.3} parent=1 // loop_footer_branch
      %15 = sbr.rel target = $region3
    $region8: #{_lambda_.3} parent=1 // loop_exit
      _
    %1026 = vsyncpa [#allocation6], 1
    %s1027 = scalar_lea.sflag [#allocation6], 1
    %1028 = vsyncpa %s1027, 1
    %1029 = vsyncpa [#allocation8], 1

</llo_original>
